<compile_context>
chip_gen: v5e
topology: v5e:2x2
jax: 0.10.0
libtpu: 0.0.40
codegen_flags: <defaults>
</compile_context>

<pallas_src>
import functools

import jax
import jax.numpy as jnp
from jax.experimental import pallas as pl
from jax.experimental.pallas import tpu as pltpu


def _round_up(x, m):
    return ((x + m - 1) // m) * m


def _choose_row_tile(m):
    """Row tile: multiple of 8, <= 256, >= 2 grid steps when worthwhile (v7x)."""
    if m <= 16:
        return _round_up(m, 8)
    return min(256, _round_up((m + 1) // 2, 8))


# ----------------------------- Pallas kernels ------------------------------

def _matmul_kernel(x_ref, w_ref, o_ref):
    o_ref[...] = jnp.dot(x_ref[...], w_ref[...],
                         preferred_element_type=jnp.float32).astype(o_ref.dtype)


def _matmul_bias_tanh_kernel(x_ref, w_ref, b_ref, o_ref):
    acc = jnp.dot(x_ref[...], w_ref[...], preferred_element_type=jnp.float32)
    o_ref[...] = jnp.tanh(acc + b_ref[...]).astype(o_ref.dtype)


def _bn_stats_kernel(x_ref, s1_ref, s2_ref):
    # Accumulate column sums of x and x^2 in f32 across the (arbitrary) row grid.
    @pl.when(pl.program_id(0) == 0)
    def _():
        s1_ref[...] = jnp.zeros_like(s1_ref)
        s2_ref[...] = jnp.zeros_like(s2_ref)

    x = x_ref[...].astype(jnp.float32)
    s1_ref[...] += jnp.sum(x, axis=0, keepdims=True)
    s2_ref[...] += jnp.sum(x * x, axis=0, keepdims=True)


def _affine_relu_kernel(x_ref, sc_ref, sh_ref, o_ref):
    y = x_ref[...].astype(jnp.float32) * sc_ref[...] + sh_ref[...]
    o_ref[...] = jnp.maximum(y, 0.0).astype(o_ref.dtype)


# ------------------------------ Pallas wrappers -----------------------------

def _pallas_matmul(x, w, bias=None, out_dtype=jnp.bfloat16):
    """x: (M, K), w: (K, N). Optional fused bias+tanh epilogue (bias: (1, N) f32)."""
    M, K = x.shape
    _, Nout = w.shape
    tm = _choose_row_tile(M)
    Mpad = _round_up(M, tm)
    if Mpad != M:
        x = jnp.pad(x, ((0, Mpad - M), (0, 0)))
    in_specs = [pl.BlockSpec((tm, K), lambda i: (i, 0)),
                pl.BlockSpec((K, Nout), lambda i: (0, 0))]
    args = (x, w)
    kernel = _matmul_kernel
    if bias is not None:
        in_specs.append(pl.BlockSpec((1, Nout), lambda i: (0, 0)))
        args = (x, w, bias)
        kernel = _matmul_bias_tanh_kernel
    out = pl.pallas_call(
        kernel,
        out_shape=jax.ShapeDtypeStruct((Mpad, Nout), out_dtype),
        grid=(Mpad // tm,),
        in_specs=in_specs,
        out_specs=pl.BlockSpec((tm, Nout), lambda i: (i, 0)),
        compiler_params=pltpu.CompilerParams(
            dimension_semantics=("parallel",)),
    )(*args)
    return out[:M] if Mpad != M else out


def _pallas_bn_stats(x2d):
    """x2d: (R, L) -> two (1, L) f32 arrays: column sums of x and of x^2."""
    R, L = x2d.shape
    tr = min(512, _round_up(R, 8))
    Rpad = _round_up(R, tr)
    if Rpad != R:
        x2d = jnp.pad(x2d, ((0, Rpad - R), (0, 0)))     # zero rows: no-op for sums
    return pl.pallas_call(
        _bn_stats_kernel,
        out_shape=(jax.ShapeDtypeStruct((1, L), jnp.float32),
                   jax.ShapeDtypeStruct((1, L), jnp.float32)),
        grid=(Rpad // tr,),
        in_specs=[pl.BlockSpec((tr, L), lambda i: (i, 0))],
        out_specs=[pl.BlockSpec((1, L), lambda i: (0, 0)),
                   pl.BlockSpec((1, L), lambda i: (0, 0))],
        compiler_params=pltpu.CompilerParams(
            dimension_semantics=("arbitrary",)),
    )(x2d)


def _pallas_affine_relu(x2d, scale_row, shift_row, out_dtype=jnp.bfloat16):
    R, L = x2d.shape
    tr = min(512, _round_up(R, 8))
    Rpad = _round_up(R, tr)
    if Rpad != R:
        x2d = jnp.pad(x2d, ((0, Rpad - R), (0, 0)))
    out = pl.pallas_call(
        _affine_relu_kernel,
        out_shape=jax.ShapeDtypeStruct((Rpad, L), out_dtype),
        grid=(Rpad // tr,),
        in_specs=[pl.BlockSpec((tr, L), lambda i: (i, 0)),
                  pl.BlockSpec((1, L), lambda i: (0, 0)),
                  pl.BlockSpec((1, L), lambda i: (0, 0))],
        out_specs=pl.BlockSpec((tr, L), lambda i: (i, 0)),
        compiler_params=pltpu.CompilerParams(
            dimension_semantics=("parallel",)),
    )(x2d, scale_row, shift_row)
    return out[:R] if Rpad != R else out


# ------------------------- BatchNorm(+ReLU) building block -------------------

def batchnorm_relu(x_nhwc, gamma, beta):
    """BatchNorm2d with training-mode batch statistics (biased var, eps=1e-5)
    followed by ReLU.  Stats and apply both run on the lane-dense (N*H, W*C)
    view of the slab so C=16/32 layers still use full 128-lane vregs."""
    # TODO(synk): eval-mode BatchNorm (running_mean/running_var) not modeled;
    #             training-mode batch statistics are used (PyTorch .train()).
    N, H, W, C = x_nhwc.shape
    x2d = x_nhwc.reshape(N * H, W * C)
    s1, s2 = _pallas_bn_stats(x2d)                       # (1, W*C) f32 each
    s1 = s1.reshape(W, C).sum(axis=0)                    # (C,)
    s2 = s2.reshape(W, C).sum(axis=0)                    # (C,)
    cnt = float(N * H * W)
    mean = s1 / cnt
    var = jnp.maximum(s2 / cnt - mean * mean, 0.0)       # one-pass biased variance
    inv = jax.lax.rsqrt(var + 1e-5)
    scale = gamma * inv
    shift = beta - mean * scale
    scale_row = jnp.tile(scale, W).reshape(1, W * C)
    shift_row = jnp.tile(shift, W).reshape(1, W * C)
    y2d = _pallas_affine_relu(x2d, scale_row, shift_row)
    return y2d.reshape(N, H, W, C)


# ----------------------- ConvTranspose2d (phase-packed) ---------------------

def _pack_deconv_weight_s2(w):
    """Re-pack a PyTorch ConvTranspose2d weight (Cin, Cout, 4, 4) for the
    phase-packed matmul formulation of stride=2, padding=1.
      row index    = (th, tw, cin)  -- tap of the 2x2 im2col window over the
                                       1-zero-padded input
      column index = (ph, pw, cout) -- output phase (sub-pixel position)
      using kernel taps kh = ph + 2*(1-th), kw = pw + 2*(1-tw)."""
    cin, cout = w.shape[0], w.shape[1]
    kmap = jnp.array([2, 3, 0, 1])                     # (t, phase) -> kh
    w2 = w[:, :, kmap, :][:, :, :, kmap]               # (Cin, Cout, (th,ph), (tw,pw))
    w2 = w2.reshape(cin, cout, 2, 2, 2, 2)             # (Cin, Cout, th, ph, tw, pw)
    wb = jnp.transpose(w2, (2, 4, 0, 3, 5, 1))         # (th, tw, Cin, ph, pw, Cout)
    return wb.reshape(4 * cin, 4 * cout)


def _im2col_2x2(x_nhwc):
    """(N, H, W, C) -> (N, H+1, W+1, 4*C): 2x2 windows of the 1-zero-padded input."""
    N, H, W, C = x_nhwc.shape
    xp = jnp.pad(x_nhwc, ((0, 0), (1, 1), (1, 1), (0, 0)))
    cols = [xp[:, th:th + H + 1, tw:tw + W + 1, :]
            for th in (0, 1) for tw in (0, 1)]
    return jnp.concatenate(cols, axis=-1)


def _interleave_phases(y, N, H, W, c_out):
    """(N*(H+1)*(W+1), 4*c_out) phase-packed result -> (N, 2H, 2W, c_out)."""
    Hq, Wq = H + 1, W + 1
    y = y.reshape(N, Hq, Wq, 2, 2, c_out)
    y = jnp.transpose(y, (0, 1, 3, 2, 4, 5)).reshape(N, 2 * Hq, 2 * Wq, c_out)
    return y[:, 1:1 + 2 * H, 1:1 + 2 * W, :]


def conv_transpose_s2(x_nhwc, wb, c_out):
    """ConvTranspose2d(K=4, stride=2, padding=1) as ONE Pallas matmul."""
    N, H, W, Cin = x_nhwc.shape
    x2 = _im2col_2x2(x_nhwc).reshape(N * (H + 1) * (W + 1), 4 * Cin)
    y = _pallas_matmul(x2, wb)                           # (M, 4*c_out) bf16
    return _interleave_phases(y, N, H, W, c_out)


def conv_transpose_s2_bias_tanh(x_nhwc, wb_padded, bias_padded, c_out):
    """Final layer: bias + tanh fused into the matmul epilogue on a zero-padded,
    lane-dense (128-wide) output block; padding sliced off afterwards."""
    N, H, W, Cin = x_nhwc.shape
    x2 = _im2col_2x2(x_nhwc).reshape(N * (H + 1) * (W + 1), 4 * Cin)
    y = _pallas_matmul(x2, wb_padded, bias=bias_padded, out_dtype=jnp.float32)
    y = y[:, :4 * c_out]
    return _interleave_phases(y, N, H, W, c_out)


# --------------------------------- Generator --------------------------------

def init_generator_params(key, latent_dim, channel_img, features_g):
    cfgs = [
        (latent_dim,      features_g * 16, 4, 1, 0),
        (features_g * 16, features_g * 8,  4, 2, 1),
        (features_g * 8,  features_g * 4,  4, 2, 1),
        (features_g * 4,  features_g * 2,  4, 2, 1),
    ]
    keys = jax.random.split(key, len(cfgs) + 2)
    blocks = []
    for i, (cin, cout, k, s, p) in enumerate(cfgs):
        # PyTorch ConvTranspose2d weight layout: (Cin, Cout, K, K)
        w = jax.random.normal(keys[i], (cin, cout, k, k), jnp.float32) * 0.02
        if s == 1:        # first block: 1x1 input, pure matmul + reshape
            w_packed = jnp.transpose(w, (0, 2, 3, 1)).reshape(cin, k * k * cout)
        else:             # stride-2 blocks: phase-packed matmul weight
            w_packed = _pack_deconv_weight_s2(w)
        blocks.append({
            "w_raw": w,                                  # f32 torch layout (ref only)
            "w": w_packed.astype(jnp.bfloat16),
            "gamma": jnp.ones((cout,), jnp.float32),
            "beta": jnp.zeros((cout,), jnp.float32),
        })
    cin, cout = features_g * 2, channel_img
    w = jax.random.normal(keys[-2], (cin, cout, 4, 4), jnp.float32) * 0.02
    b = jax.random.normal(keys[-1], (cout,), jnp.float32) * 0.02
    wb = _pack_deconv_weight_s2(w)                       # (4*cin, 4*cout)
    n_pad = _round_up(4 * cout, 128)                     # lane-dense final matmul
    return {
        "cfgs": cfgs,
        "blocks": blocks,
        "final_w_raw": w,
        "final_b_raw": b,
        "final_w": jnp.pad(wb, ((0, 0), (0, n_pad - 4 * cout))).astype(jnp.bfloat16),
        "final_b": jnp.pad(jnp.tile(b, 4), (0, n_pad - 4 * cout)).reshape(1, n_pad),
        "final_cout": cout,
    }


def generator_forward(params, x_nchw):
    """x: (N, latent_dim, 1, 1) NCHW -> (N, channel_img, 64, 64) NCHW (f32)."""
    x = jnp.transpose(x_nchw, (0, 2, 3, 1)).astype(jnp.bfloat16)   # -> NHWC bf16
    for cfg, blk in zip(params["cfgs"], params["blocks"]):
        cin, cout, k, s, p = cfg
        if s == 1:                       # block 0: 1x1 spatial input, pad 0
            N = x.shape[0]
            y = _pallas_matmul(x.reshape(N, cin), blk["w"])        # (N, k*k*cout)
            x = y.reshape(N, k, k, cout)
        else:
            x = conv_transpose_s2(x, blk["w"], cout)
        x = batchnorm_relu(x, blk["gamma"], blk["beta"])
    x = conv_transpose_s2_bias_tanh(x, params["final_w"], params["final_b"],
                                    params["final_cout"])
    return jnp.transpose(x, (0, 3, 1, 2)).astype(jnp.float32)      # -> NCHW


# ------------------------- pure-JAX reference (f32) --------------------------

def _ref_forward(params, x_nchw):
    """Dense overlap-add reference (all f32), used only for the self-check."""
    def deconv(x, w, stride, padding):
        N, H, W, Cin = x.shape
        cout, K = w.shape[1], w.shape[2]
        s, p = stride, padding
        wf = jnp.transpose(w, (0, 2, 3, 1)).reshape(Cin, K * K * cout)
        y = (x.reshape(-1, Cin) @ wf).reshape(N, H, W, K, K, cout)
        Hf, Wf = (H - 1) * s + K, (W - 1) * s + K
        out = jnp.zeros((N, Hf, Wf, cout), jnp.float32)
        for kh in range(K):
            for kw in range(K):
                out = out.at[:, kh:kh + H * s:s, kw:kw + W * s:s, :].add(
                    y[:, :, :, kh, kw, :])
        return out[:, p:Hf - p, p:Wf - p, :]

    def bn_relu(x, g, b):
        m = x.mean(axis=(0, 1, 2))
        v = x.var(axis=(0, 1, 2))
        return jnp.maximum((x - m) * jax.lax.rsqrt(v + 1e-5) * g + b, 0.0)

    x = jnp.transpose(x_nchw, (0, 2, 3, 1)).astype(jnp.float32)
    for cfg, blk in zip(params["cfgs"], params["blocks"]):
        _, _, k, s, p = cfg
        x = bn_relu(deconv(x, blk["w_raw"], s, p), blk["gamma"], blk["beta"])
    x = jnp.tanh(deconv(x, params["final_w_raw"], 2, 1) + params["final_b_raw"])
    return jnp.transpose(x, (0, 3, 1, 2))


if __name__ == "__main__":
    latent_dim, channel_img, features_g = 32, 3, 8
    key = jax.random.PRNGKey(0)
    kp, kx = jax.random.split(key)
    params = init_generator_params(kp, latent_dim, channel_img, features_g)
    x = jax.random.normal(kx, (2, latent_dim, 1, 1), jnp.float32)

    fwd = jax.jit(functools.partial(generator_forward, params))
    out = jax.block_until_ready(fwd(x))

    assert out.shape == (2, channel_img, 64, 64), out.shape
    assert bool(jnp.all(jnp.isfinite(out)))
    assert bool(jnp.all(jnp.abs(out) <= 1.0 + 1e-6))          # tanh range check

    ref = _ref_forward(params, x)
    max_err = float(jnp.max(jnp.abs(out - ref.astype(jnp.float32))))
    assert max_err < 0.1, f"mismatch vs f32 reference: max abs err = {max_err}"

    print("KERNEL_OK")
</pallas_src>

<mosaic_0001>
module attributes {stable_mosaic.version = 11 : i64} {
  func.func @_matmul_kernel(%arg0: i32, %arg1: memref<8x32xbf16, #tpu.memory_space<vmem>>, %arg2: memref<32x2048xbf16, #tpu.memory_space<vmem>>, %arg3: memref<8x2048xbf16, #tpu.memory_space<vmem>>) attributes {dimension_semantics = [#tpu.dimension_semantics<parallel>], iteration_bounds = array<i64: 1>, scalar_prefetch = 0 : i64, scratch_operands = 0 : i64, tpu.core_type = #tpu.core_type<tc>, window_params = [{transform_indices = @transform_0, window_bounds = array<i64: 8, 32>}, {pipeline_mode = #tpu.pipeline_mode<synchronous>, transform_indices = @transform_1, window_bounds = array<i64: 32, 2048>}, {transform_indices = @transform_2, window_bounds = array<i64: 8, 2048>}]} {
    %c0 = arith.constant 0 : index
    %c0_0 = arith.constant 0 : index
    %0 = vector.load %arg1[%c0, %c0_0] : memref<8x32xbf16, #tpu.memory_space<vmem>>, vector<8x32xbf16>
    %c0_1 = arith.constant 0 : index
    %c0_2 = arith.constant 0 : index
    %1 = vector.load %arg2[%c0_1, %c0_2] : memref<32x2048xbf16, #tpu.memory_space<vmem>>, vector<32x2048xbf16>
    %cst = arith.constant dense<0.000000e+00> : vector<8x2048xf32>
    %2 = tpu.matmul %0, %1, %cst {dimension_numbers = #tpu.dot_dimension_numbers<[1], [0], [0], [1], [0, 0, 1, 1], [], []>} : vector<8x32xbf16>, vector<32x2048xbf16>, vector<8x2048xf32> -> vector<8x2048xf32>
    %3 = arith.truncf %2 : vector<8x2048xf32> to vector<8x2048xbf16>
    %c0_3 = arith.constant 0 : index
    %c0_4 = arith.constant 0 : index
    %4 = vector.load %arg3[%c0_3, %c0_4] : memref<8x2048xbf16, #tpu.memory_space<vmem>>, vector<8x2048xbf16>
    tpu.vector_store %arg3[%c0_3, %c0_4], %3 {strides = array<i32>} : memref<8x2048xbf16, #tpu.memory_space<vmem>>, vector<8x2048xbf16>,
    return
  }
  func.func @transform_0(%arg0: i32) -> (i32, i32) {
    %c0_i32 = arith.constant 0 : i32
    %c0_i32_0 = arith.constant 0 : i32
    return %arg0, %c0_i32 : i32, i32
  }
  func.func @transform_1(%arg0: i32) -> (i32, i32) {
    %c0_i32 = arith.constant 0 : i32
    %c0_i32_0 = arith.constant 0 : i32
    %c0_i32_1 = arith.constant 0 : i32
    return %c0_i32, %c0_i32_0 : i32, i32
  }
  func.func @transform_2(%arg0: i32) -> (i32, i32) {
    %c0_i32 = arith.constant 0 : i32
    %c0_i32_0 = arith.constant 0 : i32
    return %arg0, %c0_i32 : i32, i32
  }
}

module attributes {stable_mosaic.version = 11 : i64} {
  func.func @_bn_stats_kernel(%arg0: i32, %arg1: memref<8x512xbf16, #tpu.memory_space<vmem>>, %arg2: memref<1x512xf32, #tpu.memory_space<vmem>>, %arg3: memref<1x512xf32, #tpu.memory_space<vmem>>) attributes {dimension_semantics = [#tpu.dimension_semantics<arbitrary>], iteration_bounds = array<i64: 1>, scalar_prefetch = 0 : i64, scratch_operands = 0 : i64, tpu.core_type = #tpu.core_type<tc>, window_params = [{transform_indices = @transform_0, window_bounds = array<i64: 8, 512>}, {pipeline_mode = #tpu.pipeline_mode<synchronous>, transform_indices = @transform_1, window_bounds = array<i64: 1, 512>}, {pipeline_mode = #tpu.pipeline_mode<synchronous>, transform_indices = @transform_2, window_bounds = array<i64: 1, 512>}]} {
    %c0_i32 = arith.constant 0 : i32
    %0 = arith.cmpi eq, %arg0, %c0_i32 : i32
    %1 = arith.extui %0 : i1 to i32
    %c0_i32_0 = arith.constant 0 : i32
    %2 = arith.cmpi ne, %1, %c0_i32_0 : i32
    scf.if %2 {
      %cst_11 = arith.constant 0.000000e+00 : f32
      %16 = vector.broadcast %cst_11 : f32 to vector<1x512xf32>
      %c0_12 = arith.constant 0 : index
      %c0_13 = arith.constant 0 : index
      %17 = vector.load %arg2[%c0_12, %c0_13] : memref<1x512xf32, #tpu.memory_space<vmem>>, vector<1x512xf32>
      tpu.vector_store %arg2[%c0_12, %c0_13], %16 {strides = array<i32>} : memref<1x512xf32, #tpu.memory_space<vmem>>, vector<1x512xf32>,
      %cst_14 = arith.constant 0.000000e+00 : f32
      %18 = vector.broadcast %cst_14 : f32 to vector<1x512xf32>
      %c0_15 = arith.constant 0 : index
      %c0_16 = arith.constant 0 : index
      %19 = vector.load %arg3[%c0_15, %c0_16] : memref<1x512xf32, #tpu.memory_space<vmem>>, vector<1x512xf32>
      tpu.vector_store %arg3[%c0_15, %c0_16], %18 {strides = array<i32>} : memref<1x512xf32, #tpu.memory_space<vmem>>, vector<1x512xf32>,
    } else {
    }
    %c0 = arith.constant 0 : index
    %c0_1 = arith.constant 0 : index
    %3 = vector.load %arg1[%c0, %c0_1] : memref<8x512xbf16, #tpu.memory_space<vmem>>, vector<8x512xbf16>
    %4 = arith.extf %3 : vector<8x512xbf16> to vector<8x512xf32>
    %c0_2 = arith.constant 0 : index
    %c0_3 = arith.constant 0 : index
    %5 = vector.load %arg2[%c0_2, %c0_3] : memref<1x512xf32, #tpu.memory_space<vmem>>, vector<1x512xf32>
    %cst = arith.constant dense<0.000000e+00> : vector<512xf32>
    %6 = vector.multi_reduction <add>, %4, %cst [0] : vector<8x512xf32> to vector<512xf32>
    %7 = vector.shape_cast %6 : vector<512xf32> to vector<1x512xf32>
    %8 = arith.addf %5, %7 : vector<1x512xf32>
    %c0_4 = arith.constant 0 : index
    %c0_5 = arith.constant 0 : index
    %9 = vector.load %arg2[%c0_4, %c0_5] : memref<1x512xf32, #tpu.memory_space<vmem>>, vector<1x512xf32>
    tpu.vector_store %arg2[%c0_4, %c0_5], %8 {strides = array<i32>} : memref<1x512xf32, #tpu.memory_space<vmem>>, vector<1x512xf32>,
    %c0_6 = arith.constant 0 : index
    %c0_7 = arith.constant 0 : index
    %10 = vector.load %arg3[%c0_6, %c0_7] : memref<1x512xf32, #tpu.memory_space<vmem>>, vector<1x512xf32>
    %11 = arith.mulf %4, %4 : vector<8x512xf32>
    %cst_8 = arith.constant dense<0.000000e+00> : vector<512xf32>
    %12 = vector.multi_reduction <add>, %11, %cst_8 [0] : vector<8x512xf32> to vector<512xf32>
    %13 = vector.shape_cast %12 : vector<512xf32> to vector<1x512xf32>
    %14 = arith.addf %10, %13 : vector<1x512xf32>
    %c0_9 = arith.constant 0 : index
    %c0_10 = arith.constant 0 : index
    %15 = vector.load %arg3[%c0_9, %c0_10] : memref<1x512xf32, #tpu.memory_space<vmem>>, vector<1x512xf32>
    tpu.vector_store %arg3[%c0_9, %c0_10], %14 {strides = array<i32>} : memref<1x512xf32, #tpu.memory_space<vmem>>, vector<1x512xf32>,
    return
  }
  func.func @transform_0(%arg0: i32) -> (i32, i32) {
    %c0_i32 = arith.constant 0 : i32
    %c0_i32_0 = arith.constant 0 : i32
    return %arg0, %c0_i32 : i32, i32
  }
  func.func @transform_1(%arg0: i32) -> (i32, i32) {
    %c0_i32 = arith.constant 0 : i32
    %c0_i32_0 = arith.constant 0 : i32
    %c0_i32_1 = arith.constant 0 : i32
    return %c0_i32, %c0_i32_0 : i32, i32
  }
  func.func @transform_2(%arg0: i32) -> (i32, i32) {
    %c0_i32 = arith.constant 0 : i32
    %c0_i32_0 = arith.constant 0 : i32
    %c0_i32_1 = arith.constant 0 : i32
    return %c0_i32, %c0_i32_0 : i32, i32
  }
}

module attributes {stable_mosaic.version = 11 : i64} {
  func.func @_affine_relu_kernel(%arg0: i32, %arg1: memref<8x512xbf16, #tpu.memory_space<vmem>>, %arg2: memref<1x512xf32, #tpu.memory_space<vmem>>, %arg3: memref<1x512xf32, #tpu.memory_space<vmem>>, %arg4: memref<8x512xbf16, #tpu.memory_space<vmem>>) attributes {dimension_semantics = [#tpu.dimension_semantics<parallel>], iteration_bounds = array<i64: 1>, scalar_prefetch = 0 : i64, scratch_operands = 0 : i64, tpu.core_type = #tpu.core_type<tc>, window_params = [{transform_indices = @transform_0, window_bounds = array<i64: 8, 512>}, {pipeline_mode = #tpu.pipeline_mode<synchronous>, transform_indices = @transform_1, window_bounds = array<i64: 1, 512>}, {pipeline_mode = #tpu.pipeline_mode<synchronous>, transform_indices = @transform_2, window_bounds = array<i64: 1, 512>}, {transform_indices = @transform_3, window_bounds = array<i64: 8, 512>}]} {
    %c0 = arith.constant 0 : index
    %c0_0 = arith.constant 0 : index
    %0 = vector.load %arg1[%c0, %c0_0] : memref<8x512xbf16, #tpu.memory_space<vmem>>, vector<8x512xbf16>
    %1 = arith.extf %0 : vector<8x512xbf16> to vector<8x512xf32>
    %c0_1 = arith.constant 0 : index
    %c0_2 = arith.constant 0 : index
    %2 = vector.load %arg2[%c0_1, %c0_2] : memref<1x512xf32, #tpu.memory_space<vmem>>, vector<1x512xf32>
    %3 = vector.broadcast %2 : vector<1x512xf32> to vector<8x512xf32>
    %4 = arith.mulf %1, %3 : vector<8x512xf32>
    %c0_3 = arith.constant 0 : index
    %c0_4 = arith.constant 0 : index
    %5 = vector.load %arg3[%c0_3, %c0_4] : memref<1x512xf32, #tpu.memory_space<vmem>>, vector<1x512xf32>
    %6 = vector.broadcast %5 : vector<1x512xf32> to vector<8x512xf32>
    %7 = arith.addf %4, %6 : vector<8x512xf32>
    %cst = arith.constant 0.000000e+00 : f32
    %8 = vector.broadcast %cst : f32 to vector<8x512xf32>
    %9 = arith.maximumf %7, %8 : vector<8x512xf32>
    %10 = arith.truncf %9 : vector<8x512xf32> to vector<8x512xbf16>
    %c0_5 = arith.constant 0 : index
    %c0_6 = arith.constant 0 : index
    %11 = vector.load %arg4[%c0_5, %c0_6] : memref<8x512xbf16, #tpu.memory_space<vmem>>, vector<8x512xbf16>
    tpu.vector_store %arg4[%c0_5, %c0_6], %10 {strides = array<i32>} : memref<8x512xbf16, #tpu.memory_space<vmem>>, vector<8x512xbf16>,
    return
  }
  func.func @transform_0(%arg0: i32) -> (i32, i32) {
    %c0_i32 = arith.constant 0 : i32
    %c0_i32_0 = arith.constant 0 : i32
    return %arg0, %c0_i32 : i32, i32
  }
  func.func @transform_1(%arg0: i32) -> (i32, i32) {
    %c0_i32 = arith.constant 0 : i32
    %c0_i32_0 = arith.constant 0 : i32
    %c0_i32_1 = arith.constant 0 : i32
    return %c0_i32, %c0_i32_0 : i32, i32
  }
  func.func @transform_2(%arg0: i32) -> (i32, i32) {
    %c0_i32 = arith.constant 0 : i32
    %c0_i32_0 = arith.constant 0 : i32
    %c0_i32_1 = arith.constant 0 : i32
    return %c0_i32, %c0_i32_0 : i32, i32
  }
  func.func @transform_3(%arg0: i32) -> (i32, i32) {
    %c0_i32 = arith.constant 0 : i32
    %c0_i32_0 = arith.constant 0 : i32
    return %arg0, %c0_i32 : i32, i32
  }
}

module attributes {stable_mosaic.version = 11 : i64} {
  func.func @_matmul_kernel(%arg0: i32, %arg1: memref<32x512xbf16, #tpu.memory_space<vmem>>, %arg2: memref<512x256xbf16, #tpu.memory_space<vmem>>, %arg3: memref<32x256xbf16, #tpu.memory_space<vmem>>) attributes {dimension_semantics = [#tpu.dimension_semantics<parallel>], iteration_bounds = array<i64: 2>, scalar_prefetch = 0 : i64, scratch_operands = 0 : i64, tpu.core_type = #tpu.core_type<tc>, window_params = [{transform_indices = @transform_0, window_bounds = array<i64: 32, 512>}, {pipeline_mode = #tpu.pipeline_mode<synchronous>, transform_indices = @transform_1, window_bounds = array<i64: 512, 256>}, {transform_indices = @transform_2, window_bounds = array<i64: 32, 256>}]} {
    %c0 = arith.constant 0 : index
    %c0_0 = arith.constant 0 : index
    %0 = vector.load %arg1[%c0, %c0_0] : memref<32x512xbf16, #tpu.memory_space<vmem>>, vector<32x512xbf16>
    %c0_1 = arith.constant 0 : index
    %c0_2 = arith.constant 0 : index
    %1 = vector.load %arg2[%c0_1, %c0_2] : memref<512x256xbf16, #tpu.memory_space<vmem>>, vector<512x256xbf16>
    %cst = arith.constant dense<0.000000e+00> : vector<32x256xf32>
    %2 = tpu.matmul %0, %1, %cst {dimension_numbers = #tpu.dot_dimension_numbers<[1], [0], [0], [1], [0, 0, 1, 1], [], []>} : vector<32x512xbf16>, vector<512x256xbf16>, vector<32x256xf32> -> vector<32x256xf32>
    %3 = arith.truncf %2 : vector<32x256xf32> to vector<32x256xbf16>
    %c0_3 = arith.constant 0 : index
    %c0_4 = arith.constant 0 : index
    %4 = vector.load %arg3[%c0_3, %c0_4] : memref<32x256xbf16, #tpu.memory_space<vmem>>, vector<32x256xbf16>
    tpu.vector_store %arg3[%c0_3, %c0_4], %3 {strides = array<i32>} : memref<32x256xbf16, #tpu.memory_space<vmem>>, vector<32x256xbf16>,
    return
  }
  func.func @transform_0(%arg0: i32) -> (i32, i32) {
    %c0_i32 = arith.constant 0 : i32
    %c0_i32_0 = arith.constant 0 : i32
    return %arg0, %c0_i32 : i32, i32
  }
  func.func @transform_1(%arg0: i32) -> (i32, i32) {
    %c0_i32 = arith.constant 0 : i32
    %c0_i32_0 = arith.constant 0 : i32
    %c0_i32_1 = arith.constant 0 : i32
    return %c0_i32, %c0_i32_0 : i32, i32
  }
  func.func @transform_2(%arg0: i32) -> (i32, i32) {
    %c0_i32 = arith.constant 0 : i32
    %c0_i32_0 = arith.constant 0 : i32
    return %arg0, %c0_i32 : i32, i32
  }
}

module attributes {stable_mosaic.version = 11 : i64} {
  func.func @_bn_stats_kernel(%arg0: i32, %arg1: memref<16x512xbf16, #tpu.memory_space<vmem>>, %arg2: memref<1x512xf32, #tpu.memory_space<vmem>>, %arg3: memref<1x512xf32, #tpu.memory_space<vmem>>) attributes {dimension_semantics = [#tpu.dimension_semantics<arbitrary>], iteration_bounds = array<i64: 1>, scalar_prefetch = 0 : i64, scratch_operands = 0 : i64, tpu.core_type = #tpu.core_type<tc>, window_params = [{transform_indices = @transform_0, window_bounds = array<i64: 16, 512>}, {pipeline_mode = #tpu.pipeline_mode<synchronous>, transform_indices = @transform_1, window_bounds = array<i64: 1, 512>}, {pipeline_mode = #tpu.pipeline_mode<synchronous>, transform_indices = @transform_2, window_bounds = array<i64: 1, 512>}]} {
    %c0_i32 = arith.constant 0 : i32
    %0 = arith.cmpi eq, %arg0, %c0_i32 : i32
    %1 = arith.extui %0 : i1 to i32
    %c0_i32_0 = arith.constant 0 : i32
    %2 = arith.cmpi ne, %1, %c0_i32_0 : i32
    scf.if %2 {
      %cst_11 = arith.constant 0.000000e+00 : f32
      %16 = vector.broadcast %cst_11 : f32 to vector<1x512xf32>
      %c0_12 = arith.constant 0 : index
      %c0_13 = arith.constant 0 : index
      %17 = vector.load %arg2[%c0_12, %c0_13] : memref<1x512xf32, #tpu.memory_space<vmem>>, vector<1x512xf32>
      tpu.vector_store %arg2[%c0_12, %c0_13], %16 {strides = array<i32>} : memref<1x512xf32, #tpu.memory_space<vmem>>, vector<1x512xf32>,
      %cst_14 = arith.constant 0.000000e+00 : f32
      %18 = vector.broadcast %cst_14 : f32 to vector<1x512xf32>
      %c0_15 = arith.constant 0 : index
      %c0_16 = arith.constant 0 : index
      %19 = vector.load %arg3[%c0_15, %c0_16] : memref<1x512xf32, #tpu.memory_space<vmem>>, vector<1x512xf32>
      tpu.vector_store %arg3[%c0_15, %c0_16], %18 {strides = array<i32>} : memref<1x512xf32, #tpu.memory_space<vmem>>, vector<1x512xf32>,
    } else {
    }
    %c0 = arith.constant 0 : index
    %c0_1 = arith.constant 0 : index
    %3 = vector.load %arg1[%c0, %c0_1] : memref<16x512xbf16, #tpu.memory_space<vmem>>, vector<16x512xbf16>
    %4 = arith.extf %3 : vector<16x512xbf16> to vector<16x512xf32>
    %c0_2 = arith.constant 0 : index
    %c0_3 = arith.constant 0 : index
    %5 = vector.load %arg2[%c0_2, %c0_3] : memref<1x512xf32, #tpu.memory_space<vmem>>, vector<1x512xf32>
    %cst = arith.constant dense<0.000000e+00> : vector<512xf32>
    %6 = vector.multi_reduction <add>, %4, %cst [0] : vector<16x512xf32> to vector<512xf32>
    %7 = vector.shape_cast %6 : vector<512xf32> to vector<1x512xf32>
    %8 = arith.addf %5, %7 : vector<1x512xf32>
    %c0_4 = arith.constant 0 : index
    %c0_5 = arith.constant 0 : index
    %9 = vector.load %arg2[%c0_4, %c0_5] : memref<1x512xf32, #tpu.memory_space<vmem>>, vector<1x512xf32>
    tpu.vector_store %arg2[%c0_4, %c0_5], %8 {strides = array<i32>} : memref<1x512xf32, #tpu.memory_space<vmem>>, vector<1x512xf32>,
    %c0_6 = arith.constant 0 : index
    %c0_7 = arith.constant 0 : index
    %10 = vector.load %arg3[%c0_6, %c0_7] : memref<1x512xf32, #tpu.memory_space<vmem>>, vector<1x512xf32>
    %11 = arith.mulf %4, %4 : vector<16x512xf32>
    %cst_8 = arith.constant dense<0.000000e+00> : vector<512xf32>
    %12 = vector.multi_reduction <add>, %11, %cst_8 [0] : vector<16x512xf32> to vector<512xf32>
    %13 = vector.shape_cast %12 : vector<512xf32> to vector<1x512xf32>
    %14 = arith.addf %10, %13 : vector<1x512xf32>
    %c0_9 = arith.constant 0 : index
    %c0_10 = arith.constant 0 : index
    %15 = vector.load %arg3[%c0_9, %c0_10] : memref<1x512xf32, #tpu.memory_space<vmem>>, vector<1x512xf32>
    tpu.vector_store %arg3[%c0_9, %c0_10], %14 {strides = array<i32>} : memref<1x512xf32, #tpu.memory_space<vmem>>, vector<1x512xf32>,
    return
  }
  func.func @transform_0(%arg0: i32) -> (i32, i32) {
    %c0_i32 = arith.constant 0 : i32
    %c0_i32_0 = arith.constant 0 : i32
    return %arg0, %c0_i32 : i32, i32
  }
  func.func @transform_1(%arg0: i32) -> (i32, i32) {
    %c0_i32 = arith.constant 0 : i32
    %c0_i32_0 = arith.constant 0 : i32
    %c0_i32_1 = arith.constant 0 : i32
    return %c0_i32, %c0_i32_0 : i32, i32
  }
  func.func @transform_2(%arg0: i32) -> (i32, i32) {
    %c0_i32 = arith.constant 0 : i32
    %c0_i32_0 = arith.constant 0 : i32
    %c0_i32_1 = arith.constant 0 : i32
    return %c0_i32, %c0_i32_0 : i32, i32
  }
}

module attributes {stable_mosaic.version = 11 : i64} {
  func.func @_affine_relu_kernel(%arg0: i32, %arg1: memref<16x512xbf16, #tpu.memory_space<vmem>>, %arg2: memref<1x512xf32, #tpu.memory_space<vmem>>, %arg3: memref<1x512xf32, #tpu.memory_space<vmem>>, %arg4: memref<16x512xbf16, #tpu.memory_space<vmem>>) attributes {dimension_semantics = [#tpu.dimension_semantics<parallel>], iteration_bounds = array<i64: 1>, scalar_prefetch = 0 : i64, scratch_operands = 0 : i64, tpu.core_type = #tpu.core_type<tc>, window_params = [{transform_indices = @transform_0, window_bounds = array<i64: 16, 512>}, {pipeline_mode = #tpu.pipeline_mode<synchronous>, transform_indices = @transform_1, window_bounds = array<i64: 1, 512>}, {pipeline_mode = #tpu.pipeline_mode<synchronous>, transform_indices = @transform_2, window_bounds = array<i64: 1, 512>}, {transform_indices = @transform_3, window_bounds = array<i64: 16, 512>}]} {
    %c0 = arith.constant 0 : index
    %c0_0 = arith.constant 0 : index
    %0 = vector.load %arg1[%c0, %c0_0] : memref<16x512xbf16, #tpu.memory_space<vmem>>, vector<16x512xbf16>
    %1 = arith.extf %0 : vector<16x512xbf16> to vector<16x512xf32>
    %c0_1 = arith.constant 0 : index
    %c0_2 = arith.constant 0 : index
    %2 = vector.load %arg2[%c0_1, %c0_2] : memref<1x512xf32, #tpu.memory_space<vmem>>, vector<1x512xf32>
    %3 = vector.broadcast %2 : vector<1x512xf32> to vector<16x512xf32>
    %4 = arith.mulf %1, %3 : vector<16x512xf32>
    %c0_3 = arith.constant 0 : index
    %c0_4 = arith.constant 0 : index
    %5 = vector.load %arg3[%c0_3, %c0_4] : memref<1x512xf32, #tpu.memory_space<vmem>>, vector<1x512xf32>
    %6 = vector.broadcast %5 : vector<1x512xf32> to vector<16x512xf32>
    %7 = arith.addf %4, %6 : vector<16x512xf32>
    %cst = arith.constant 0.000000e+00 : f32
    %8 = vector.broadcast %cst : f32 to vector<16x512xf32>
    %9 = arith.maximumf %7, %8 : vector<16x512xf32>
    %10 = arith.truncf %9 : vector<16x512xf32> to vector<16x512xbf16>
    %c0_5 = arith.constant 0 : index
    %c0_6 = arith.constant 0 : index
    %11 = vector.load %arg4[%c0_5, %c0_6] : memref<16x512xbf16, #tpu.memory_space<vmem>>, vector<16x512xbf16>
    tpu.vector_store %arg4[%c0_5, %c0_6], %10 {strides = array<i32>} : memref<16x512xbf16, #tpu.memory_space<vmem>>, vector<16x512xbf16>,
    return
  }
  func.func @transform_0(%arg0: i32) -> (i32, i32) {
    %c0_i32 = arith.constant 0 : i32
    %c0_i32_0 = arith.constant 0 : i32
    return %arg0, %c0_i32 : i32, i32
  }
  func.func @transform_1(%arg0: i32) -> (i32, i32) {
    %c0_i32 = arith.constant 0 : i32
    %c0_i32_0 = arith.constant 0 : i32
    %c0_i32_1 = arith.constant 0 : i32
    return %c0_i32, %c0_i32_0 : i32, i32
  }
  func.func @transform_2(%arg0: i32) -> (i32, i32) {
    %c0_i32 = arith.constant 0 : i32
    %c0_i32_0 = arith.constant 0 : i32
    %c0_i32_1 = arith.constant 0 : i32
    return %c0_i32, %c0_i32_0 : i32, i32
  }
  func.func @transform_3(%arg0: i32) -> (i32, i32) {
    %c0_i32 = arith.constant 0 : i32
    %c0_i32_0 = arith.constant 0 : i32
    return %arg0, %c0_i32 : i32, i32
  }
}

module attributes {stable_mosaic.version = 11 : i64} {
  func.func @_matmul_kernel(%arg0: i32, %arg1: memref<88x256xbf16, #tpu.memory_space<vmem>>, %arg2: memref<256x128xbf16, #tpu.memory_space<vmem>>, %arg3: memref<88x128xbf16, #tpu.memory_space<vmem>>) attributes {dimension_semantics = [#tpu.dimension_semantics<parallel>], iteration_bounds = array<i64: 2>, scalar_prefetch = 0 : i64, scratch_operands = 0 : i64, tpu.core_type = #tpu.core_type<tc>, window_params = [{transform_indices = @transform_0, window_bounds = array<i64: 88, 256>}, {pipeline_mode = #tpu.pipeline_mode<synchronous>, transform_indices = @transform_1, window_bounds = array<i64: 256, 128>}, {transform_indices = @transform_2, window_bounds = array<i64: 88, 128>}]} {
    %c0 = arith.constant 0 : index
    %c0_0 = arith.constant 0 : index
    %0 = vector.load %arg1[%c0, %c0_0] : memref<88x256xbf16, #tpu.memory_space<vmem>>, vector<88x256xbf16>
    %c0_1 = arith.constant 0 : index
    %c0_2 = arith.constant 0 : index
    %1 = vector.load %arg2[%c0_1, %c0_2] : memref<256x128xbf16, #tpu.memory_space<vmem>>, vector<256x128xbf16>
    %cst = arith.constant dense<0.000000e+00> : vector<88x128xf32>
    %2 = tpu.matmul %0, %1, %cst {dimension_numbers = #tpu.dot_dimension_numbers<[1], [0], [0], [1], [0, 0, 1, 1], [], []>} : vector<88x256xbf16>, vector<256x128xbf16>, vector<88x128xf32> -> vector<88x128xf32>
    %3 = arith.truncf %2 : vector<88x128xf32> to vector<88x128xbf16>
    %c0_3 = arith.constant 0 : index
    %c0_4 = arith.constant 0 : index
    %4 = vector.load %arg3[%c0_3, %c0_4] : memref<88x128xbf16, #tpu.memory_space<vmem>>, vector<88x128xbf16>
    tpu.vector_store %arg3[%c0_3, %c0_4], %3 {strides = array<i32>} : memref<88x128xbf16, #tpu.memory_space<vmem>>, vector<88x128xbf16>,
    return
  }
  func.func @transform_0(%arg0: i32) -> (i32, i32) {
    %c0_i32 = arith.constant 0 : i32
    %c0_i32_0 = arith.constant 0 : i32
    return %arg0, %c0_i32 : i32, i32
  }
  func.func @transform_1(%arg0: i32) -> (i32, i32) {
    %c0_i32 = arith.constant 0 : i32
    %c0_i32_0 = arith.constant 0 : i32
    %c0_i32_1 = arith.constant 0 : i32
    return %c0_i32, %c0_i32_0 : i32, i32
  }
  func.func @transform_2(%arg0: i32) -> (i32, i32) {
    %c0_i32 = arith.constant 0 : i32
    %c0_i32_0 = arith.constant 0 : i32
    return %arg0, %c0_i32 : i32, i32
  }
}

module attributes {stable_mosaic.version = 11 : i64} {
  func.func @_bn_stats_kernel(%arg0: i32, %arg1: memref<32x512xbf16, #tpu.memory_space<vmem>>, %arg2: memref<1x512xf32, #tpu.memory_space<vmem>>, %arg3: memref<1x512xf32, #tpu.memory_space<vmem>>) attributes {dimension_semantics = [#tpu.dimension_semantics<arbitrary>], iteration_bounds = array<i64: 1>, scalar_prefetch = 0 : i64, scratch_operands = 0 : i64, tpu.core_type = #tpu.core_type<tc>, window_params = [{transform_indices = @transform_0, window_bounds = array<i64: 32, 512>}, {pipeline_mode = #tpu.pipeline_mode<synchronous>, transform_indices = @transform_1, window_bounds = array<i64: 1, 512>}, {pipeline_mode = #tpu.pipeline_mode<synchronous>, transform_indices = @transform_2, window_bounds = array<i64: 1, 512>}]} {
    %c0_i32 = arith.constant 0 : i32
    %0 = arith.cmpi eq, %arg0, %c0_i32 : i32
    %1 = arith.extui %0 : i1 to i32
    %c0_i32_0 = arith.constant 0 : i32
    %2 = arith.cmpi ne, %1, %c0_i32_0 : i32
    scf.if %2 {
      %cst_11 = arith.constant 0.000000e+00 : f32
      %16 = vector.broadcast %cst_11 : f32 to vector<1x512xf32>
      %c0_12 = arith.constant 0 : index
      %c0_13 = arith.constant 0 : index
      %17 = vector.load %arg2[%c0_12, %c0_13] : memref<1x512xf32, #tpu.memory_space<vmem>>, vector<1x512xf32>
      tpu.vector_store %arg2[%c0_12, %c0_13], %16 {strides = array<i32>} : memref<1x512xf32, #tpu.memory_space<vmem>>, vector<1x512xf32>,
      %cst_14 = arith.constant 0.000000e+00 : f32
      %18 = vector.broadcast %cst_14 : f32 to vector<1x512xf32>
      %c0_15 = arith.constant 0 : index
      %c0_16 = arith.constant 0 : index
      %19 = vector.load %arg3[%c0_15, %c0_16] : memref<1x512xf32, #tpu.memory_space<vmem>>, vector<1x512xf32>
      tpu.vector_store %arg3[%c0_15, %c0_16], %18 {strides = array<i32>} : memref<1x512xf32, #tpu.memory_space<vmem>>, vector<1x512xf32>,
    } else {
    }
    %c0 = arith.constant 0 : index
    %c0_1 = arith.constant 0 : index
    %3 = vector.load %arg1[%c0, %c0_1] : memref<32x512xbf16, #tpu.memory_space<vmem>>, vector<32x512xbf16>
    %4 = arith.extf %3 : vector<32x512xbf16> to vector<32x512xf32>
    %c0_2 = arith.constant 0 : index
    %c0_3 = arith.constant 0 : index
    %5 = vector.load %arg2[%c0_2, %c0_3] : memref<1x512xf32, #tpu.memory_space<vmem>>, vector<1x512xf32>
    %cst = arith.constant dense<0.000000e+00> : vector<512xf32>
    %6 = vector.multi_reduction <add>, %4, %cst [0] : vector<32x512xf32> to vector<512xf32>
    %7 = vector.shape_cast %6 : vector<512xf32> to vector<1x512xf32>
    %8 = arith.addf %5, %7 : vector<1x512xf32>
    %c0_4 = arith.constant 0 : index
    %c0_5 = arith.constant 0 : index
    %9 = vector.load %arg2[%c0_4, %c0_5] : memref<1x512xf32, #tpu.memory_space<vmem>>, vector<1x512xf32>
    tpu.vector_store %arg2[%c0_4, %c0_5], %8 {strides = array<i32>} : memref<1x512xf32, #tpu.memory_space<vmem>>, vector<1x512xf32>,
    %c0_6 = arith.constant 0 : index
    %c0_7 = arith.constant 0 : index
    %10 = vector.load %arg3[%c0_6, %c0_7] : memref<1x512xf32, #tpu.memory_space<vmem>>, vector<1x512xf32>
    %11 = arith.mulf %4, %4 : vector<32x512xf32>
    %cst_8 = arith.constant dense<0.000000e+00> : vector<512xf32>
    %12 = vector.multi_reduction <add>, %11, %cst_8 [0] : vector<32x512xf32> to vector<512xf32>
    %13 = vector.shape_cast %12 : vector<512xf32> to vector<1x512xf32>
    %14 = arith.addf %10, %13 : vector<1x512xf32>
    %c0_9 = arith.constant 0 : index
    %c0_10 = arith.constant 0 : index
    %15 = vector.load %arg3[%c0_9, %c0_10] : memref<1x512xf32, #tpu.memory_space<vmem>>, vector<1x512xf32>
    tpu.vector_store %arg3[%c0_9, %c0_10], %14 {strides = array<i32>} : memref<1x512xf32, #tpu.memory_space<vmem>>, vector<1x512xf32>,
    return
  }
  func.func @transform_0(%arg0: i32) -> (i32, i32) {
    %c0_i32 = arith.constant 0 : i32
    %c0_i32_0 = arith.constant 0 : i32
    return %arg0, %c0_i32 : i32, i32
  }
  func.func @transform_1(%arg0: i32) -> (i32, i32) {
    %c0_i32 = arith.constant 0 : i32
    %c0_i32_0 = arith.constant 0 : i32
    %c0_i32_1 = arith.constant 0 : i32
    return %c0_i32, %c0_i32_0 : i32, i32
  }
  func.func @transform_2(%arg0: i32) -> (i32, i32) {
    %c0_i32 = arith.constant 0 : i32
    %c0_i32_0 = arith.constant 0 : i32
    %c0_i32_1 = arith.constant 0 : i32
    return %c0_i32, %c0_i32_0 : i32, i32
  }
}

module attributes {stable_mosaic.version = 11 : i64} {
  func.func @_affine_relu_kernel(%arg0: i32, %arg1: memref<32x512xbf16, #tpu.memory_space<vmem>>, %arg2: memref<1x512xf32, #tpu.memory_space<vmem>>, %arg3: memref<1x512xf32, #tpu.memory_space<vmem>>, %arg4: memref<32x512xbf16, #tpu.memory_space<vmem>>) attributes {dimension_semantics = [#tpu.dimension_semantics<parallel>], iteration_bounds = array<i64: 1>, scalar_prefetch = 0 : i64, scratch_operands = 0 : i64, tpu.core_type = #tpu.core_type<tc>, window_params = [{transform_indices = @transform_0, window_bounds = array<i64: 32, 512>}, {pipeline_mode = #tpu.pipeline_mode<synchronous>, transform_indices = @transform_1, window_bounds = array<i64: 1, 512>}, {pipeline_mode = #tpu.pipeline_mode<synchronous>, transform_indices = @transform_2, window_bounds = array<i64: 1, 512>}, {transform_indices = @transform_3, window_bounds = array<i64: 32, 512>}]} {
    %c0 = arith.constant 0 : index
    %c0_0 = arith.constant 0 : index
    %0 = vector.load %arg1[%c0, %c0_0] : memref<32x512xbf16, #tpu.memory_space<vmem>>, vector<32x512xbf16>
    %1 = arith.extf %0 : vector<32x512xbf16> to vector<32x512xf32>
    %c0_1 = arith.constant 0 : index
    %c0_2 = arith.constant 0 : index
    %2 = vector.load %arg2[%c0_1, %c0_2] : memref<1x512xf32, #tpu.memory_space<vmem>>, vector<1x512xf32>
    %3 = vector.broadcast %2 : vector<1x512xf32> to vector<32x512xf32>
    %4 = arith.mulf %1, %3 : vector<32x512xf32>
    %c0_3 = arith.constant 0 : index
    %c0_4 = arith.constant 0 : index
    %5 = vector.load %arg3[%c0_3, %c0_4] : memref<1x512xf32, #tpu.memory_space<vmem>>, vector<1x512xf32>
    %6 = vector.broadcast %5 : vector<1x512xf32> to vector<32x512xf32>
    %7 = arith.addf %4, %6 : vector<32x512xf32>
    %cst = arith.constant 0.000000e+00 : f32
    %8 = vector.broadcast %cst : f32 to vector<32x512xf32>
    %9 = arith.maximumf %7, %8 : vector<32x512xf32>
    %10 = arith.truncf %9 : vector<32x512xf32> to vector<32x512xbf16>
    %c0_5 = arith.constant 0 : index
    %c0_6 = arith.constant 0 : index
    %11 = vector.load %arg4[%c0_5, %c0_6] : memref<32x512xbf16, #tpu.memory_space<vmem>>, vector<32x512xbf16>
    tpu.vector_store %arg4[%c0_5, %c0_6], %10 {strides = array<i32>} : memref<32x512xbf16, #tpu.memory_space<vmem>>, vector<32x512xbf16>,
    return
  }
  func.func @transform_0(%arg0: i32) -> (i32, i32) {
    %c0_i32 = arith.constant 0 : i32
    %c0_i32_0 = arith.constant 0 : i32
    return %arg0, %c0_i32 : i32, i32
  }
  func.func @transform_1(%arg0: i32) -> (i32, i32) {
    %c0_i32 = arith.constant 0 : i32
    %c0_i32_0 = arith.constant 0 : i32
    %c0_i32_1 = arith.constant 0 : i32
    return %c0_i32, %c0_i32_0 : i32, i32
  }
  func.func @transform_2(%arg0: i32) -> (i32, i32) {
    %c0_i32 = arith.constant 0 : i32
    %c0_i32_0 = arith.constant 0 : i32
    %c0_i32_1 = arith.constant 0 : i32
    return %c0_i32, %c0_i32_0 : i32, i32
  }
  func.func @transform_3(%arg0: i32) -> (i32, i32) {
    %c0_i32 = arith.constant 0 : i32
    %c0_i32_0 = arith.constant 0 : i32
    return %arg0, %c0_i32 : i32, i32
  }
}

module attributes {stable_mosaic.version = 11 : i64} {
  func.func @_matmul_kernel(%arg0: i32, %arg1: memref<256x128xbf16, #tpu.memory_space<vmem>>, %arg2: memref<128x64xbf16, #tpu.memory_space<vmem>>, %arg3: memref<256x64xbf16, #tpu.memory_space<vmem>>) attributes {dimension_semantics = [#tpu.dimension_semantics<parallel>], iteration_bounds = array<i64: 3>, scalar_prefetch = 0 : i64, scratch_operands = 0 : i64, tpu.core_type = #tpu.core_type<tc>, window_params = [{transform_indices = @transform_0, window_bounds = array<i64: 256, 128>}, {pipeline_mode = #tpu.pipeline_mode<synchronous>, transform_indices = @transform_1, window_bounds = array<i64: 128, 64>}, {transform_indices = @transform_2, window_bounds = array<i64: 256, 64>}]} {
    %c0 = arith.constant 0 : index
    %c0_0 = arith.constant 0 : index
    %0 = vector.load %arg1[%c0, %c0_0] : memref<256x128xbf16, #tpu.memory_space<vmem>>, vector<256x128xbf16>
    %c0_1 = arith.constant 0 : index
    %c0_2 = arith.constant 0 : index
    %1 = vector.load %arg2[%c0_1, %c0_2] : memref<128x64xbf16, #tpu.memory_space<vmem>>, vector<128x64xbf16>
    %cst = arith.constant dense<0.000000e+00> : vector<256x64xf32>
    %2 = tpu.matmul %0, %1, %cst {dimension_numbers = #tpu.dot_dimension_numbers<[1], [0], [0], [1], [0, 0, 1, 1], [], []>} : vector<256x128xbf16>, vector<128x64xbf16>, vector<256x64xf32> -> vector<256x64xf32>
    %3 = arith.truncf %2 : vector<256x64xf32> to vector<256x64xbf16>
    %c0_3 = arith.constant 0 : index
    %c0_4 = arith.constant 0 : index
    %4 = vector.load %arg3[%c0_3, %c0_4] : memref<256x64xbf16, #tpu.memory_space<vmem>>, vector<256x64xbf16>
    tpu.vector_store %arg3[%c0_3, %c0_4], %3 {strides = array<i32>} : memref<256x64xbf16, #tpu.memory_space<vmem>>, vector<256x64xbf16>,
    return
  }
  func.func @transform_0(%arg0: i32) -> (i32, i32) {
    %c0_i32 = arith.constant 0 : i32
    %c0_i32_0 = arith.constant 0 : i32
    return %arg0, %c0_i32 : i32, i32
  }
  func.func @transform_1(%arg0: i32) -> (i32, i32) {
    %c0_i32 = arith.constant 0 : i32
    %c0_i32_0 = arith.constant 0 : i32
    %c0_i32_1 = arith.constant 0 : i32
    return %c0_i32, %c0_i32_0 : i32, i32
  }
  func.func @transform_2(%arg0: i32) -> (i32, i32) {
    %c0_i32 = arith.constant 0 : i32
    %c0_i32_0 = arith.constant 0 : i32
    return %arg0, %c0_i32 : i32, i32
  }
}

module attributes {stable_mosaic.version = 11 : i64} {
  func.func @_bn_stats_kernel(%arg0: i32, %arg1: memref<64x512xbf16, #tpu.memory_space<vmem>>, %arg2: memref<1x512xf32, #tpu.memory_space<vmem>>, %arg3: memref<1x512xf32, #tpu.memory_space<vmem>>) attributes {dimension_semantics = [#tpu.dimension_semantics<arbitrary>], iteration_bounds = array<i64: 1>, scalar_prefetch = 0 : i64, scratch_operands = 0 : i64, tpu.core_type = #tpu.core_type<tc>, window_params = [{transform_indices = @transform_0, window_bounds = array<i64: 64, 512>}, {pipeline_mode = #tpu.pipeline_mode<synchronous>, transform_indices = @transform_1, window_bounds = array<i64: 1, 512>}, {pipeline_mode = #tpu.pipeline_mode<synchronous>, transform_indices = @transform_2, window_bounds = array<i64: 1, 512>}]} {
    %c0_i32 = arith.constant 0 : i32
    %0 = arith.cmpi eq, %arg0, %c0_i32 : i32
    %1 = arith.extui %0 : i1 to i32
    %c0_i32_0 = arith.constant 0 : i32
    %2 = arith.cmpi ne, %1, %c0_i32_0 : i32
    scf.if %2 {
      %cst_11 = arith.constant 0.000000e+00 : f32
      %16 = vector.broadcast %cst_11 : f32 to vector<1x512xf32>
      %c0_12 = arith.constant 0 : index
      %c0_13 = arith.constant 0 : index
      %17 = vector.load %arg2[%c0_12, %c0_13] : memref<1x512xf32, #tpu.memory_space<vmem>>, vector<1x512xf32>
      tpu.vector_store %arg2[%c0_12, %c0_13], %16 {strides = array<i32>} : memref<1x512xf32, #tpu.memory_space<vmem>>, vector<1x512xf32>,
      %cst_14 = arith.constant 0.000000e+00 : f32
      %18 = vector.broadcast %cst_14 : f32 to vector<1x512xf32>
      %c0_15 = arith.constant 0 : index
      %c0_16 = arith.constant 0 : index
      %19 = vector.load %arg3[%c0_15, %c0_16] : memref<1x512xf32, #tpu.memory_space<vmem>>, vector<1x512xf32>
      tpu.vector_store %arg3[%c0_15, %c0_16], %18 {strides = array<i32>} : memref<1x512xf32, #tpu.memory_space<vmem>>, vector<1x512xf32>,
    } else {
    }
    %c0 = arith.constant 0 : index
    %c0_1 = arith.constant 0 : index
    %3 = vector.load %arg1[%c0, %c0_1] : memref<64x512xbf16, #tpu.memory_space<vmem>>, vector<64x512xbf16>
    %4 = arith.extf %3 : vector<64x512xbf16> to vector<64x512xf32>
    %c0_2 = arith.constant 0 : index
    %c0_3 = arith.constant 0 : index
    %5 = vector.load %arg2[%c0_2, %c0_3] : memref<1x512xf32, #tpu.memory_space<vmem>>, vector<1x512xf32>
    %cst = arith.constant dense<0.000000e+00> : vector<512xf32>
    %6 = vector.multi_reduction <add>, %4, %cst [0] : vector<64x512xf32> to vector<512xf32>
    %7 = vector.shape_cast %6 : vector<512xf32> to vector<1x512xf32>
    %8 = arith.addf %5, %7 : vector<1x512xf32>
    %c0_4 = arith.constant 0 : index
    %c0_5 = arith.constant 0 : index
    %9 = vector.load %arg2[%c0_4, %c0_5] : memref<1x512xf32, #tpu.memory_space<vmem>>, vector<1x512xf32>
    tpu.vector_store %arg2[%c0_4, %c0_5], %8 {strides = array<i32>} : memref<1x512xf32, #tpu.memory_space<vmem>>, vector<1x512xf32>,
    %c0_6 = arith.constant 0 : index
    %c0_7 = arith.constant 0 : index
    %10 = vector.load %arg3[%c0_6, %c0_7] : memref<1x512xf32, #tpu.memory_space<vmem>>, vector<1x512xf32>
    %11 = arith.mulf %4, %4 : vector<64x512xf32>
    %cst_8 = arith.constant dense<0.000000e+00> : vector<512xf32>
    %12 = vector.multi_reduction <add>, %11, %cst_8 [0] : vector<64x512xf32> to vector<512xf32>
    %13 = vector.shape_cast %12 : vector<512xf32> to vector<1x512xf32>
    %14 = arith.addf %10, %13 : vector<1x512xf32>
    %c0_9 = arith.constant 0 : index
    %c0_10 = arith.constant 0 : index
    %15 = vector.load %arg3[%c0_9, %c0_10] : memref<1x512xf32, #tpu.memory_space<vmem>>, vector<1x512xf32>
    tpu.vector_store %arg3[%c0_9, %c0_10], %14 {strides = array<i32>} : memref<1x512xf32, #tpu.memory_space<vmem>>, vector<1x512xf32>,
    return
  }
  func.func @transform_0(%arg0: i32) -> (i32, i32) {
    %c0_i32 = arith.constant 0 : i32
    %c0_i32_0 = arith.constant 0 : i32
    return %arg0, %c0_i32 : i32, i32
  }
  func.func @transform_1(%arg0: i32) -> (i32, i32) {
    %c0_i32 = arith.constant 0 : i32
    %c0_i32_0 = arith.constant 0 : i32
    %c0_i32_1 = arith.constant 0 : i32
    return %c0_i32, %c0_i32_0 : i32, i32
  }
  func.func @transform_2(%arg0: i32) -> (i32, i32) {
    %c0_i32 = arith.constant 0 : i32
    %c0_i32_0 = arith.constant 0 : i32
    %c0_i32_1 = arith.constant 0 : i32
    return %c0_i32, %c0_i32_0 : i32, i32
  }
}

module attributes {stable_mosaic.version = 11 : i64} {
  func.func @_affine_relu_kernel(%arg0: i32, %arg1: memref<64x512xbf16, #tpu.memory_space<vmem>>, %arg2: memref<1x512xf32, #tpu.memory_space<vmem>>, %arg3: memref<1x512xf32, #tpu.memory_space<vmem>>, %arg4: memref<64x512xbf16, #tpu.memory_space<vmem>>) attributes {dimension_semantics = [#tpu.dimension_semantics<parallel>], iteration_bounds = array<i64: 1>, scalar_prefetch = 0 : i64, scratch_operands = 0 : i64, tpu.core_type = #tpu.core_type<tc>, window_params = [{transform_indices = @transform_0, window_bounds = array<i64: 64, 512>}, {pipeline_mode = #tpu.pipeline_mode<synchronous>, transform_indices = @transform_1, window_bounds = array<i64: 1, 512>}, {pipeline_mode = #tpu.pipeline_mode<synchronous>, transform_indices = @transform_2, window_bounds = array<i64: 1, 512>}, {transform_indices = @transform_3, window_bounds = array<i64: 64, 512>}]} {
    %c0 = arith.constant 0 : index
    %c0_0 = arith.constant 0 : index
    %0 = vector.load %arg1[%c0, %c0_0] : memref<64x512xbf16, #tpu.memory_space<vmem>>, vector<64x512xbf16>
    %1 = arith.extf %0 : vector<64x512xbf16> to vector<64x512xf32>
    %c0_1 = arith.constant 0 : index
    %c0_2 = arith.constant 0 : index
    %2 = vector.load %arg2[%c0_1, %c0_2] : memref<1x512xf32, #tpu.memory_space<vmem>>, vector<1x512xf32>
    %3 = vector.broadcast %2 : vector<1x512xf32> to vector<64x512xf32>
    %4 = arith.mulf %1, %3 : vector<64x512xf32>
    %c0_3 = arith.constant 0 : index
    %c0_4 = arith.constant 0 : index
    %5 = vector.load %arg3[%c0_3, %c0_4] : memref<1x512xf32, #tpu.memory_space<vmem>>, vector<1x512xf32>
    %6 = vector.broadcast %5 : vector<1x512xf32> to vector<64x512xf32>
    %7 = arith.addf %4, %6 : vector<64x512xf32>
    %cst = arith.constant 0.000000e+00 : f32
    %8 = vector.broadcast %cst : f32 to vector<64x512xf32>
    %9 = arith.maximumf %7, %8 : vector<64x512xf32>
    %10 = arith.truncf %9 : vector<64x512xf32> to vector<64x512xbf16>
    %c0_5 = arith.constant 0 : index
    %c0_6 = arith.constant 0 : index
    %11 = vector.load %arg4[%c0_5, %c0_6] : memref<64x512xbf16, #tpu.memory_space<vmem>>, vector<64x512xbf16>
    tpu.vector_store %arg4[%c0_5, %c0_6], %10 {strides = array<i32>} : memref<64x512xbf16, #tpu.memory_space<vmem>>, vector<64x512xbf16>,
    return
  }
  func.func @transform_0(%arg0: i32) -> (i32, i32) {
    %c0_i32 = arith.constant 0 : i32
    %c0_i32_0 = arith.constant 0 : i32
    return %arg0, %c0_i32 : i32, i32
  }
  func.func @transform_1(%arg0: i32) -> (i32, i32) {
    %c0_i32 = arith.constant 0 : i32
    %c0_i32_0 = arith.constant 0 : i32
    %c0_i32_1 = arith.constant 0 : i32
    return %c0_i32, %c0_i32_0 : i32, i32
  }
  func.func @transform_2(%arg0: i32) -> (i32, i32) {
    %c0_i32 = arith.constant 0 : i32
    %c0_i32_0 = arith.constant 0 : i32
    %c0_i32_1 = arith.constant 0 : i32
    return %c0_i32, %c0_i32_0 : i32, i32
  }
  func.func @transform_3(%arg0: i32) -> (i32, i32) {
    %c0_i32 = arith.constant 0 : i32
    %c0_i32_0 = arith.constant 0 : i32
    return %arg0, %c0_i32 : i32, i32
  }
}

module attributes {stable_mosaic.version = 11 : i64} {
  func.func @_matmul_bias_tanh_kernel(%arg0: i32, %arg1: memref<256x64xbf16, #tpu.memory_space<vmem>>, %arg2: memref<64x128xbf16, #tpu.memory_space<vmem>>, %arg3: memref<1x128xf32, #tpu.memory_space<vmem>>, %arg4: memref<256x128xf32, #tpu.memory_space<vmem>>) attributes {dimension_semantics = [#tpu.dimension_semantics<parallel>], iteration_bounds = array<i64: 9>, scalar_prefetch = 0 : i64, scratch_operands = 0 : i64, tpu.core_type = #tpu.core_type<tc>, window_params = [{transform_indices = @transform_0, window_bounds = array<i64: 256, 64>}, {pipeline_mode = #tpu.pipeline_mode<synchronous>, transform_indices = @transform_1, window_bounds = array<i64: 64, 128>}, {pipeline_mode = #tpu.pipeline_mode<synchronous>, transform_indices = @transform_2, window_bounds = array<i64: 1, 128>}, {transform_indices = @transform_3, window_bounds = array<i64: 256, 128>}]} {
    %c0 = arith.constant 0 : index
    %c0_0 = arith.constant 0 : index
    %0 = vector.load %arg1[%c0, %c0_0] : memref<256x64xbf16, #tpu.memory_space<vmem>>, vector<256x64xbf16>
    %c0_1 = arith.constant 0 : index
    %c0_2 = arith.constant 0 : index
    %1 = vector.load %arg2[%c0_1, %c0_2] : memref<64x128xbf16, #tpu.memory_space<vmem>>, vector<64x128xbf16>
    %cst = arith.constant dense<0.000000e+00> : vector<256x128xf32>
    %2 = tpu.matmul %0, %1, %cst {dimension_numbers = #tpu.dot_dimension_numbers<[1], [0], [0], [1], [0, 0, 1, 1], [], []>} : vector<256x64xbf16>, vector<64x128xbf16>, vector<256x128xf32> -> vector<256x128xf32>
    %c0_3 = arith.constant 0 : index
    %c0_4 = arith.constant 0 : index
    %3 = vector.load %arg3[%c0_3, %c0_4] : memref<1x128xf32, #tpu.memory_space<vmem>>, vector<1x128xf32>
    %4 = vector.broadcast %3 : vector<1x128xf32> to vector<256x128xf32>
    %5 = arith.addf %2, %4 : vector<256x128xf32>
    %6 = math.tanh %5 : vector<256x128xf32>
    %c0_5 = arith.constant 0 : index
    %c0_6 = arith.constant 0 : index
    %7 = vector.load %arg4[%c0_5, %c0_6] : memref<256x128xf32, #tpu.memory_space<vmem>>, vector<256x128xf32>
    tpu.vector_store %arg4[%c0_5, %c0_6], %6 {strides = array<i32>} : memref<256x128xf32, #tpu.memory_space<vmem>>, vector<256x128xf32>,
    return
  }
  func.func @transform_0(%arg0: i32) -> (i32, i32) {
    %c0_i32 = arith.constant 0 : i32
    %c0_i32_0 = arith.constant 0 : i32
    return %arg0, %c0_i32 : i32, i32
  }
  func.func @transform_1(%arg0: i32) -> (i32, i32) {
    %c0_i32 = arith.constant 0 : i32
    %c0_i32_0 = arith.constant 0 : i32
    %c0_i32_1 = arith.constant 0 : i32
    return %c0_i32, %c0_i32_0 : i32, i32
  }
  func.func @transform_2(%arg0: i32) -> (i32, i32) {
    %c0_i32 = arith.constant 0 : i32
    %c0_i32_0 = arith.constant 0 : i32
    %c0_i32_1 = arith.constant 0 : i32
    return %c0_i32, %c0_i32_0 : i32, i32
  }
  func.func @transform_3(%arg0: i32) -> (i32, i32) {
    %c0_i32 = arith.constant 0 : i32
    %c0_i32_0 = arith.constant 0 : i32
    return %arg0, %c0_i32 : i32, i32
  }
}

</mosaic_0001>

<llo_original>
// kernel: tile.48
$region0: #{tile.48}
  #allocation0 [shape = 's32[1]{0}', space=sflag, size = 0x4, scoped, tag = 'scoped memory for tile.48']
  %s0 = inlined_call_operand.vmem [shape: f32[128], index: 0, kind: input, shape index: {}]
  %s1 = inlined_call_operand.vmem [shape: f32[4,128], index: 1, kind: output, shape index: {}]
  // Predicated region
  $region2: #{tile.48} parent=0 // pred_check
    _
  $region3: #{tile.48} parent=0 // pred_check_branch
    %3 = sbr.rel (0) target = $region5
  $region4: #{tile.48} parent=0 // pred_region
    _
  $region5: #{tile.48} parent=0 // pred_fallthru
    _
  %v4 = vld [vmem:[%s0] ss:$0 sm:$0xff]
  %5 = vst [vmem:[%s1] sm:$0xf] %v4

// kernel: generator_forward.14
$region0: #{generator_forward.14}
  #allocation0 [shape = 'u32[]', space=smem, size = 0x4, offset = 0x4, fixed_abs, tag = 'smem constant byte address 0x4 - core index']
  #allocation1 [shape = 'u32[72,128]{1,0:T(1,128)}', space=vmem, size = 0x9000, scoped, tag = 'internal scratch']
  %s0 = inlined_call_operand.vmem [shape: bf16[8,512], index: 0, kind: input, shape index: {}]
  %s1 = inlined_call_operand.vmem [shape: f32[1,512], index: 1, kind: output, shape index: {0}]
  %s2 = inlined_call_operand.vmem [shape: f32[1,512], index: 2, kind: output, shape index: {1}]
  %3 = xla_tuple %s1, %s2
  %s4 = sld [smem:[#allocation0]]
  $region26: #{generator_forward.14} parent=0
    _
  %s6 = ssub.s32 1, %s4
  %s7 = scalar_select 0, %s6, %s4
  // Predicated region
  $region2: #{generator_forward.14} parent=0 // pred_check
    _
  $region3: #{generator_forward.14} parent=0 // pred_check_branch
    %9 = sbr.rel (0) target = $region5
  $region4: #{generator_forward.14} parent=0 // pred_region
    _
  $region5: #{generator_forward.14} parent=0 // pred_fallthru
    _
  %p10 = scmp.eq.s32.totalorder 0, 0
  // Predicated region
  $region6: #{generator_forward.14} parent=0 // pred_check
    %p11 = pneg %p10
  $region7: #{generator_forward.14} parent=0 // pred_check_branch
    %13 = sbr.rel (%p11) target = $region9
  $region8: #{generator_forward.14} parent=0 // pred_region
    %v14 = vlaneseq
    %vm15 = vcmp.ge.s32.totalorder %v14, 0
    %vm16 = vcmp.lt.s32.totalorder %v14, 512
    %vm17 = vmand %vm15, %vm16
    %18 = vst.msk [vmem:[%s1] sm:$0xf] %vm17, 0.0
    %19 = vst.msk [vmem:[%s2] sm:$0xf] %vm17, 0.0
  $region9: #{generator_forward.14} parent=0 // pred_fallthru
    _
  %v20 = vld [vmem:[%s0] sm:$0xff]
  %v21 = vld [vmem:[%s0 + $0x8] sm:$0xff]
  %v22 = vunpack.c.l.bf16 %v20
  %v23 = vunpack.c.h.bf16 %v20
  %v24 = vunpack.c.l.bf16 %v21
  %v25 = vunpack.c.h.bf16 %v21
  %v26 = vld [vmem:[%s1] sm:$0xf]
  %v27 = vrot.slane %v22, 4
  %v28 = vadd.f32 %v22, %v27
  %v29 = vrot.slane %v28, 2
  %v30 = vadd.f32 %v28, %v29
  %v31 = vrot.slane %v30, 1
  %v32 = vadd.f32 %v30, %v31
  %v33 = vrot.slane %v23, 4
  %v34 = vadd.f32 %v23, %v33
  %v35 = vrot.slane %v34, 2
  %v36 = vadd.f32 %v34, %v35
  %v37 = vrot.slane %v36, 1
  %v38 = vadd.f32 %v36, %v37
  %v39 = vrot.slane %v24, 4
  %v40 = vadd.f32 %v24, %v39
  %v41 = vrot.slane %v40, 2
  %v42 = vadd.f32 %v40, %v41
  %v43 = vrot.slane %v42, 1
  %v44 = vadd.f32 %v42, %v43
  %v45 = vrot.slane %v25, 4
  %v46 = vadd.f32 %v25, %v45
  %v47 = vrot.slane %v46, 2
  %v48 = vadd.f32 %v46, %v47
  %v49 = vrot.slane %v48, 1
  %v50 = vadd.f32 %v48, %v49
  %v55 = vrot.slane %v38, 7
  %v56 = vrot.slane %v44, 6
  %v57 = vrot.slane %v50, 5
  %vm58 = vcmask 1040384
  %v59 = vsel %vm58, %v32, %v55
  %vm60 = vcmask 1042434
  %v61 = vsel %vm60, %v56, %v57
  %vm62 = vcmask 1041408
  %v63 = vsel %vm62, %v59, %v61
  %v65 = vadd.f32 %v26, %v63
  %v66 = vlaneseq
  %vm67 = vcmp.ge.s32.totalorder %v66, 0
  %vm68 = vcmp.lt.s32.totalorder %v66, 512
  %vm69 = vmand %vm67, %vm68
  %70 = vst.msk [vmem:[%s1] sm:$0xf] %vm69, %v65
  %v71 = vld [vmem:[%s2] sm:$0xf]
  %v72 = vmul.f32 %v22, %v22
  %v73 = vmul.f32 %v23, %v23
  %v74 = vmul.f32 %v24, %v24
  %v75 = vmul.f32 %v25, %v25
  %v76 = vrot.slane %v72, 4
  %v77 = vadd.f32 %v72, %v76
  %v78 = vrot.slane %v77, 2
  %v79 = vadd.f32 %v77, %v78
  %v80 = vrot.slane %v79, 1
  %v81 = vadd.f32 %v79, %v80
  %v82 = vrot.slane %v73, 4
  %v83 = vadd.f32 %v73, %v82
  %v84 = vrot.slane %v83, 2
  %v85 = vadd.f32 %v83, %v84
  %v86 = vrot.slane %v85, 1
  %v87 = vadd.f32 %v85, %v86
  %v88 = vrot.slane %v74, 4
  %v89 = vadd.f32 %v74, %v88
  %v90 = vrot.slane %v89, 2
  %v91 = vadd.f32 %v89, %v90
  %v92 = vrot.slane %v91, 1
  %v93 = vadd.f32 %v91, %v92
  %v94 = vrot.slane %v75, 4
  %v95 = vadd.f32 %v75, %v94
  %v96 = vrot.slane %v95, 2
  %v97 = vadd.f32 %v95, %v96
  %v98 = vrot.slane %v97, 1
  %v99 = vadd.f32 %v97, %v98
  %v104 = vrot.slane %v87, 7
  %v105 = vrot.slane %v93, 6
  %v106 = vrot.slane %v99, 5
  %v107 = vsel %vm58, %v81, %v104
  %v108 = vsel %vm60, %v105, %v106
  %v109 = vsel %vm62, %v107, %v108
  %v111 = vadd.f32 %v71, %v109
  %112 = vst.msk [vmem:[%s2] sm:$0xf] %vm69, %v111
  // Predicated region
  $region10: #{generator_forward.14} parent=0 // pred_check
    _
  $region11: #{generator_forward.14} parent=0 // pred_check_branch
    %114 = sbr.rel (0) target = $region13
  $region12: #{generator_forward.14} parent=0 // pred_region
    _
  $region13: #{generator_forward.14} parent=0 // pred_fallthru
    _
  // Predicated region
  $region14: #{generator_forward.14} parent=0 // pred_check
    _
  $region15: #{generator_forward.14} parent=0 // pred_check_branch
    %116 = sbr.rel (0) target = $region17
  $region16: #{generator_forward.14} parent=0 // pred_region
    _
  $region17: #{generator_forward.14} parent=0 // pred_fallthru
    _
  // Predicated region
  $region18: #{generator_forward.14} parent=0 // pred_check
    _
  $region19: #{generator_forward.14} parent=0 // pred_check_branch
    %118 = sbr.rel (0) target = $region21
  $region20: #{generator_forward.14} parent=0 // pred_region
    _
  $region21: #{generator_forward.14} parent=0 // pred_fallthru
    _
  // Predicated region
  $region22: #{generator_forward.14} parent=0 // pred_check
    _
  $region23: #{generator_forward.14} parent=0 // pred_check_branch
    %120 = sbr.rel (0) target = $region25
  $region24: #{generator_forward.14} parent=0 // pred_region
    _
  $region25: #{generator_forward.14} parent=0 // pred_fallthru
    _

// kernel: generator_forward.13
$region0: #{generator_forward.13}
  #allocation0 [shape = 'u32[]', space=smem, size = 0x4, offset = 0x4, fixed_abs, tag = 'smem constant byte address 0x4 - core index']
  #allocation1 [shape = 'u32[72,128]{1,0:T(1,128)}', space=vmem, size = 0x9000, scoped, tag = 'internal scratch']
  %s0 = inlined_call_operand.vmem [shape: bf16[8,32], index: 0, kind: input, shape index: {}]
  %s1 = inlined_call_operand.hbm [shape: bf16[32,2048], index: 1, kind: input, shape index: {}]
  %s2 = inlined_call_operand.vmem [shape: bf16[8,2048], index: 2, kind: output, shape index: {}]
  %s3 = sld [smem:[#allocation0]]
  $region22: #{generator_forward.13} parent=0
    _
  %s5 = ssub.s32 1, %s3
  %s6 = scalar_select 0, %s5, %s3
  $region1: #{generator_forward.13} parent=0
    #allocation2 [shape = 'u8[131072]{0}', space=vmem, size = 0x20000, scoped, tag = 'input window, operand 1, single buffered']
    #allocation3 [shape = 's32[1]{0}', space=sflag, size = 0x4, scoped, tag = 'scoped memory for generator_forward.13']
    %7 = vsyncpa [#allocation3], 0
    // Predicated region
    $region2: #{generator_forward.13} parent=1 // pred_check
      _
    $region3: #{generator_forward.13} parent=1 // pred_check_branch
      %9 = sbr.rel (0) target = $region5
    $region4: #{generator_forward.13} parent=1 // pred_region
      _
    $region5: #{generator_forward.13} parent=1 // pred_fallthru
      _
    // Predicated region
    $region6: #{generator_forward.13} parent=1 // pred_check
      _
    $region7: #{generator_forward.13} parent=1 // pred_check_branch
      %11 = sbr.rel (0) target = $region9
    $region8: #{generator_forward.13} parent=1 // pred_region
      %13 = vsyncadd [#allocation3], 0
      %s14 = sshll.u32 %s1, 4
      %s15 = int_to_ptr.hbm [resolvable:$true] %s14
      %s16 = sshll.u32 [#allocation2], 4
      %s17 = int_to_ptr.vmem [resolvable:$true] %s16
      %22 = dma.hbm_to_vmem [thread:$0]  %s15, 4096, %s17, [#allocation3], 1024, 1024, 64
    $region9: #{generator_forward.13} parent=1 // pred_fallthru
      _
    // Predicated region
    $region10: #{generator_forward.13} parent=1 // pred_check
      _
    $region11: #{generator_forward.13} parent=1 // pred_check_branch
      %24 = sbr.rel (0) target = $region13
    $region12: #{generator_forward.13} parent=1 // pred_region
      %26 = dma.done [#allocation3], 4096
    $region13: #{generator_forward.13} parent=1 // pred_fallthru
      _
    %v28 = vld [vmem:[%s0] sm:$0xf]
    %v29 = vld [vmem:[#allocation2] sm:$0xff]
    %v30 = vld [vmem:[#allocation2 + $0x8] sm:$0xff]
    %v31 = vld [vmem:[#allocation2 + $0x10] sm:$0xff]
    %v32 = vld [vmem:[#allocation2 + $0x18] sm:$0xff]
    %v33 = vld [vmem:[#allocation2 + $0x20] sm:$0xff]
    %v34 = vld [vmem:[#allocation2 + $0x28] sm:$0xff]
    %v35 = vld [vmem:[#allocation2 + $0x30] sm:$0xff]
    %v36 = vld [vmem:[#allocation2 + $0x38] sm:$0xff]
    %v37 = vld [vmem:[#allocation2 + $0x40] sm:$0xff]
    %v38 = vld [vmem:[#allocation2 + $0x48] sm:$0xff]
    %v39 = vld [vmem:[#allocation2 + $0x50] sm:$0xff]
    %v40 = vld [vmem:[#allocation2 + $0x58] sm:$0xff]
    %v41 = vld [vmem:[#allocation2 + $0x60] sm:$0xff]
    %v42 = vld [vmem:[#allocation2 + $0x68] sm:$0xff]
    %v43 = vld [vmem:[#allocation2 + $0x70] sm:$0xff]
    %v44 = vld [vmem:[#allocation2 + $0x78] sm:$0xff]
    %v45 = vld [vmem:[#allocation2 + $0x80] sm:$0xff]
    %v46 = vld [vmem:[#allocation2 + $0x88] sm:$0xff]
    %v47 = vld [vmem:[#allocation2 + $0x90] sm:$0xff]
    %v48 = vld [vmem:[#allocation2 + $0x98] sm:$0xff]
    %v49 = vld [vmem:[#allocation2 + $0xa0] sm:$0xff]
    %v50 = vld [vmem:[#allocation2 + $0xa8] sm:$0xff]
    %v51 = vld [vmem:[#allocation2 + $0xb0] sm:$0xff]
    %v52 = vld [vmem:[#allocation2 + $0xb8] sm:$0xff]
    %v53 = vld [vmem:[#allocation2 + $0xc0] sm:$0xff]
    %v54 = vld [vmem:[#allocation2 + $0xc8] sm:$0xff]
    %v55 = vld [vmem:[#allocation2 + $0xd0] sm:$0xff]
    %v56 = vld [vmem:[#allocation2 + $0xd8] sm:$0xff]
    %v57 = vld [vmem:[#allocation2 + $0xe0] sm:$0xff]
    %v58 = vld [vmem:[#allocation2 + $0xe8] sm:$0xff]
    %v59 = vld [vmem:[#allocation2 + $0xf0] sm:$0xff]
    %v60 = vld [vmem:[#allocation2 + $0xf8] sm:$0xff]
    %v93 = vunpack.c.l.b16 %v29
    %v94 = vunpack.c.h.b16 %v29
    %v95 = vunpack.c.l.b16 %v30
    %v96 = vunpack.c.h.b16 %v30
    %v97 = vunpack.c.l.b16 %v31
    %v98 = vunpack.c.h.b16 %v31
    %v99 = vunpack.c.l.b16 %v32
    %v100 = vunpack.c.h.b16 %v32
    %v101 = vunpack.c.l.b16 %v33
    %v102 = vunpack.c.h.b16 %v33
    %v103 = vunpack.c.l.b16 %v34
    %v104 = vunpack.c.h.b16 %v34
    %v105 = vunpack.c.l.b16 %v35
    %v106 = vunpack.c.h.b16 %v35
    %v107 = vunpack.c.l.b16 %v36
    %v108 = vunpack.c.h.b16 %v36
    %v109 = vunpack.c.l.b16 %v37
    %v110 = vunpack.c.h.b16 %v37
    %v111 = vunpack.c.l.b16 %v38
    %v112 = vunpack.c.h.b16 %v38
    %v113 = vunpack.c.l.b16 %v39
    %v114 = vunpack.c.h.b16 %v39
    %v115 = vunpack.c.l.b16 %v40
    %v116 = vunpack.c.h.b16 %v40
    %v117 = vunpack.c.l.b16 %v41
    %v118 = vunpack.c.h.b16 %v41
    %v119 = vunpack.c.l.b16 %v42
    %v120 = vunpack.c.h.b16 %v42
    %v121 = vunpack.c.l.b16 %v43
    %v122 = vunpack.c.h.b16 %v43
    %v123 = vunpack.c.l.b16 %v44
    %v124 = vunpack.c.h.b16 %v44
    %v125 = vunpack.c.l.b16 %v45
    %v126 = vunpack.c.h.b16 %v45
    %v127 = vunpack.c.l.b16 %v46
    %v128 = vunpack.c.h.b16 %v46
    %v129 = vunpack.c.l.b16 %v47
    %v130 = vunpack.c.h.b16 %v47
    %v131 = vunpack.c.l.b16 %v48
    %v132 = vunpack.c.h.b16 %v48
    %v133 = vunpack.c.l.b16 %v49
    %v134 = vunpack.c.h.b16 %v49
    %v135 = vunpack.c.l.b16 %v50
    %v136 = vunpack.c.h.b16 %v50
    %v137 = vunpack.c.l.b16 %v51
    %v138 = vunpack.c.h.b16 %v51
    %v139 = vunpack.c.l.b16 %v52
    %v140 = vunpack.c.h.b16 %v52
    %v141 = vunpack.c.l.b16 %v53
    %v142 = vunpack.c.h.b16 %v53
    %v143 = vunpack.c.l.b16 %v54
    %v144 = vunpack.c.h.b16 %v54
    %v145 = vunpack.c.l.b16 %v55
    %v146 = vunpack.c.h.b16 %v55
    %v147 = vunpack.c.l.b16 %v56
    %v148 = vunpack.c.h.b16 %v56
    %v149 = vunpack.c.l.b16 %v57
    %v150 = vunpack.c.h.b16 %v57
    %v151 = vunpack.c.l.b16 %v58
    %v152 = vunpack.c.h.b16 %v58
    %v153 = vunpack.c.l.b16 %v59
    %v154 = vunpack.c.h.b16 %v59
    %v155 = vunpack.c.l.b16 %v60
    %v156 = vunpack.c.h.b16 %v60
    %v157 = vpack.c.b16 %v109, %v93
    %v158 = vpack.c.b16 %v110, %v94
    %v159 = vpack.c.b16 %v111, %v95
    %v160 = vpack.c.b16 %v112, %v96
    %v161 = vpack.c.b16 %v113, %v97
    %v162 = vpack.c.b16 %v114, %v98
    %v163 = vpack.c.b16 %v115, %v99
    %v164 = vpack.c.b16 %v116, %v100
    %v165 = vpack.c.b16 %v117, %v101
    %v166 = vpack.c.b16 %v118, %v102
    %v167 = vpack.c.b16 %v119, %v103
    %v168 = vpack.c.b16 %v120, %v104
    %v169 = vpack.c.b16 %v121, %v105
    %v170 = vpack.c.b16 %v122, %v106
    %v171 = vpack.c.b16 %v123, %v107
    %v172 = vpack.c.b16 %v124, %v108
    %v173 = vpack.c.b16 %v141, %v125
    %v174 = vpack.c.b16 %v142, %v126
    %v175 = vpack.c.b16 %v143, %v127
    %v176 = vpack.c.b16 %v144, %v128
    %v177 = vpack.c.b16 %v145, %v129
    %v178 = vpack.c.b16 %v146, %v130
    %v179 = vpack.c.b16 %v147, %v131
    %v180 = vpack.c.b16 %v148, %v132
    %v181 = vpack.c.b16 %v149, %v133
    %v182 = vpack.c.b16 %v150, %v134
    %v183 = vpack.c.b16 %v151, %v135
    %v184 = vpack.c.b16 %v152, %v136
    %v185 = vpack.c.b16 %v153, %v137
    %v186 = vpack.c.b16 %v154, %v138
    %v187 = vpack.c.b16 %v155, %v139
    %v188 = vpack.c.b16 %v156, %v140
    %vm221 = vcmask 261120
    %v223 = vsel %vm221, %v28, 0
    %225 = vmatpush.bf16.msra.mxu0 0
    %226 = vmatpush.bf16.msra.mxu0 0
    %227 = vmatpush.bf16.msra.mxu0 0
    %228 = vmatpush.bf16.msra.mxu0 0
    %229 = vmatpush.bf16.msra.mxu0 0
    %230 = vmatpush.bf16.msra.mxu0 0
    %231 = vmatpush.bf16.msra.mxu0 %v173
    %232 = vmatpush.bf16.msra.mxu0 %v157
    %233 = vmatmul.bf16.gmra.mxu0 %v223
    %v234 = vpop.f32.mrf.mxu0
    %v235 = vadd.f32 0.0, %v234
    %v236 = vpop.f32.mrf.mxu0
    %237 = vdwg.mxu0
    %238 = vmatpush.bf16.msra.mxu0 0
    %239 = vmatpush.bf16.msra.mxu0 0
    %240 = vmatpush.bf16.msra.mxu0 0
    %241 = vmatpush.bf16.msra.mxu0 0
    %242 = vmatpush.bf16.msra.mxu0 0
    %243 = vmatpush.bf16.msra.mxu0 0
    %244 = vmatpush.bf16.msra.mxu0 %v174
    %245 = vmatpush.bf16.msra.mxu0 %v158
    %246 = vmatmul.bf16.gmra.mxu0 %v223
    %v247 = vpop.f32.mrf.mxu0
    %v248 = vadd.f32 0.0, %v247
    %v249 = vpop.f32.mrf.mxu0
    %250 = vdwg.mxu0
    %251 = vmatpush.bf16.msra.mxu0 0
    %252 = vmatpush.bf16.msra.mxu0 0
    %253 = vmatpush.bf16.msra.mxu0 0
    %254 = vmatpush.bf16.msra.mxu0 0
    %255 = vmatpush.bf16.msra.mxu0 0
    %256 = vmatpush.bf16.msra.mxu0 0
    %257 = vmatpush.bf16.msra.mxu0 %v175
    %258 = vmatpush.bf16.msra.mxu0 %v159
    %259 = vmatmul.bf16.gmra.mxu0 %v223
    %v260 = vpop.f32.mrf.mxu0
    %v261 = vadd.f32 0.0, %v260
    %v262 = vpop.f32.mrf.mxu0
    %263 = vdwg.mxu0
    %264 = vmatpush.bf16.msra.mxu0 0
    %265 = vmatpush.bf16.msra.mxu0 0
    %266 = vmatpush.bf16.msra.mxu0 0
    %267 = vmatpush.bf16.msra.mxu0 0
    %268 = vmatpush.bf16.msra.mxu0 0
    %269 = vmatpush.bf16.msra.mxu0 0
    %270 = vmatpush.bf16.msra.mxu0 %v176
    %271 = vmatpush.bf16.msra.mxu0 %v160
    %272 = vmatmul.bf16.gmra.mxu0 %v223
    %v273 = vpop.f32.mrf.mxu0
    %v274 = vadd.f32 0.0, %v273
    %v275 = vpop.f32.mrf.mxu0
    %276 = vdwg.mxu0
    %277 = vmatpush.bf16.msra.mxu0 0
    %278 = vmatpush.bf16.msra.mxu0 0
    %279 = vmatpush.bf16.msra.mxu0 0
    %280 = vmatpush.bf16.msra.mxu0 0
    %281 = vmatpush.bf16.msra.mxu0 0
    %282 = vmatpush.bf16.msra.mxu0 0
    %283 = vmatpush.bf16.msra.mxu0 %v177
    %284 = vmatpush.bf16.msra.mxu0 %v161
    %285 = vmatmul.bf16.gmra.mxu0 %v223
    %v286 = vpop.f32.mrf.mxu0
    %v287 = vadd.f32 0.0, %v286
    %v288 = vpop.f32.mrf.mxu0
    %289 = vdwg.mxu0
    %290 = vmatpush.bf16.msra.mxu0 0
    %291 = vmatpush.bf16.msra.mxu0 0
    %292 = vmatpush.bf16.msra.mxu0 0
    %293 = vmatpush.bf16.msra.mxu0 0
    %294 = vmatpush.bf16.msra.mxu0 0
    %295 = vmatpush.bf16.msra.mxu0 0
    %296 = vmatpush.bf16.msra.mxu0 %v178
    %297 = vmatpush.bf16.msra.mxu0 %v162
    %298 = vmatmul.bf16.gmra.mxu0 %v223
    %v299 = vpop.f32.mrf.mxu0
    %v300 = vadd.f32 0.0, %v299
    %v301 = vpop.f32.mrf.mxu0
    %302 = vdwg.mxu0
    %303 = vmatpush.bf16.msra.mxu0 0
    %304 = vmatpush.bf16.msra.mxu0 0
    %305 = vmatpush.bf16.msra.mxu0 0
    %306 = vmatpush.bf16.msra.mxu0 0
    %307 = vmatpush.bf16.msra.mxu0 0
    %308 = vmatpush.bf16.msra.mxu0 0
    %309 = vmatpush.bf16.msra.mxu0 %v179
    %310 = vmatpush.bf16.msra.mxu0 %v163
    %311 = vmatmul.bf16.gmra.mxu0 %v223
    %v312 = vpop.f32.mrf.mxu0
    %v313 = vadd.f32 0.0, %v312
    %v314 = vpop.f32.mrf.mxu0
    %315 = vdwg.mxu0
    %316 = vmatpush.bf16.msra.mxu0 0
    %317 = vmatpush.bf16.msra.mxu0 0
    %318 = vmatpush.bf16.msra.mxu0 0
    %319 = vmatpush.bf16.msra.mxu0 0
    %320 = vmatpush.bf16.msra.mxu0 0
    %321 = vmatpush.bf16.msra.mxu0 0
    %322 = vmatpush.bf16.msra.mxu0 %v180
    %323 = vmatpush.bf16.msra.mxu0 %v164
    %324 = vmatmul.bf16.gmra.mxu0 %v223
    %v325 = vpop.f32.mrf.mxu0
    %v326 = vadd.f32 0.0, %v325
    %v327 = vpop.f32.mrf.mxu0
    %328 = vdwg.mxu0
    %329 = vmatpush.bf16.msra.mxu0 0
    %330 = vmatpush.bf16.msra.mxu0 0
    %331 = vmatpush.bf16.msra.mxu0 0
    %332 = vmatpush.bf16.msra.mxu0 0
    %333 = vmatpush.bf16.msra.mxu0 0
    %334 = vmatpush.bf16.msra.mxu0 0
    %335 = vmatpush.bf16.msra.mxu0 %v181
    %336 = vmatpush.bf16.msra.mxu0 %v165
    %337 = vmatmul.bf16.gmra.mxu0 %v223
    %v338 = vpop.f32.mrf.mxu0
    %v339 = vadd.f32 0.0, %v338
    %v340 = vpop.f32.mrf.mxu0
    %341 = vdwg.mxu0
    %342 = vmatpush.bf16.msra.mxu0 0
    %343 = vmatpush.bf16.msra.mxu0 0
    %344 = vmatpush.bf16.msra.mxu0 0
    %345 = vmatpush.bf16.msra.mxu0 0
    %346 = vmatpush.bf16.msra.mxu0 0
    %347 = vmatpush.bf16.msra.mxu0 0
    %348 = vmatpush.bf16.msra.mxu0 %v182
    %349 = vmatpush.bf16.msra.mxu0 %v166
    %350 = vmatmul.bf16.gmra.mxu0 %v223
    %v351 = vpop.f32.mrf.mxu0
    %v352 = vadd.f32 0.0, %v351
    %v353 = vpop.f32.mrf.mxu0
    %354 = vdwg.mxu0
    %355 = vmatpush.bf16.msra.mxu0 0
    %356 = vmatpush.bf16.msra.mxu0 0
    %357 = vmatpush.bf16.msra.mxu0 0
    %358 = vmatpush.bf16.msra.mxu0 0
    %359 = vmatpush.bf16.msra.mxu0 0
    %360 = vmatpush.bf16.msra.mxu0 0
    %361 = vmatpush.bf16.msra.mxu0 %v183
    %362 = vmatpush.bf16.msra.mxu0 %v167
    %363 = vmatmul.bf16.gmra.mxu0 %v223
    %v364 = vpop.f32.mrf.mxu0
    %v365 = vadd.f32 0.0, %v364
    %v366 = vpop.f32.mrf.mxu0
    %367 = vdwg.mxu0
    %368 = vmatpush.bf16.msra.mxu0 0
    %369 = vmatpush.bf16.msra.mxu0 0
    %370 = vmatpush.bf16.msra.mxu0 0
    %371 = vmatpush.bf16.msra.mxu0 0
    %372 = vmatpush.bf16.msra.mxu0 0
    %373 = vmatpush.bf16.msra.mxu0 0
    %374 = vmatpush.bf16.msra.mxu0 %v184
    %375 = vmatpush.bf16.msra.mxu0 %v168
    %376 = vmatmul.bf16.gmra.mxu0 %v223
    %v377 = vpop.f32.mrf.mxu0
    %v378 = vadd.f32 0.0, %v377
    %v379 = vpop.f32.mrf.mxu0
    %380 = vdwg.mxu0
    %381 = vmatpush.bf16.msra.mxu0 0
    %382 = vmatpush.bf16.msra.mxu0 0
    %383 = vmatpush.bf16.msra.mxu0 0
    %384 = vmatpush.bf16.msra.mxu0 0
    %385 = vmatpush.bf16.msra.mxu0 0
    %386 = vmatpush.bf16.msra.mxu0 0
    %387 = vmatpush.bf16.msra.mxu0 %v185
    %388 = vmatpush.bf16.msra.mxu0 %v169
    %389 = vmatmul.bf16.gmra.mxu0 %v223
    %v390 = vpop.f32.mrf.mxu0
    %v391 = vadd.f32 0.0, %v390
    %v392 = vpop.f32.mrf.mxu0
    %393 = vdwg.mxu0
    %394 = vmatpush.bf16.msra.mxu0 0
    %395 = vmatpush.bf16.msra.mxu0 0
    %396 = vmatpush.bf16.msra.mxu0 0
    %397 = vmatpush.bf16.msra.mxu0 0
    %398 = vmatpush.bf16.msra.mxu0 0
    %399 = vmatpush.bf16.msra.mxu0 0
    %400 = vmatpush.bf16.msra.mxu0 %v186
    %401 = vmatpush.bf16.msra.mxu0 %v170
    %402 = vmatmul.bf16.gmra.mxu0 %v223
    %v403 = vpop.f32.mrf.mxu0
    %v404 = vadd.f32 0.0, %v403
    %v405 = vpop.f32.mrf.mxu0
    %406 = vdwg.mxu0
    %407 = vmatpush.bf16.msra.mxu0 0
    %408 = vmatpush.bf16.msra.mxu0 0
    %409 = vmatpush.bf16.msra.mxu0 0
    %410 = vmatpush.bf16.msra.mxu0 0
    %411 = vmatpush.bf16.msra.mxu0 0
    %412 = vmatpush.bf16.msra.mxu0 0
    %413 = vmatpush.bf16.msra.mxu0 %v187
    %414 = vmatpush.bf16.msra.mxu0 %v171
    %415 = vmatmul.bf16.gmra.mxu0 %v223
    %v416 = vpop.f32.mrf.mxu0
    %v417 = vadd.f32 0.0, %v416
    %v418 = vpop.f32.mrf.mxu0
    %419 = vdwg.mxu0
    %420 = vmatpush.bf16.msra.mxu0 0
    %421 = vmatpush.bf16.msra.mxu0 0
    %422 = vmatpush.bf16.msra.mxu0 0
    %423 = vmatpush.bf16.msra.mxu0 0
    %424 = vmatpush.bf16.msra.mxu0 0
    %425 = vmatpush.bf16.msra.mxu0 0
    %426 = vmatpush.bf16.msra.mxu0 %v188
    %427 = vmatpush.bf16.msra.mxu0 %v172
    %428 = vmatmul.bf16.gmra.mxu0 %v223
    %v429 = vpop.f32.mrf.mxu0
    %v430 = vadd.f32 0.0, %v429
    %v431 = vpop.f32.mrf.mxu0
    %432 = vdwg.mxu0
    %v433 = vpack.c.bf16 %v248, %v235
    %v434 = vpack.c.bf16 %v274, %v261
    %v435 = vpack.c.bf16 %v300, %v287
    %v436 = vpack.c.bf16 %v326, %v313
    %v437 = vpack.c.bf16 %v352, %v339
    %v438 = vpack.c.bf16 %v378, %v365
    %v439 = vpack.c.bf16 %v404, %v391
    %v440 = vpack.c.bf16 %v430, %v417
    %441 = vst [vmem:[%s2] sm:$0xff] %v433
    %442 = vst [vmem:[%s2 + $0x8] sm:$0xff] %v434
    %443 = vst [vmem:[%s2 + $0x10] sm:$0xff] %v435
    %444 = vst [vmem:[%s2 + $0x18] sm:$0xff] %v436
    %445 = vst [vmem:[%s2 + $0x20] sm:$0xff] %v437
    %446 = vst [vmem:[%s2 + $0x28] sm:$0xff] %v438
    %447 = vst [vmem:[%s2 + $0x30] sm:$0xff] %v439
    %448 = vst [vmem:[%s2 + $0x38] sm:$0xff] %v440
    // Predicated region
    $region14: #{generator_forward.13} parent=1 // pred_check
      _
    $region15: #{generator_forward.13} parent=1 // pred_check_branch
      %450 = sbr.rel (0) target = $region17
    $region16: #{generator_forward.13} parent=1 // pred_region
      _
    $region17: #{generator_forward.13} parent=1 // pred_fallthru
      _
    // Predicated region
    $region18: #{generator_forward.13} parent=1 // pred_check
      _
    $region19: #{generator_forward.13} parent=1 // pred_check_branch
      %452 = sbr.rel (0) target = $region21
    $region20: #{generator_forward.13} parent=1 // pred_region
      _
    $region21: #{generator_forward.13} parent=1 // pred_fallthru
      _
    %453 = vsyncpa [#allocation3], 1

// kernel: generator_forward.15
$region0: #{generator_forward.15}
  #allocation0 [shape = 'u32[]', space=smem, size = 0x4, offset = 0x4, fixed_abs, tag = 'smem constant byte address 0x4 - core index']
  #allocation1 [shape = 'u32[72,128]{1,0:T(1,128)}', space=vmem, size = 0x9000, scoped, tag = 'internal scratch']
  %s0 = inlined_call_operand.vmem [shape: bf16[8,512], index: 0, kind: input, shape index: {}]
  %s1 = inlined_call_operand.vmem [shape: f32[1,512], index: 1, kind: input, shape index: {}]
  %s2 = inlined_call_operand.vmem [shape: f32[1,512], index: 2, kind: input, shape index: {}]
  %s3 = inlined_call_operand.vmem [shape: bf16[8,512], index: 3, kind: output, shape index: {}]
  %s4 = sld [smem:[#allocation0]]
  $region22: #{generator_forward.15} parent=0
    _
  %s6 = ssub.s32 1, %s4
  %s7 = scalar_select 0, %s6, %s4
  // Predicated region
  $region2: #{generator_forward.15} parent=0 // pred_check
    _
  $region3: #{generator_forward.15} parent=0 // pred_check_branch
    %9 = sbr.rel (0) target = $region5
  $region4: #{generator_forward.15} parent=0 // pred_region
    _
  $region5: #{generator_forward.15} parent=0 // pred_fallthru
    _
  // Predicated region
  $region6: #{generator_forward.15} parent=0 // pred_check
    _
  $region7: #{generator_forward.15} parent=0 // pred_check_branch
    %11 = sbr.rel (0) target = $region9
  $region8: #{generator_forward.15} parent=0 // pred_region
    _
  $region9: #{generator_forward.15} parent=0 // pred_fallthru
    _
  // Predicated region
  $region10: #{generator_forward.15} parent=0 // pred_check
    _
  $region11: #{generator_forward.15} parent=0 // pred_check_branch
    %13 = sbr.rel (0) target = $region13
  $region12: #{generator_forward.15} parent=0 // pred_region
    _
  $region13: #{generator_forward.15} parent=0 // pred_fallthru
    _
  %v14 = vld [vmem:[%s0] sm:$0xff]
  %v15 = vld [vmem:[%s0 + $0x8] sm:$0xff]
  %v16 = vunpack.c.l.bf16 %v14
  %v17 = vunpack.c.h.bf16 %v14
  %v18 = vunpack.c.l.bf16 %v15
  %v19 = vunpack.c.h.bf16 %v15
  %v20 = vld [vmem:[%s1] sm:$0xf]
  %v22 = vperm.slane %v20, 0
  %v23 = vperm.slane %v20, 1
  %v24 = vperm.slane %v20, 2
  %v25 = vperm.slane %v20, 3
  %v30 = vmul.f32 %v16, %v22
  %v31 = vmul.f32 %v17, %v23
  %v32 = vmul.f32 %v18, %v24
  %v33 = vmul.f32 %v19, %v25
  %v34 = vld [vmem:[%s2] sm:$0xf]
  %v36 = vperm.slane %v34, 0
  %v37 = vperm.slane %v34, 1
  %v38 = vperm.slane %v34, 2
  %v39 = vperm.slane %v34, 3
  %v44 = vadd.f32 %v30, %v36
  %v45 = vadd.f32 %v31, %v37
  %v46 = vadd.f32 %v32, %v38
  %v47 = vadd.f32 %v33, %v39
  %v48 = vmax.f32 %v44, 0.0
  %v49 = vmax.f32 %v45, 0.0
  %v50 = vmax.f32 %v46, 0.0
  %v51 = vmax.f32 %v47, 0.0
  %v52 = vpack.c.bf16 %v49, %v48
  %v53 = vpack.c.bf16 %v51, %v50
  %54 = vst [vmem:[%s3] sm:$0xff] %v52
  %55 = vst [vmem:[%s3 + $0x8] sm:$0xff] %v53
  // Predicated region
  $region14: #{generator_forward.15} parent=0 // pred_check
    _
  $region15: #{generator_forward.15} parent=0 // pred_check_branch
    %57 = sbr.rel (0) target = $region17
  $region16: #{generator_forward.15} parent=0 // pred_region
    _
  $region17: #{generator_forward.15} parent=0 // pred_fallthru
    _
  // Predicated region
  $region18: #{generator_forward.15} parent=0 // pred_check
    _
  $region19: #{generator_forward.15} parent=0 // pred_check_branch
    %59 = sbr.rel (0) target = $region21
  $region20: #{generator_forward.15} parent=0 // pred_region
    _
  $region21: #{generator_forward.15} parent=0 // pred_fallthru
    _

// kernel: tile.58
$region0: #{tile.58}
  #allocation0 [shape = 's32[1]{0}', space=sflag, size = 0x4, scoped, tag = 'scoped memory for tile.58']
  %s0 = inlined_call_operand.vmem [shape: f32[64], index: 0, kind: input, shape index: {}]
  %s1 = inlined_call_operand.vmem [shape: f32[8,64], index: 1, kind: output, shape index: {}]
  // Predicated region
  $region2: #{tile.58} parent=0 // pred_check
    _
  $region3: #{tile.58} parent=0 // pred_check_branch
    %3 = sbr.rel (0) target = $region5
  $region4: #{tile.58} parent=0 // pred_region
    _
  $region5: #{tile.58} parent=0 // pred_fallthru
    _
  %v4 = vld [vmem:[%s0] ss:$0 sm:$0xff]
  %5 = vst [vmem:[%s1] sm:$0xff] %v4

// kernel: tile.59
$region0: #{tile.59}
  %s0 = inlined_call_operand.vmem [shape: f32[8,64], index: 0, kind: input, shape index: {}]
  %s1 = inlined_call_operand.vmem [shape: f32[1,512], index: 1, kind: output, shape index: {}]
  $region1: #{tile.59} parent=0
    #allocation0 [shape = 'u8[16384]{0}', space=vmem, size = 0x4000, scoped, tag = 'scoped mem for output reshape']
    %v2 = vld [vmem:[%s0] ss:$2 sm:$0xf]
    %vm3 = vcmask 523264
    %4 = vst.msk [vmem:[#allocation0] ss:$8 sm:$0xf] %vm3, %v2
    %s5 = scalar_lea.vmem %s0, 1
    %v6 = vld [vmem:[%s5] ss:$2 sm:$0xf]
    %7 = vrot.lane.b32.xlu0 %v6, 64
    %v8 = vpop.permute.xlu0 %7
    %vm9 = vcmask 1048064
    %10 = vst.msk [vmem:[#allocation0] ss:$8 sm:$0xf] %vm9, %v8
    %s12 = ssub.s32 2, 1
    %v13 = vld [vmem:[#allocation0] sm:%s12]
    %s15 = ssub.s32 2, 1
    %16 = vst [vmem:[%s1] sm:%s15] %v13
    %s17 = scalar_lea.vmem [#allocation0], 8
    %v18 = vld [vmem:[%s17] sm:%s12]
    %s20 = ssub.s32 2, 1
    %s21 = scalar_lea.vmem %s1, 1
    %22 = vst [vmem:[%s21] sm:%s20] %v18
    %s23 = scalar_lea.vmem [#allocation0], 16
    %v24 = vld [vmem:[%s23] sm:%s12]
    %s26 = ssub.s32 2, 1
    %s27 = scalar_lea.vmem %s1, 2
    %28 = vst [vmem:[%s27] sm:%s26] %v24
    %s29 = scalar_lea.vmem [#allocation0], 24
    %v30 = vld [vmem:[%s29] sm:%s12]
    %s32 = ssub.s32 2, 1
    %s33 = scalar_lea.vmem %s1, 3
    %34 = vst [vmem:[%s33] sm:%s32] %v30

// kernel: generator_forward.16
$region0: #{generator_forward.16}
  #allocation0 [shape = 'u32[]', space=smem, size = 0x4, offset = 0x4, fixed_abs, tag = 'smem constant byte address 0x4 - core index']
  #allocation1 [shape = 'u32[72,128]{1,0:T(1,128)}', space=vmem, size = 0x9000, scoped, tag = 'internal scratch']
  %s0 = inlined_call_operand.vmem [shape: bf16[64,512], index: 0, kind: input, shape index: {}]
  %s1 = inlined_call_operand.hbm [shape: bf16[512,256], index: 1, kind: input, shape index: {}]
  %s2 = inlined_call_operand.vmem [shape: bf16[64,256], index: 2, kind: output, shape index: {}]
  %s3 = sld [smem:[#allocation0]]
  $region45: #{generator_forward.16} parent=0
    _
  %s5 = ssub.s32 1, %s3
  %s6 = scalar_select 0, %s5, %s3
  $region1: #{generator_forward.16} parent=0
    #allocation2 [shape = 'u8[262144]{0}', space=vmem, size = 0x40000, scoped, tag = 'input window, operand 1, single buffered']
    #allocation3 [shape = 's32[2]{0}', space=sflag, size = 0x8, scoped, tag = 'scoped memory for generator_forward.16']
    %7 = vsyncpa [#allocation3], 0
    loop: start=0, step=1, limit=4
    $region2: #{generator_forward.16} parent=1 // loop_pre_header
      _
    $region3: #{generator_forward.16} parent=1 // loop_header
      %s9 = sphi 0, %s13
      %p10 = scmp.ge.s32.totalorder %s9, 4
      %s19 = sphi 0, %s21
      %s22 = sphi 0, %s19
      %s23 = sphi 0, %s22
      %s39 = sphi 0, %s23
      %s43 = sphi 0, %s43
      %s45 = sphi 0, %s43
      %s46 = sphi 0, %s45
      %s60 = sphi 0, %s46
      %s66 = sphi 0, %s68
      %s69 = sphi 0, %s66
      %s70 = sphi 0, %s69
      %s86 = sphi 0, %s70
    $region4: #{generator_forward.16} parent=1 // loop_header_branch
      %12 = sbr.rel (%p10) target = $region8
    $region5: #{generator_forward.16} parent=1 // loop_body
      %s14 = ssub.s32 %s9, 1
      %s15 = ssub.s32 %s9, 2
      %s16 = sadd.s32 %s9, 1
      %s17 = ssub.s32 %s9, %s16
      %p18 = scmp.eq.s32.totalorder %s17, 0
      %s20 = sadd.s32 %s19, 1
      %s21 = scalar_select %p18, %s19, %s20
      %p24 = pneg %p18
      %p25 = scmp.eq.s32.totalorder %s9, 1
      %p26 = por %p24, %p25
      %p27 = scmp.ne.s32.totalorder %s19, %s22
      %p28 = scmp.eq.s32.totalorder %s9, 0
      %p29 = por %p27, %p28
      %p30 = scmp.ne.s32.totalorder %s19, %s22
      %p31 = scmp.eq.s32.totalorder %s14, 1
      %p32 = por %p30, %p31
      %p33 = scmp.ne.s32.totalorder %s22, %s23
      %p34 = scmp.eq.s32.totalorder %s14, 0
      %p35 = por %p33, %p34
      %p36 = scmp.ne.s32.totalorder %s22, %s23
      %p37 = scmp.eq.s32.totalorder %s15, 1
      %p38 = por %p36, %p37
      %p40 = scmp.ne.s32.totalorder %s23, %s39
      %p41 = scmp.eq.s32.totalorder %s15, 0
      %p42 = por %p40, %p41
      %s44 = sadd.s32 %s43, 1
      %p47 = scmp.eq.s32.totalorder %s9, 1
      %p48 = scmp.ne.s32.totalorder %s43, %s45
      %p49 = scmp.eq.s32.totalorder %s9, 0
      %p50 = por %p48, %p49
      %p51 = scmp.ne.s32.totalorder %s43, %s45
      %p52 = scmp.eq.s32.totalorder %s14, 1
      %p53 = por %p51, %p52
      %p54 = scmp.ne.s32.totalorder %s45, %s46
      %p55 = scmp.eq.s32.totalorder %s14, 0
      %p56 = por %p54, %p55
      %p57 = scmp.ne.s32.totalorder %s45, %s46
      %p58 = scmp.eq.s32.totalorder %s15, 1
      %p59 = por %p57, %p58
      %p61 = scmp.ne.s32.totalorder %s46, %s60
      %p62 = scmp.eq.s32.totalorder %s15, 0
      %p63 = por %p61, %p62
      %s64 = ssub.s32 %s9, %s16
      %p65 = scmp.eq.s32.totalorder %s64, 0
      %s67 = sadd.s32 %s66, 1
      %s68 = scalar_select %p65, %s66, %s67
      %p71 = pneg %p65
      %p72 = scmp.eq.s32.totalorder %s9, 1
      %p73 = por %p71, %p72
      %p74 = scmp.ne.s32.totalorder %s66, %s69
      %p75 = scmp.eq.s32.totalorder %s9, 0
      %p76 = por %p74, %p75
      %p77 = scmp.ne.s32.totalorder %s66, %s69
      %p78 = scmp.eq.s32.totalorder %s14, 1
      %p79 = por %p77, %p78
      %p80 = scmp.ne.s32.totalorder %s69, %s70
      %p81 = scmp.eq.s32.totalorder %s14, 0
      %p82 = por %p80, %p81
      %p83 = scmp.ne.s32.totalorder %s69, %s70
      %p84 = scmp.eq.s32.totalorder %s15, 1
      %p85 = por %p83, %p84
      %p87 = scmp.ne.s32.totalorder %s70, %s86
      %p88 = scmp.eq.s32.totalorder %s15, 0
      %p89 = por %p87, %p88
      %p90 = scmp.le.s32.totalorder 1, %s9
      %p91 = scmp.lt.s32.totalorder %s9, 3
      %p92 = pnand %p90, %p91
      %p93 = pneg %p92
      // Predicated region
      $region9: #{generator_forward.16} parent=5 // pred_check
        _
      $region10: #{generator_forward.16} parent=5 // pred_check_branch
        %95 = sbr.rel (%p92) target = $region12
      $region11: #{generator_forward.16} parent=5 // pred_region
        %s96 = ssub.s32 %s9, 1
        // Predicated region
        $region13: #{generator_forward.16} parent=11 // pred_check
          %p97 = pneg %p56
        $region14: #{generator_forward.16} parent=11 // pred_check_branch
          %99 = sbr.rel (%p97) target = $region16
        $region15: #{generator_forward.16} parent=11 // pred_region
          %101 = vsyncadd [#allocation3], 0
          %s102 = sshll.u32 %s1, 4
          %s103 = int_to_ptr.hbm [resolvable:$true] %s102
          %s104 = sshll.u32 [#allocation2], 4
          %s105 = int_to_ptr.vmem [resolvable:$true] %s104
          %110 = dma.hbm_to_vmem [thread:$0]  %s103, 8192, %s105, [#allocation3], 128, 128, 8
        $region16: #{generator_forward.16} parent=11 // pred_fallthru
          _
      $region12: #{generator_forward.16} parent=5 // pred_fallthru
        _
      %p111 = scmp.lt.s32.totalorder %s9, 2
      // Predicated region
      $region17: #{generator_forward.16} parent=5 // pred_check
        %p112 = pneg %p111
      $region18: #{generator_forward.16} parent=5 // pred_check_branch
        %114 = sbr.rel (%p112) target = $region20
      $region19: #{generator_forward.16} parent=5 // pred_region
        // Predicated region
        $region21: #{generator_forward.16} parent=19 // pred_check
          %p115 = pneg %p29
        $region22: #{generator_forward.16} parent=19 // pred_check_branch
          %117 = sbr.rel (%p115) target = $region24
        $region23: #{generator_forward.16} parent=19 // pred_region
          %s118 = smul.u32 4, %s9
          %p119 = scmp.lt.s32.totalorder %s118, 7
          %s120 = scalar_select %p119, %s118, 7
          %s121 = smul.addr %s120, 4
          %s122 = smul.addr %s121, 4
          %s123 = scalar_lea.vmem %s0, %s122
          %s124 = smul.u32 4, %s9
        $region24: #{generator_forward.16} parent=19 // pred_fallthru
          _
      $region20: #{generator_forward.16} parent=5 // pred_fallthru
        _
      %p125 = scmp.le.s32.totalorder 1, %s9
      %p126 = scmp.lt.s32.totalorder %s9, 3
      %p127 = pnand %p125, %p126
      %p128 = pneg %p127
      // Predicated region
      $region25: #{generator_forward.16} parent=5 // pred_check
        _
      $region26: #{generator_forward.16} parent=5 // pred_check_branch
        %130 = sbr.rel (%p127) target = $region28
      $region27: #{generator_forward.16} parent=5 // pred_region
        %s131 = ssub.s32 %s9, 1
        // Predicated region
        $region29: #{generator_forward.16} parent=27 // pred_check
          %p132 = pneg %p56
        $region30: #{generator_forward.16} parent=27 // pred_check_branch
          %134 = sbr.rel (%p132) target = $region32
        $region31: #{generator_forward.16} parent=27 // pred_region
          %136 = dma.done [#allocation3], 8192
        $region32: #{generator_forward.16} parent=27 // pred_fallthru
          _
        %s137 = smul.u32 4, %s14
        %p138 = scmp.lt.s32.totalorder %s137, 7
        %s139 = scalar_select %p138, %s137, 7
        %s140 = smul.addr %s139, 4
        %s141 = smul.addr %s140, 4
        %s142 = scalar_lea.vmem %s0, %s141
        %p143 = pneg %p35
        %p144 = pneg %p32
        %p145 = pneg %p56
        %p146 = pneg %p53
        %p147 = pneg %p82
        %p148 = pneg %p79
        %s149 = smul.u32 4, %s14
        %p150 = scmp.lt.s32.totalorder %s149, 7
        %s151 = scalar_select %p150, %s149, 7
        %s152 = smul.addr %s151, 2
        %s153 = smul.addr %s152, 4
        %s154 = scalar_lea.vmem %s2, %s153
        %s155 = smul.u32 4, %s14
        %p156 = scmp.lt.s32.totalorder %s155, 7
        %s157 = scalar_select %p156, %s155, 7
        %s158 = smul.addr %s157, 4
        %s159 = smul.addr %s158, 4
        %s160 = scalar_lea.vmem %s0, %s159
        %s161 = smul.u32 4, %s14
        %s162 = smul.u32 4, %s14
        %p163 = scmp.lt.s32.totalorder %s162, 7
        %s164 = scalar_select %p163, %s162, 7
        %s165 = smul.addr %s164, 2
        %s166 = smul.addr %s165, 4
        %s167 = scalar_lea.vmem %s2, %s166
        %s168 = smul.u32 4, %s14
        %v169 = vld [vmem:[%s160] sm:$0xff]
        %v170 = vld [vmem:[%s160 + $0x8] sm:$0xff]
        %v171 = vld [vmem:[%s160 + $0x10] sm:$0xff]
        %v172 = vld [vmem:[%s160 + $0x18] sm:$0xff]
        %v173 = vld [vmem:[%s160 + $0x20] sm:$0xff]
        %v174 = vld [vmem:[%s160 + $0x28] sm:$0xff]
        %v175 = vld [vmem:[%s160 + $0x30] sm:$0xff]
        %v176 = vld [vmem:[%s160 + $0x38] sm:$0xff]
        %v177 = vld [vmem:[#allocation2] sm:$0xff]
        %v178 = vld [vmem:[#allocation2 + $0x8] sm:$0xff]
        %v179 = vld [vmem:[#allocation2 + $0x10] sm:$0xff]
        %v180 = vld [vmem:[#allocation2 + $0x18] sm:$0xff]
        %v181 = vld [vmem:[#allocation2 + $0x20] sm:$0xff]
        %v182 = vld [vmem:[#allocation2 + $0x28] sm:$0xff]
        %v183 = vld [vmem:[#allocation2 + $0x30] sm:$0xff]
        %v184 = vld [vmem:[#allocation2 + $0x38] sm:$0xff]
        %v185 = vld [vmem:[#allocation2 + $0x40] sm:$0xff]
        %v186 = vld [vmem:[#allocation2 + $0x48] sm:$0xff]
        %v187 = vld [vmem:[#allocation2 + $0x50] sm:$0xff]
        %v188 = vld [vmem:[#allocation2 + $0x58] sm:$0xff]
        %v189 = vld [vmem:[#allocation2 + $0x60] sm:$0xff]
        %v190 = vld [vmem:[#allocation2 + $0x68] sm:$0xff]
        %v191 = vld [vmem:[#allocation2 + $0x70] sm:$0xff]
        %v192 = vld [vmem:[#allocation2 + $0x78] sm:$0xff]
        %v193 = vld [vmem:[#allocation2 + $0x80] sm:$0xff]
        %v194 = vld [vmem:[#allocation2 + $0x88] sm:$0xff]
        %v195 = vld [vmem:[#allocation2 + $0x90] sm:$0xff]
        %v196 = vld [vmem:[#allocation2 + $0x98] sm:$0xff]
        %v197 = vld [vmem:[#allocation2 + $0xa0] sm:$0xff]
        %v198 = vld [vmem:[#allocation2 + $0xa8] sm:$0xff]
        %v199 = vld [vmem:[#allocation2 + $0xb0] sm:$0xff]
        %v200 = vld [vmem:[#allocation2 + $0xb8] sm:$0xff]
        %v201 = vld [vmem:[#allocation2 + $0xc0] sm:$0xff]
        %v202 = vld [vmem:[#allocation2 + $0xc8] sm:$0xff]
        %v203 = vld [vmem:[#allocation2 + $0xd0] sm:$0xff]
        %v204 = vld [vmem:[#allocation2 + $0xd8] sm:$0xff]
        %v205 = vld [vmem:[#allocation2 + $0xe0] sm:$0xff]
        %v206 = vld [vmem:[#allocation2 + $0xe8] sm:$0xff]
        %v207 = vld [vmem:[#allocation2 + $0xf0] sm:$0xff]
        %v208 = vld [vmem:[#allocation2 + $0xf8] sm:$0xff]
        %v209 = vld [vmem:[#allocation2 + $0x100] sm:$0xff]
        %v210 = vld [vmem:[#allocation2 + $0x108] sm:$0xff]
        %v211 = vld [vmem:[#allocation2 + $0x110] sm:$0xff]
        %v212 = vld [vmem:[#allocation2 + $0x118] sm:$0xff]
        %v213 = vld [vmem:[#allocation2 + $0x120] sm:$0xff]
        %v214 = vld [vmem:[#allocation2 + $0x128] sm:$0xff]
        %v215 = vld [vmem:[#allocation2 + $0x130] sm:$0xff]
        %v216 = vld [vmem:[#allocation2 + $0x138] sm:$0xff]
        %v217 = vld [vmem:[#allocation2 + $0x140] sm:$0xff]
        %v218 = vld [vmem:[#allocation2 + $0x148] sm:$0xff]
        %v219 = vld [vmem:[#allocation2 + $0x150] sm:$0xff]
        %v220 = vld [vmem:[#allocation2 + $0x158] sm:$0xff]
        %v221 = vld [vmem:[#allocation2 + $0x160] sm:$0xff]
        %v222 = vld [vmem:[#allocation2 + $0x168] sm:$0xff]
        %v223 = vld [vmem:[#allocation2 + $0x170] sm:$0xff]
        %v224 = vld [vmem:[#allocation2 + $0x178] sm:$0xff]
        %v225 = vld [vmem:[#allocation2 + $0x180] sm:$0xff]
        %v226 = vld [vmem:[#allocation2 + $0x188] sm:$0xff]
        %v227 = vld [vmem:[#allocation2 + $0x190] sm:$0xff]
        %v228 = vld [vmem:[#allocation2 + $0x198] sm:$0xff]
        %v229 = vld [vmem:[#allocation2 + $0x1a0] sm:$0xff]
        %v230 = vld [vmem:[#allocation2 + $0x1a8] sm:$0xff]
        %v231 = vld [vmem:[#allocation2 + $0x1b0] sm:$0xff]
        %v232 = vld [vmem:[#allocation2 + $0x1b8] sm:$0xff]
        %v233 = vld [vmem:[#allocation2 + $0x1c0] sm:$0xff]
        %v234 = vld [vmem:[#allocation2 + $0x1c8] sm:$0xff]
        %v235 = vld [vmem:[#allocation2 + $0x1d0] sm:$0xff]
        %v236 = vld [vmem:[#allocation2 + $0x1d8] sm:$0xff]
        %v237 = vld [vmem:[#allocation2 + $0x1e0] sm:$0xff]
        %v238 = vld [vmem:[#allocation2 + $0x1e8] sm:$0xff]
        %v239 = vld [vmem:[#allocation2 + $0x1f0] sm:$0xff]
        %v240 = vld [vmem:[#allocation2 + $0x1f8] sm:$0xff]
        %v249 = vunpack.c.l.b16 %v169
        %v250 = vunpack.c.h.b16 %v169
        %v251 = vunpack.c.l.b16 %v170
        %v252 = vunpack.c.h.b16 %v170
        %v253 = vunpack.c.l.b16 %v171
        %v254 = vunpack.c.h.b16 %v171
        %v255 = vunpack.c.l.b16 %v172
        %v256 = vunpack.c.h.b16 %v172
        %v257 = vunpack.c.l.b16 %v173
        %v258 = vunpack.c.h.b16 %v173
        %v259 = vunpack.c.l.b16 %v174
        %v260 = vunpack.c.h.b16 %v174
        %v261 = vunpack.c.l.b16 %v175
        %v262 = vunpack.c.h.b16 %v175
        %v263 = vunpack.c.l.b16 %v176
        %v264 = vunpack.c.h.b16 %v176
        %v265 = vpack.c.b16 %v253, %v249
        %v266 = vpack.c.b16 %v254, %v250
        %v267 = vpack.c.b16 %v255, %v251
        %v268 = vpack.c.b16 %v256, %v252
        %v269 = vpack.c.b16 %v261, %v257
        %v270 = vpack.c.b16 %v262, %v258
        %v271 = vpack.c.b16 %v263, %v259
        %v272 = vpack.c.b16 %v264, %v260
        %v345 = vunpack.c.l.b16 %v177
        %v346 = vunpack.c.h.b16 %v177
        %v347 = vunpack.c.l.b16 %v178
        %v348 = vunpack.c.h.b16 %v178
        %v349 = vunpack.c.l.b16 %v179
        %v350 = vunpack.c.h.b16 %v179
        %v351 = vunpack.c.l.b16 %v180
        %v352 = vunpack.c.h.b16 %v180
        %v353 = vunpack.c.l.b16 %v181
        %v354 = vunpack.c.h.b16 %v181
        %v355 = vunpack.c.l.b16 %v182
        %v356 = vunpack.c.h.b16 %v182
        %v357 = vunpack.c.l.b16 %v183
        %v358 = vunpack.c.h.b16 %v183
        %v359 = vunpack.c.l.b16 %v184
        %v360 = vunpack.c.h.b16 %v184
        %v361 = vunpack.c.l.b16 %v185
        %v362 = vunpack.c.h.b16 %v185
        %v363 = vunpack.c.l.b16 %v186
        %v364 = vunpack.c.h.b16 %v186
        %v365 = vunpack.c.l.b16 %v187
        %v366 = vunpack.c.h.b16 %v187
        %v367 = vunpack.c.l.b16 %v188
        %v368 = vunpack.c.h.b16 %v188
        %v369 = vunpack.c.l.b16 %v189
        %v370 = vunpack.c.h.b16 %v189
        %v371 = vunpack.c.l.b16 %v190
        %v372 = vunpack.c.h.b16 %v190
        %v373 = vunpack.c.l.b16 %v191
        %v374 = vunpack.c.h.b16 %v191
        %v375 = vunpack.c.l.b16 %v192
        %v376 = vunpack.c.h.b16 %v192
        %v377 = vunpack.c.l.b16 %v193
        %v378 = vunpack.c.h.b16 %v193
        %v379 = vunpack.c.l.b16 %v194
        %v380 = vunpack.c.h.b16 %v194
        %v381 = vunpack.c.l.b16 %v195
        %v382 = vunpack.c.h.b16 %v195
        %v383 = vunpack.c.l.b16 %v196
        %v384 = vunpack.c.h.b16 %v196
        %v385 = vunpack.c.l.b16 %v197
        %v386 = vunpack.c.h.b16 %v197
        %v387 = vunpack.c.l.b16 %v198
        %v388 = vunpack.c.h.b16 %v198
        %v389 = vunpack.c.l.b16 %v199
        %v390 = vunpack.c.h.b16 %v199
        %v391 = vunpack.c.l.b16 %v200
        %v392 = vunpack.c.h.b16 %v200
        %v393 = vunpack.c.l.b16 %v201
        %v394 = vunpack.c.h.b16 %v201
        %v395 = vunpack.c.l.b16 %v202
        %v396 = vunpack.c.h.b16 %v202
        %v397 = vunpack.c.l.b16 %v203
        %v398 = vunpack.c.h.b16 %v203
        %v399 = vunpack.c.l.b16 %v204
        %v400 = vunpack.c.h.b16 %v204
        %v401 = vunpack.c.l.b16 %v205
        %v402 = vunpack.c.h.b16 %v205
        %v403 = vunpack.c.l.b16 %v206
        %v404 = vunpack.c.h.b16 %v206
        %v405 = vunpack.c.l.b16 %v207
        %v406 = vunpack.c.h.b16 %v207
        %v407 = vunpack.c.l.b16 %v208
        %v408 = vunpack.c.h.b16 %v208
        %v409 = vunpack.c.l.b16 %v209
        %v410 = vunpack.c.h.b16 %v209
        %v411 = vunpack.c.l.b16 %v210
        %v412 = vunpack.c.h.b16 %v210
        %v413 = vunpack.c.l.b16 %v211
        %v414 = vunpack.c.h.b16 %v211
        %v415 = vunpack.c.l.b16 %v212
        %v416 = vunpack.c.h.b16 %v212
        %v417 = vunpack.c.l.b16 %v213
        %v418 = vunpack.c.h.b16 %v213
        %v419 = vunpack.c.l.b16 %v214
        %v420 = vunpack.c.h.b16 %v214
        %v421 = vunpack.c.l.b16 %v215
        %v422 = vunpack.c.h.b16 %v215
        %v423 = vunpack.c.l.b16 %v216
        %v424 = vunpack.c.h.b16 %v216
        %v425 = vunpack.c.l.b16 %v217
        %v426 = vunpack.c.h.b16 %v217
        %v427 = vunpack.c.l.b16 %v218
        %v428 = vunpack.c.h.b16 %v218
        %v429 = vunpack.c.l.b16 %v219
        %v430 = vunpack.c.h.b16 %v219
        %v431 = vunpack.c.l.b16 %v220
        %v432 = vunpack.c.h.b16 %v220
        %v433 = vunpack.c.l.b16 %v221
        %v434 = vunpack.c.h.b16 %v221
        %v435 = vunpack.c.l.b16 %v222
        %v436 = vunpack.c.h.b16 %v222
        %v437 = vunpack.c.l.b16 %v223
        %v438 = vunpack.c.h.b16 %v223
        %v439 = vunpack.c.l.b16 %v224
        %v440 = vunpack.c.h.b16 %v224
        %v441 = vunpack.c.l.b16 %v225
        %v442 = vunpack.c.h.b16 %v225
        %v443 = vunpack.c.l.b16 %v226
        %v444 = vunpack.c.h.b16 %v226
        %v445 = vunpack.c.l.b16 %v227
        %v446 = vunpack.c.h.b16 %v227
        %v447 = vunpack.c.l.b16 %v228
        %v448 = vunpack.c.h.b16 %v228
        %v449 = vunpack.c.l.b16 %v229
        %v450 = vunpack.c.h.b16 %v229
        %v451 = vunpack.c.l.b16 %v230
        %v452 = vunpack.c.h.b16 %v230
        %v453 = vunpack.c.l.b16 %v231
        %v454 = vunpack.c.h.b16 %v231
        %v455 = vunpack.c.l.b16 %v232
        %v456 = vunpack.c.h.b16 %v232
        %v457 = vunpack.c.l.b16 %v233
        %v458 = vunpack.c.h.b16 %v233
        %v459 = vunpack.c.l.b16 %v234
        %v460 = vunpack.c.h.b16 %v234
        %v461 = vunpack.c.l.b16 %v235
        %v462 = vunpack.c.h.b16 %v235
        %v463 = vunpack.c.l.b16 %v236
        %v464 = vunpack.c.h.b16 %v236
        %v465 = vunpack.c.l.b16 %v237
        %v466 = vunpack.c.h.b16 %v237
        %v467 = vunpack.c.l.b16 %v238
        %v468 = vunpack.c.h.b16 %v238
        %v469 = vunpack.c.l.b16 %v239
        %v470 = vunpack.c.h.b16 %v239
        %v471 = vunpack.c.l.b16 %v240
        %v472 = vunpack.c.h.b16 %v240
        %v473 = vpack.c.b16 %v347, %v345
        %v474 = vpack.c.b16 %v348, %v346
        %v475 = vpack.c.b16 %v351, %v349
        %v476 = vpack.c.b16 %v352, %v350
        %v477 = vpack.c.b16 %v355, %v353
        %v478 = vpack.c.b16 %v356, %v354
        %v479 = vpack.c.b16 %v359, %v357
        %v480 = vpack.c.b16 %v360, %v358
        %v481 = vpack.c.b16 %v363, %v361
        %v482 = vpack.c.b16 %v364, %v362
        %v483 = vpack.c.b16 %v367, %v365
        %v484 = vpack.c.b16 %v368, %v366
        %v485 = vpack.c.b16 %v371, %v369
        %v486 = vpack.c.b16 %v372, %v370
        %v487 = vpack.c.b16 %v375, %v373
        %v488 = vpack.c.b16 %v376, %v374
        %v489 = vpack.c.b16 %v379, %v377
        %v490 = vpack.c.b16 %v380, %v378
        %v491 = vpack.c.b16 %v383, %v381
        %v492 = vpack.c.b16 %v384, %v382
        %v493 = vpack.c.b16 %v387, %v385
        %v494 = vpack.c.b16 %v388, %v386
        %v495 = vpack.c.b16 %v391, %v389
        %v496 = vpack.c.b16 %v392, %v390
        %v497 = vpack.c.b16 %v395, %v393
        %v498 = vpack.c.b16 %v396, %v394
        %v499 = vpack.c.b16 %v399, %v397
        %v500 = vpack.c.b16 %v400, %v398
        %v501 = vpack.c.b16 %v403, %v401
        %v502 = vpack.c.b16 %v404, %v402
        %v503 = vpack.c.b16 %v407, %v405
        %v504 = vpack.c.b16 %v408, %v406
        %v505 = vpack.c.b16 %v411, %v409
        %v506 = vpack.c.b16 %v412, %v410
        %v507 = vpack.c.b16 %v415, %v413
        %v508 = vpack.c.b16 %v416, %v414
        %v509 = vpack.c.b16 %v419, %v417
        %v510 = vpack.c.b16 %v420, %v418
        %v511 = vpack.c.b16 %v423, %v421
        %v512 = vpack.c.b16 %v424, %v422
        %v513 = vpack.c.b16 %v427, %v425
        %v514 = vpack.c.b16 %v428, %v426
        %v515 = vpack.c.b16 %v431, %v429
        %v516 = vpack.c.b16 %v432, %v430
        %v517 = vpack.c.b16 %v435, %v433
        %v518 = vpack.c.b16 %v436, %v434
        %v519 = vpack.c.b16 %v439, %v437
        %v520 = vpack.c.b16 %v440, %v438
        %v521 = vpack.c.b16 %v443, %v441
        %v522 = vpack.c.b16 %v444, %v442
        %v523 = vpack.c.b16 %v447, %v445
        %v524 = vpack.c.b16 %v448, %v446
        %v525 = vpack.c.b16 %v451, %v449
        %v526 = vpack.c.b16 %v452, %v450
        %v527 = vpack.c.b16 %v455, %v453
        %v528 = vpack.c.b16 %v456, %v454
        %v529 = vpack.c.b16 %v459, %v457
        %v530 = vpack.c.b16 %v460, %v458
        %v531 = vpack.c.b16 %v463, %v461
        %v532 = vpack.c.b16 %v464, %v462
        %v533 = vpack.c.b16 %v467, %v465
        %v534 = vpack.c.b16 %v468, %v466
        %v535 = vpack.c.b16 %v471, %v469
        %v536 = vpack.c.b16 %v472, %v470
        %601 = vmatpush.bf16.msra.mxu0 %v487
        %602 = vmatpush.bf16.msra.mxu0 %v485
        %603 = vmatpush.bf16.msra.mxu0 %v483
        %604 = vmatpush.bf16.msra.mxu0 %v481
        %605 = vmatpush.bf16.msra.mxu0 %v479
        %606 = vmatpush.bf16.msra.mxu0 %v477
        %607 = vmatpush.bf16.msra.mxu0 %v475
        %608 = vmatpush.bf16.msra.mxu0 %v473
        %609 = vmatmul.bf16.gmra.mxu0 %v265
        %v610 = vpop.f32.mrf.mxu0
        %v611 = vadd.f32 0.0, %v610
        %v612 = vpop.f32.mrf.mxu0
        %v613 = vadd.f32 0.0, %v612
        %614 = vmatmul.bf16.gmra.mxu0 %v269
        %v615 = vpop.f32.mrf.mxu0
        %v616 = vadd.f32 0.0, %v615
        %v617 = vpop.f32.mrf.mxu0
        %v618 = vadd.f32 0.0, %v617
        %619 = vdwg.mxu0
        %620 = vmatpush.bf16.msra.mxu0 %v503
        %621 = vmatpush.bf16.msra.mxu0 %v501
        %622 = vmatpush.bf16.msra.mxu0 %v499
        %623 = vmatpush.bf16.msra.mxu0 %v497
        %624 = vmatpush.bf16.msra.mxu0 %v495
        %625 = vmatpush.bf16.msra.mxu0 %v493
        %626 = vmatpush.bf16.msra.mxu0 %v491
        %627 = vmatpush.bf16.msra.mxu0 %v489
        %628 = vmatmul.bf16.gmra.mxu0 %v266
        %v629 = vpop.f32.mrf.mxu0
        %v630 = vadd.f32 %v611, %v629
        %v631 = vpop.f32.mrf.mxu0
        %v632 = vadd.f32 %v613, %v631
        %633 = vmatmul.bf16.gmra.mxu0 %v270
        %v634 = vpop.f32.mrf.mxu0
        %v635 = vadd.f32 %v616, %v634
        %v636 = vpop.f32.mrf.mxu0
        %v637 = vadd.f32 %v618, %v636
        %638 = vdwg.mxu0
        %639 = vmatpush.bf16.msra.mxu0 %v519
        %640 = vmatpush.bf16.msra.mxu0 %v517
        %641 = vmatpush.bf16.msra.mxu0 %v515
        %642 = vmatpush.bf16.msra.mxu0 %v513
        %643 = vmatpush.bf16.msra.mxu0 %v511
        %644 = vmatpush.bf16.msra.mxu0 %v509
        %645 = vmatpush.bf16.msra.mxu0 %v507
        %646 = vmatpush.bf16.msra.mxu0 %v505
        %647 = vmatmul.bf16.gmra.mxu0 %v267
        %v648 = vpop.f32.mrf.mxu0
        %v649 = vadd.f32 %v630, %v648
        %v650 = vpop.f32.mrf.mxu0
        %v651 = vadd.f32 %v632, %v650
        %652 = vmatmul.bf16.gmra.mxu0 %v271
        %v653 = vpop.f32.mrf.mxu0
        %v654 = vadd.f32 %v635, %v653
        %v655 = vpop.f32.mrf.mxu0
        %v656 = vadd.f32 %v637, %v655
        %657 = vdwg.mxu0
        %658 = vmatpush.bf16.msra.mxu0 %v535
        %659 = vmatpush.bf16.msra.mxu0 %v533
        %660 = vmatpush.bf16.msra.mxu0 %v531
        %661 = vmatpush.bf16.msra.mxu0 %v529
        %662 = vmatpush.bf16.msra.mxu0 %v527
        %663 = vmatpush.bf16.msra.mxu0 %v525
        %664 = vmatpush.bf16.msra.mxu0 %v523
        %665 = vmatpush.bf16.msra.mxu0 %v521
        %666 = vmatmul.bf16.gmra.mxu0 %v268
        %v667 = vpop.f32.mrf.mxu0
        %v668 = vadd.f32 %v649, %v667
        %v669 = vpop.f32.mrf.mxu0
        %v670 = vadd.f32 %v651, %v669
        %671 = vmatmul.bf16.gmra.mxu0 %v272
        %v672 = vpop.f32.mrf.mxu0
        %v673 = vadd.f32 %v654, %v672
        %v674 = vpop.f32.mrf.mxu0
        %v675 = vadd.f32 %v656, %v674
        %676 = vdwg.mxu0
        %677 = vmatpush.bf16.msra.mxu0 %v488
        %678 = vmatpush.bf16.msra.mxu0 %v486
        %679 = vmatpush.bf16.msra.mxu0 %v484
        %680 = vmatpush.bf16.msra.mxu0 %v482
        %681 = vmatpush.bf16.msra.mxu0 %v480
        %682 = vmatpush.bf16.msra.mxu0 %v478
        %683 = vmatpush.bf16.msra.mxu0 %v476
        %684 = vmatpush.bf16.msra.mxu0 %v474
        %685 = vmatmul.bf16.gmra.mxu0 %v265
        %v686 = vpop.f32.mrf.mxu0
        %v687 = vadd.f32 0.0, %v686
        %v688 = vpop.f32.mrf.mxu0
        %v689 = vadd.f32 0.0, %v688
        %690 = vmatmul.bf16.gmra.mxu0 %v269
        %v691 = vpop.f32.mrf.mxu0
        %v692 = vadd.f32 0.0, %v691
        %v693 = vpop.f32.mrf.mxu0
        %v694 = vadd.f32 0.0, %v693
        %695 = vdwg.mxu0
        %696 = vmatpush.bf16.msra.mxu0 %v504
        %697 = vmatpush.bf16.msra.mxu0 %v502
        %698 = vmatpush.bf16.msra.mxu0 %v500
        %699 = vmatpush.bf16.msra.mxu0 %v498
        %700 = vmatpush.bf16.msra.mxu0 %v496
        %701 = vmatpush.bf16.msra.mxu0 %v494
        %702 = vmatpush.bf16.msra.mxu0 %v492
        %703 = vmatpush.bf16.msra.mxu0 %v490
        %704 = vmatmul.bf16.gmra.mxu0 %v266
        %v705 = vpop.f32.mrf.mxu0
        %v706 = vadd.f32 %v687, %v705
        %v707 = vpop.f32.mrf.mxu0
        %v708 = vadd.f32 %v689, %v707
        %709 = vmatmul.bf16.gmra.mxu0 %v270
        %v710 = vpop.f32.mrf.mxu0
        %v711 = vadd.f32 %v692, %v710
        %v712 = vpop.f32.mrf.mxu0
        %v713 = vadd.f32 %v694, %v712
        %714 = vdwg.mxu0
        %715 = vmatpush.bf16.msra.mxu0 %v520
        %716 = vmatpush.bf16.msra.mxu0 %v518
        %717 = vmatpush.bf16.msra.mxu0 %v516
        %718 = vmatpush.bf16.msra.mxu0 %v514
        %719 = vmatpush.bf16.msra.mxu0 %v512
        %720 = vmatpush.bf16.msra.mxu0 %v510
        %721 = vmatpush.bf16.msra.mxu0 %v508
        %722 = vmatpush.bf16.msra.mxu0 %v506
        %723 = vmatmul.bf16.gmra.mxu0 %v267
        %v724 = vpop.f32.mrf.mxu0
        %v725 = vadd.f32 %v706, %v724
        %v726 = vpop.f32.mrf.mxu0
        %v727 = vadd.f32 %v708, %v726
        %728 = vmatmul.bf16.gmra.mxu0 %v271
        %v729 = vpop.f32.mrf.mxu0
        %v730 = vadd.f32 %v711, %v729
        %v731 = vpop.f32.mrf.mxu0
        %v732 = vadd.f32 %v713, %v731
        %733 = vdwg.mxu0
        %734 = vmatpush.bf16.msra.mxu0 %v536
        %735 = vmatpush.bf16.msra.mxu0 %v534
        %736 = vmatpush.bf16.msra.mxu0 %v532
        %737 = vmatpush.bf16.msra.mxu0 %v530
        %738 = vmatpush.bf16.msra.mxu0 %v528
        %739 = vmatpush.bf16.msra.mxu0 %v526
        %740 = vmatpush.bf16.msra.mxu0 %v524
        %741 = vmatpush.bf16.msra.mxu0 %v522
        %742 = vmatmul.bf16.gmra.mxu0 %v268
        %v743 = vpop.f32.mrf.mxu0
        %v744 = vadd.f32 %v725, %v743
        %v745 = vpop.f32.mrf.mxu0
        %v746 = vadd.f32 %v727, %v745
        %747 = vmatmul.bf16.gmra.mxu0 %v272
        %v748 = vpop.f32.mrf.mxu0
        %v749 = vadd.f32 %v730, %v748
        %v750 = vpop.f32.mrf.mxu0
        %v751 = vadd.f32 %v732, %v750
        %752 = vdwg.mxu0
        %v753 = vpack.c.bf16 %v744, %v668
        %v754 = vpack.c.bf16 %v746, %v670
        %v755 = vpack.c.bf16 %v749, %v673
        %v756 = vpack.c.bf16 %v751, %v675
        %757 = vst [vmem:[%s167] sm:$0xff] %v753
        %758 = vst [vmem:[%s167 + $0x8] sm:$0xff] %v754
        %759 = vst [vmem:[%s167 + $0x10] sm:$0xff] %v755
        %760 = vst [vmem:[%s167 + $0x18] sm:$0xff] %v756
        %s761 = smul.u32 4, %s14
        %p762 = scmp.lt.s32.totalorder %s761, 7
        %s763 = scalar_select %p762, %s761, 7
        %s764 = smul.addr %s763, 2
        %s765 = smul.addr %s764, 4
        %s766 = scalar_lea.vmem %s2, %s765
        // Predicated region
        $region33: #{generator_forward.16} parent=27 // pred_check
          %p767 = pneg %p79
        $region34: #{generator_forward.16} parent=27 // pred_check_branch
          %769 = sbr.rel (%p767) target = $region36
        $region35: #{generator_forward.16} parent=27 // pred_region
          %s770 = smul.u32 4, %s14
        $region36: #{generator_forward.16} parent=27 // pred_fallthru
          _
      $region28: #{generator_forward.16} parent=5 // pred_fallthru
        _
      %p771 = scmp.le.s32.totalorder 2, %s9
      // Predicated region
      $region37: #{generator_forward.16} parent=5 // pred_check
        %p772 = pneg %p771
      $region38: #{generator_forward.16} parent=5 // pred_check_branch
        %774 = sbr.rel (%p772) target = $region40
      $region39: #{generator_forward.16} parent=5 // pred_region
        %s775 = ssub.s32 %s9, 2
        // Predicated region
        $region41: #{generator_forward.16} parent=39 // pred_check
          %p776 = pneg %p85
        $region42: #{generator_forward.16} parent=39 // pred_check_branch
          %778 = sbr.rel (%p776) target = $region44
        $region43: #{generator_forward.16} parent=39 // pred_region
          %s779 = smul.u32 4, %s15
          %p780 = scmp.lt.s32.totalorder %s779, 7
          %s781 = scalar_select %p780, %s779, 7
          %s782 = smul.addr %s781, 2
          %s783 = smul.addr %s782, 4
          %s784 = scalar_lea.vmem %s2, %s783
        $region44: #{generator_forward.16} parent=39 // pred_fallthru
          _
      $region40: #{generator_forward.16} parent=5 // pred_fallthru
        _
    $region6: #{generator_forward.16} parent=1 // loop_footer
      %s13 = sadd.s32 1, %s9
    $region7: #{generator_forward.16} parent=1 // loop_footer_branch
      %8 = sbr.rel target = $region3
    $region8: #{generator_forward.16} parent=1 // loop_exit
      _
    %785 = vsyncpa [#allocation3], 1
    %s786 = scalar_lea.sflag [#allocation3], 1
    %787 = vsyncpa %s786, 1

// kernel: generator_forward.17
$region0: #{generator_forward.17}
  #allocation0 [shape = 'u32[]', space=smem, size = 0x4, offset = 0x4, fixed_abs, tag = 'smem constant byte address 0x4 - core index']
  #allocation1 [shape = 'u32[72,128]{1,0:T(1,128)}', space=vmem, size = 0x9000, scoped, tag = 'internal scratch']
  %s0 = inlined_call_operand.vmem [shape: bf16[16,512], index: 0, kind: input, shape index: {}]
  %s1 = inlined_call_operand.vmem [shape: f32[1,512], index: 1, kind: output, shape index: {0}]
  %s2 = inlined_call_operand.vmem [shape: f32[1,512], index: 2, kind: output, shape index: {1}]
  %3 = xla_tuple %s1, %s2
  %s4 = sld [smem:[#allocation0]]
  $region26: #{generator_forward.17} parent=0
    _
  %s6 = ssub.s32 1, %s4
  %s7 = scalar_select 0, %s6, %s4
  // Predicated region
  $region2: #{generator_forward.17} parent=0 // pred_check
    _
  $region3: #{generator_forward.17} parent=0 // pred_check_branch
    %9 = sbr.rel (0) target = $region5
  $region4: #{generator_forward.17} parent=0 // pred_region
    _
  $region5: #{generator_forward.17} parent=0 // pred_fallthru
    _
  %p10 = scmp.eq.s32.totalorder 0, 0
  // Predicated region
  $region6: #{generator_forward.17} parent=0 // pred_check
    %p11 = pneg %p10
  $region7: #{generator_forward.17} parent=0 // pred_check_branch
    %13 = sbr.rel (%p11) target = $region9
  $region8: #{generator_forward.17} parent=0 // pred_region
    %v14 = vlaneseq
    %vm15 = vcmp.ge.s32.totalorder %v14, 0
    %vm16 = vcmp.lt.s32.totalorder %v14, 512
    %vm17 = vmand %vm15, %vm16
    %18 = vst.msk [vmem:[%s1] sm:$0xf] %vm17, 0.0
    %19 = vst.msk [vmem:[%s2] sm:$0xf] %vm17, 0.0
  $region9: #{generator_forward.17} parent=0 // pred_fallthru
    _
  %v20 = vld [vmem:[%s0] sm:$0xff]
  %v21 = vld [vmem:[%s0 + $0x8] sm:$0xff]
  %v22 = vld [vmem:[%s0 + $0x10] sm:$0xff]
  %v23 = vld [vmem:[%s0 + $0x18] sm:$0xff]
  %v24 = vunpack.c.l.bf16 %v20
  %v25 = vunpack.c.h.bf16 %v20
  %v26 = vunpack.c.l.bf16 %v21
  %v27 = vunpack.c.h.bf16 %v21
  %v28 = vunpack.c.l.bf16 %v22
  %v29 = vunpack.c.h.bf16 %v22
  %v30 = vunpack.c.l.bf16 %v23
  %v31 = vunpack.c.h.bf16 %v23
  %v32 = vld [vmem:[%s1] sm:$0xf]
  %v33 = vadd.f32 %v24, %v28
  %v34 = vrot.slane %v33, 4
  %v35 = vadd.f32 %v33, %v34
  %v36 = vrot.slane %v35, 2
  %v37 = vadd.f32 %v35, %v36
  %v38 = vrot.slane %v37, 1
  %v39 = vadd.f32 %v37, %v38
  %v40 = vadd.f32 %v25, %v29
  %v41 = vrot.slane %v40, 4
  %v42 = vadd.f32 %v40, %v41
  %v43 = vrot.slane %v42, 2
  %v44 = vadd.f32 %v42, %v43
  %v45 = vrot.slane %v44, 1
  %v46 = vadd.f32 %v44, %v45
  %v47 = vadd.f32 %v26, %v30
  %v48 = vrot.slane %v47, 4
  %v49 = vadd.f32 %v47, %v48
  %v50 = vrot.slane %v49, 2
  %v51 = vadd.f32 %v49, %v50
  %v52 = vrot.slane %v51, 1
  %v53 = vadd.f32 %v51, %v52
  %v54 = vadd.f32 %v27, %v31
  %v55 = vrot.slane %v54, 4
  %v56 = vadd.f32 %v54, %v55
  %v57 = vrot.slane %v56, 2
  %v58 = vadd.f32 %v56, %v57
  %v59 = vrot.slane %v58, 1
  %v60 = vadd.f32 %v58, %v59
  %v65 = vrot.slane %v46, 7
  %v66 = vrot.slane %v53, 6
  %v67 = vrot.slane %v60, 5
  %vm68 = vcmask 1040384
  %v69 = vsel %vm68, %v39, %v65
  %vm70 = vcmask 1042434
  %v71 = vsel %vm70, %v66, %v67
  %vm72 = vcmask 1041408
  %v73 = vsel %vm72, %v69, %v71
  %v75 = vadd.f32 %v32, %v73
  %v76 = vlaneseq
  %vm77 = vcmp.ge.s32.totalorder %v76, 0
  %vm78 = vcmp.lt.s32.totalorder %v76, 512
  %vm79 = vmand %vm77, %vm78
  %80 = vst.msk [vmem:[%s1] sm:$0xf] %vm79, %v75
  %v81 = vld [vmem:[%s2] sm:$0xf]
  %v82 = vmul.f32 %v24, %v24
  %v83 = vmul.f32 %v25, %v25
  %v84 = vmul.f32 %v26, %v26
  %v85 = vmul.f32 %v27, %v27
  %v86 = vmul.f32 %v28, %v28
  %v87 = vmul.f32 %v29, %v29
  %v88 = vmul.f32 %v30, %v30
  %v89 = vmul.f32 %v31, %v31
  %v90 = vadd.f32 %v82, %v86
  %v91 = vrot.slane %v90, 4
  %v92 = vadd.f32 %v90, %v91
  %v93 = vrot.slane %v92, 2
  %v94 = vadd.f32 %v92, %v93
  %v95 = vrot.slane %v94, 1
  %v96 = vadd.f32 %v94, %v95
  %v97 = vadd.f32 %v83, %v87
  %v98 = vrot.slane %v97, 4
  %v99 = vadd.f32 %v97, %v98
  %v100 = vrot.slane %v99, 2
  %v101 = vadd.f32 %v99, %v100
  %v102 = vrot.slane %v101, 1
  %v103 = vadd.f32 %v101, %v102
  %v104 = vadd.f32 %v84, %v88
  %v105 = vrot.slane %v104, 4
  %v106 = vadd.f32 %v104, %v105
  %v107 = vrot.slane %v106, 2
  %v108 = vadd.f32 %v106, %v107
  %v109 = vrot.slane %v108, 1
  %v110 = vadd.f32 %v108, %v109
  %v111 = vadd.f32 %v85, %v89
  %v112 = vrot.slane %v111, 4
  %v113 = vadd.f32 %v111, %v112
  %v114 = vrot.slane %v113, 2
  %v115 = vadd.f32 %v113, %v114
  %v116 = vrot.slane %v115, 1
  %v117 = vadd.f32 %v115, %v116
  %v122 = vrot.slane %v103, 7
  %v123 = vrot.slane %v110, 6
  %v124 = vrot.slane %v117, 5
  %v125 = vsel %vm68, %v96, %v122
  %v126 = vsel %vm70, %v123, %v124
  %v127 = vsel %vm72, %v125, %v126
  %v129 = vadd.f32 %v81, %v127
  %130 = vst.msk [vmem:[%s2] sm:$0xf] %vm79, %v129
  // Predicated region
  $region10: #{generator_forward.17} parent=0 // pred_check
    _
  $region11: #{generator_forward.17} parent=0 // pred_check_branch
    %132 = sbr.rel (0) target = $region13
  $region12: #{generator_forward.17} parent=0 // pred_region
    _
  $region13: #{generator_forward.17} parent=0 // pred_fallthru
    _
  // Predicated region
  $region14: #{generator_forward.17} parent=0 // pred_check
    _
  $region15: #{generator_forward.17} parent=0 // pred_check_branch
    %134 = sbr.rel (0) target = $region17
  $region16: #{generator_forward.17} parent=0 // pred_region
    _
  $region17: #{generator_forward.17} parent=0 // pred_fallthru
    _
  // Predicated region
  $region18: #{generator_forward.17} parent=0 // pred_check
    _
  $region19: #{generator_forward.17} parent=0 // pred_check_branch
    %136 = sbr.rel (0) target = $region21
  $region20: #{generator_forward.17} parent=0 // pred_region
    _
  $region21: #{generator_forward.17} parent=0 // pred_fallthru
    _
  // Predicated region
  $region22: #{generator_forward.17} parent=0 // pred_check
    _
  $region23: #{generator_forward.17} parent=0 // pred_check_branch
    %138 = sbr.rel (0) target = $region25
  $region24: #{generator_forward.17} parent=0 // pred_region
    _
  $region25: #{generator_forward.17} parent=0 // pred_fallthru
    _

// kernel: generator_forward.18
$region0: #{generator_forward.18}
  #allocation0 [shape = 'u32[]', space=smem, size = 0x4, offset = 0x4, fixed_abs, tag = 'smem constant byte address 0x4 - core index']
  #allocation1 [shape = 'u32[72,128]{1,0:T(1,128)}', space=vmem, size = 0x9000, scoped, tag = 'internal scratch']
  %s0 = inlined_call_operand.vmem [shape: bf16[16,512], index: 0, kind: input, shape index: {}]
  %s1 = inlined_call_operand.vmem [shape: f32[1,512], index: 1, kind: input, shape index: {}]
  %s2 = inlined_call_operand.vmem [shape: f32[1,512], index: 2, kind: input, shape index: {}]
  %s3 = inlined_call_operand.vmem [shape: bf16[16,512], index: 3, kind: output, shape index: {}]
  %s4 = sld [smem:[#allocation0]]
  $region22: #{generator_forward.18} parent=0
    _
  %s6 = ssub.s32 1, %s4
  %s7 = scalar_select 0, %s6, %s4
  // Predicated region
  $region2: #{generator_forward.18} parent=0 // pred_check
    _
  $region3: #{generator_forward.18} parent=0 // pred_check_branch
    %9 = sbr.rel (0) target = $region5
  $region4: #{generator_forward.18} parent=0 // pred_region
    _
  $region5: #{generator_forward.18} parent=0 // pred_fallthru
    _
  // Predicated region
  $region6: #{generator_forward.18} parent=0 // pred_check
    _
  $region7: #{generator_forward.18} parent=0 // pred_check_branch
    %11 = sbr.rel (0) target = $region9
  $region8: #{generator_forward.18} parent=0 // pred_region
    _
  $region9: #{generator_forward.18} parent=0 // pred_fallthru
    _
  // Predicated region
  $region10: #{generator_forward.18} parent=0 // pred_check
    _
  $region11: #{generator_forward.18} parent=0 // pred_check_branch
    %13 = sbr.rel (0) target = $region13
  $region12: #{generator_forward.18} parent=0 // pred_region
    _
  $region13: #{generator_forward.18} parent=0 // pred_fallthru
    _
  %v14 = vld [vmem:[%s0] sm:$0xff]
  %v15 = vld [vmem:[%s0 + $0x8] sm:$0xff]
  %v16 = vld [vmem:[%s0 + $0x10] sm:$0xff]
  %v17 = vld [vmem:[%s0 + $0x18] sm:$0xff]
  %v18 = vunpack.c.l.bf16 %v14
  %v19 = vunpack.c.h.bf16 %v14
  %v20 = vunpack.c.l.bf16 %v15
  %v21 = vunpack.c.h.bf16 %v15
  %v22 = vunpack.c.l.bf16 %v16
  %v23 = vunpack.c.h.bf16 %v16
  %v24 = vunpack.c.l.bf16 %v17
  %v25 = vunpack.c.h.bf16 %v17
  %v26 = vld [vmem:[%s1] sm:$0xf]
  %v28 = vperm.slane %v26, 0
  %v29 = vperm.slane %v26, 1
  %v30 = vperm.slane %v26, 2
  %v31 = vperm.slane %v26, 3
  %v36 = vmul.f32 %v18, %v28
  %v37 = vmul.f32 %v19, %v29
  %v38 = vmul.f32 %v20, %v30
  %v39 = vmul.f32 %v21, %v31
  %v40 = vmul.f32 %v22, %v28
  %v41 = vmul.f32 %v23, %v29
  %v42 = vmul.f32 %v24, %v30
  %v43 = vmul.f32 %v25, %v31
  %v44 = vld [vmem:[%s2] sm:$0xf]
  %v46 = vperm.slane %v44, 0
  %v47 = vperm.slane %v44, 1
  %v48 = vperm.slane %v44, 2
  %v49 = vperm.slane %v44, 3
  %v54 = vadd.f32 %v36, %v46
  %v55 = vadd.f32 %v37, %v47
  %v56 = vadd.f32 %v38, %v48
  %v57 = vadd.f32 %v39, %v49
  %v58 = vadd.f32 %v40, %v46
  %v59 = vadd.f32 %v41, %v47
  %v60 = vadd.f32 %v42, %v48
  %v61 = vadd.f32 %v43, %v49
  %v62 = vmax.f32 %v54, 0.0
  %v63 = vmax.f32 %v55, 0.0
  %v64 = vmax.f32 %v56, 0.0
  %v65 = vmax.f32 %v57, 0.0
  %v66 = vmax.f32 %v58, 0.0
  %v67 = vmax.f32 %v59, 0.0
  %v68 = vmax.f32 %v60, 0.0
  %v69 = vmax.f32 %v61, 0.0
  %v70 = vpack.c.bf16 %v63, %v62
  %v71 = vpack.c.bf16 %v65, %v64
  %v72 = vpack.c.bf16 %v67, %v66
  %v73 = vpack.c.bf16 %v69, %v68
  %74 = vst [vmem:[%s3] sm:$0xff] %v70
  %75 = vst [vmem:[%s3 + $0x8] sm:$0xff] %v71
  %76 = vst [vmem:[%s3 + $0x10] sm:$0xff] %v72
  %77 = vst [vmem:[%s3 + $0x18] sm:$0xff] %v73
  // Predicated region
  $region14: #{generator_forward.18} parent=0 // pred_check
    _
  $region15: #{generator_forward.18} parent=0 // pred_check_branch
    %79 = sbr.rel (0) target = $region17
  $region16: #{generator_forward.18} parent=0 // pred_region
    _
  $region17: #{generator_forward.18} parent=0 // pred_fallthru
    _
  // Predicated region
  $region18: #{generator_forward.18} parent=0 // pred_check
    _
  $region19: #{generator_forward.18} parent=0 // pred_check_branch
    %81 = sbr.rel (0) target = $region21
  $region20: #{generator_forward.18} parent=0 // pred_region
    _
  $region21: #{generator_forward.18} parent=0 // pred_fallthru
    _

// kernel: generator_forward.19
$region0: #{generator_forward.19}
  #allocation0 [shape = 'u32[]', space=smem, size = 0x4, offset = 0x4, fixed_abs, tag = 'smem constant byte address 0x4 - core index']
  #allocation1 [shape = 'u32[72,128]{1,0:T(1,128)}', space=vmem, size = 0x9000, scoped, tag = 'internal scratch']
  %s0 = inlined_call_operand.vmem [shape: bf16[176,256], index: 0, kind: input, shape index: {}]
  %s1 = inlined_call_operand.vmem [shape: bf16[256,128], index: 1, kind: input, shape index: {}]
  %s2 = inlined_call_operand.vmem [shape: bf16[176,128], index: 2, kind: output, shape index: {}]
  %s3 = sld [smem:[#allocation0]]
  $region41: #{generator_forward.19} parent=0
    _
  %s5 = ssub.s32 1, %s3
  %s6 = scalar_select 0, %s5, %s3
  loop: start=0, step=1, limit=4
  $region2: #{generator_forward.19} parent=0 // loop_pre_header
    _
  $region3: #{generator_forward.19} parent=0 // loop_header
    %s8 = sphi 0, %s12
    %p9 = scmp.ge.s32.totalorder %s8, 4
    %s18 = sphi 0, %s20
    %s21 = sphi 0, %s18
    %s22 = sphi 0, %s21
    %s38 = sphi 0, %s22
    %s42 = sphi 0, %s42
    %s44 = sphi 0, %s42
    %s45 = sphi 0, %s44
    %s59 = sphi 0, %s45
    %s65 = sphi 0, %s67
    %s68 = sphi 0, %s65
    %s69 = sphi 0, %s68
    %s85 = sphi 0, %s69
  $region4: #{generator_forward.19} parent=0 // loop_header_branch
    %11 = sbr.rel (%p9) target = $region8
  $region5: #{generator_forward.19} parent=0 // loop_body
    %s13 = ssub.s32 %s8, 1
    %s14 = ssub.s32 %s8, 2
    %s15 = sadd.s32 %s8, 1
    %s16 = ssub.s32 %s8, %s15
    %p17 = scmp.eq.s32.totalorder %s16, 0
    %s19 = sadd.s32 %s18, 1
    %s20 = scalar_select %p17, %s18, %s19
    %p23 = pneg %p17
    %p24 = scmp.eq.s32.totalorder %s8, 1
    %p25 = por %p23, %p24
    %p26 = scmp.ne.s32.totalorder %s18, %s21
    %p27 = scmp.eq.s32.totalorder %s8, 0
    %p28 = por %p26, %p27
    %p29 = scmp.ne.s32.totalorder %s18, %s21
    %p30 = scmp.eq.s32.totalorder %s13, 1
    %p31 = por %p29, %p30
    %p32 = scmp.ne.s32.totalorder %s21, %s22
    %p33 = scmp.eq.s32.totalorder %s13, 0
    %p34 = por %p32, %p33
    %p35 = scmp.ne.s32.totalorder %s21, %s22
    %p36 = scmp.eq.s32.totalorder %s14, 1
    %p37 = por %p35, %p36
    %p39 = scmp.ne.s32.totalorder %s22, %s38
    %p40 = scmp.eq.s32.totalorder %s14, 0
    %p41 = por %p39, %p40
    %s43 = sadd.s32 %s42, 1
    %p46 = scmp.eq.s32.totalorder %s8, 1
    %p47 = scmp.ne.s32.totalorder %s42, %s44
    %p48 = scmp.eq.s32.totalorder %s8, 0
    %p49 = por %p47, %p48
    %p50 = scmp.ne.s32.totalorder %s42, %s44
    %p51 = scmp.eq.s32.totalorder %s13, 1
    %p52 = por %p50, %p51
    %p53 = scmp.ne.s32.totalorder %s44, %s45
    %p54 = scmp.eq.s32.totalorder %s13, 0
    %p55 = por %p53, %p54
    %p56 = scmp.ne.s32.totalorder %s44, %s45
    %p57 = scmp.eq.s32.totalorder %s14, 1
    %p58 = por %p56, %p57
    %p60 = scmp.ne.s32.totalorder %s45, %s59
    %p61 = scmp.eq.s32.totalorder %s14, 0
    %p62 = por %p60, %p61
    %s63 = ssub.s32 %s8, %s15
    %p64 = scmp.eq.s32.totalorder %s63, 0
    %s66 = sadd.s32 %s65, 1
    %s67 = scalar_select %p64, %s65, %s66
    %p70 = pneg %p64
    %p71 = scmp.eq.s32.totalorder %s8, 1
    %p72 = por %p70, %p71
    %p73 = scmp.ne.s32.totalorder %s65, %s68
    %p74 = scmp.eq.s32.totalorder %s8, 0
    %p75 = por %p73, %p74
    %p76 = scmp.ne.s32.totalorder %s65, %s68
    %p77 = scmp.eq.s32.totalorder %s13, 1
    %p78 = por %p76, %p77
    %p79 = scmp.ne.s32.totalorder %s68, %s69
    %p80 = scmp.eq.s32.totalorder %s13, 0
    %p81 = por %p79, %p80
    %p82 = scmp.ne.s32.totalorder %s68, %s69
    %p83 = scmp.eq.s32.totalorder %s14, 1
    %p84 = por %p82, %p83
    %p86 = scmp.ne.s32.totalorder %s69, %s85
    %p87 = scmp.eq.s32.totalorder %s14, 0
    %p88 = por %p86, %p87
    %p89 = scmp.le.s32.totalorder 1, %s8
    %p90 = scmp.lt.s32.totalorder %s8, 3
    %p91 = pnand %p89, %p90
    %p92 = pneg %p91
    // Predicated region
    $region9: #{generator_forward.19} parent=5 // pred_check
      _
    $region10: #{generator_forward.19} parent=5 // pred_check_branch
      %94 = sbr.rel (%p91) target = $region12
    $region11: #{generator_forward.19} parent=5 // pred_region
      %s95 = ssub.s32 %s8, 1
      // Predicated region
      $region13: #{generator_forward.19} parent=11 // pred_check
        %p96 = pneg %p55
      $region14: #{generator_forward.19} parent=11 // pred_check_branch
        %98 = sbr.rel (%p96) target = $region16
      $region15: #{generator_forward.19} parent=11 // pred_region
        _
      $region16: #{generator_forward.19} parent=11 // pred_fallthru
        _
    $region12: #{generator_forward.19} parent=5 // pred_fallthru
      _
    %p99 = scmp.lt.s32.totalorder %s8, 2
    // Predicated region
    $region17: #{generator_forward.19} parent=5 // pred_check
      %p100 = pneg %p99
    $region18: #{generator_forward.19} parent=5 // pred_check_branch
      %102 = sbr.rel (%p100) target = $region20
    $region19: #{generator_forward.19} parent=5 // pred_region
      // Predicated region
      $region21: #{generator_forward.19} parent=19 // pred_check
        %p103 = pneg %p28
      $region22: #{generator_forward.19} parent=19 // pred_check_branch
        %105 = sbr.rel (%p103) target = $region24
      $region23: #{generator_forward.19} parent=19 // pred_region
        %s106 = smul.u32 11, %s8
        %p107 = scmp.lt.s32.totalorder %s106, 21
        %s108 = scalar_select %p107, %s106, 21
        %s109 = smul.addr %s108, 2
        %s110 = smul.addr %s109, 4
        %s111 = scalar_lea.vmem %s0, %s110
        %s112 = smul.u32 11, %s8
      $region24: #{generator_forward.19} parent=19 // pred_fallthru
        _
    $region20: #{generator_forward.19} parent=5 // pred_fallthru
      _
    %p113 = scmp.le.s32.totalorder 1, %s8
    %p114 = scmp.lt.s32.totalorder %s8, 3
    %p115 = pnand %p113, %p114
    %p116 = pneg %p115
    // Predicated region
    $region25: #{generator_forward.19} parent=5 // pred_check
      _
    $region26: #{generator_forward.19} parent=5 // pred_check_branch
      %118 = sbr.rel (%p115) target = $region28
    $region27: #{generator_forward.19} parent=5 // pred_region
      %s119 = ssub.s32 %s8, 1
      %s120 = smul.u32 11, %s13
      %p121 = scmp.lt.s32.totalorder %s120, 21
      %s122 = scalar_select %p121, %s120, 21
      %s123 = smul.addr %s122, 2
      %s124 = smul.addr %s123, 4
      %s125 = scalar_lea.vmem %s0, %s124
      %p126 = pneg %p34
      %p127 = pneg %p31
      %p128 = pneg %p55
      %p129 = pneg %p52
      %p130 = pneg %p81
      %p131 = pneg %p78
      %s132 = smul.u32 11, %s13
      %p133 = scmp.lt.s32.totalorder %s132, 21
      %s134 = scalar_select %p133, %s132, 21
      %s135 = smul.addr %s134, 4
      %s136 = scalar_lea.vmem %s2, %s135
      %s137 = smul.u32 11, %s13
      %p138 = scmp.lt.s32.totalorder %s137, 21
      %s139 = scalar_select %p138, %s137, 21
      %s140 = smul.addr %s139, 2
      %s141 = smul.addr %s140, 4
      %s142 = scalar_lea.vmem %s0, %s141
      %s143 = smul.u32 11, %s13
      %s144 = smul.u32 11, %s13
      %p145 = scmp.lt.s32.totalorder %s144, 21
      %s146 = scalar_select %p145, %s144, 21
      %s147 = smul.addr %s146, 4
      %s148 = scalar_lea.vmem %s2, %s147
      %s149 = smul.u32 11, %s13
      %v150 = vld [vmem:[%s142] sm:$0xff]
      %v151 = vld [vmem:[%s142 + $0x8] sm:$0xff]
      %v152 = vld [vmem:[%s142 + $0x10] sm:$0xff]
      %v153 = vld [vmem:[%s142 + $0x18] sm:$0xff]
      %v154 = vld [vmem:[%s142 + $0x20] sm:$0xff]
      %v155 = vld [vmem:[%s142 + $0x28] sm:$0xff]
      %v156 = vld [vmem:[%s142 + $0x30] sm:$0xff]
      %v157 = vld [vmem:[%s142 + $0x38] sm:$0xff]
      %v158 = vld [vmem:[%s142 + $0x40] sm:$0xff]
      %v159 = vld [vmem:[%s142 + $0x48] sm:$0xff]
      %v160 = vld [vmem:[%s142 + $0x50] sm:$0xff]
      %v161 = vld [vmem:[%s1] sm:$0xf]
      %v162 = vld [vmem:[%s1 + $0x4] sm:$0xf]
      %v163 = vld [vmem:[%s1 + $0x8] sm:$0xf]
      %v164 = vld [vmem:[%s1 + $0xc] sm:$0xf]
      %v165 = vld [vmem:[%s1 + $0x10] sm:$0xf]
      %v166 = vld [vmem:[%s1 + $0x14] sm:$0xf]
      %v167 = vld [vmem:[%s1 + $0x18] sm:$0xf]
      %v168 = vld [vmem:[%s1 + $0x1c] sm:$0xf]
      %v169 = vld [vmem:[%s1 + $0x20] sm:$0xf]
      %v170 = vld [vmem:[%s1 + $0x24] sm:$0xf]
      %v171 = vld [vmem:[%s1 + $0x28] sm:$0xf]
      %v172 = vld [vmem:[%s1 + $0x2c] sm:$0xf]
      %v173 = vld [vmem:[%s1 + $0x30] sm:$0xf]
      %v174 = vld [vmem:[%s1 + $0x34] sm:$0xf]
      %v175 = vld [vmem:[%s1 + $0x38] sm:$0xf]
      %v176 = vld [vmem:[%s1 + $0x3c] sm:$0xf]
      %v177 = vld [vmem:[%s1 + $0x40] sm:$0xf]
      %v178 = vld [vmem:[%s1 + $0x44] sm:$0xf]
      %v179 = vld [vmem:[%s1 + $0x48] sm:$0xf]
      %v180 = vld [vmem:[%s1 + $0x4c] sm:$0xf]
      %v181 = vld [vmem:[%s1 + $0x50] sm:$0xf]
      %v182 = vld [vmem:[%s1 + $0x54] sm:$0xf]
      %v183 = vld [vmem:[%s1 + $0x58] sm:$0xf]
      %v184 = vld [vmem:[%s1 + $0x5c] sm:$0xf]
      %v185 = vld [vmem:[%s1 + $0x60] sm:$0xf]
      %v186 = vld [vmem:[%s1 + $0x64] sm:$0xf]
      %v187 = vld [vmem:[%s1 + $0x68] sm:$0xf]
      %v188 = vld [vmem:[%s1 + $0x6c] sm:$0xf]
      %v189 = vld [vmem:[%s1 + $0x70] sm:$0xf]
      %v190 = vld [vmem:[%s1 + $0x74] sm:$0xf]
      %v191 = vld [vmem:[%s1 + $0x78] sm:$0xf]
      %v192 = vld [vmem:[%s1 + $0x7c] sm:$0xf]
      %v204 = vunpack.c.l.b16 %v150
      %v205 = vunpack.c.h.b16 %v150
      %v206 = vunpack.c.l.b16 %v151
      %v207 = vunpack.c.h.b16 %v151
      %v208 = vunpack.c.l.b16 %v152
      %v209 = vunpack.c.h.b16 %v152
      %v210 = vunpack.c.l.b16 %v153
      %v211 = vunpack.c.h.b16 %v153
      %v212 = vunpack.c.l.b16 %v154
      %v213 = vunpack.c.h.b16 %v154
      %v214 = vunpack.c.l.b16 %v155
      %v215 = vunpack.c.h.b16 %v155
      %v216 = vunpack.c.l.b16 %v156
      %v217 = vunpack.c.h.b16 %v156
      %v218 = vunpack.c.l.b16 %v157
      %v219 = vunpack.c.h.b16 %v157
      %v220 = vunpack.c.l.b16 %v158
      %v221 = vunpack.c.h.b16 %v158
      %v222 = vunpack.c.l.b16 %v159
      %v223 = vunpack.c.h.b16 %v159
      %v224 = vunpack.c.l.b16 %v160
      %v225 = vunpack.c.h.b16 %v160
      %v226 = vpack.c.b16 %v206, %v204
      %v227 = vpack.c.b16 %v207, %v205
      %v228 = vpack.c.b16 %v210, %v208
      %v229 = vpack.c.b16 %v211, %v209
      %v230 = vpack.c.b16 %v214, %v212
      %v231 = vpack.c.b16 %v215, %v213
      %v232 = vpack.c.b16 %v218, %v216
      %v233 = vpack.c.b16 %v219, %v217
      %v234 = vpack.c.b16 %v222, %v220
      %v235 = vpack.c.b16 %v223, %v221
      %v236 = vpack.c.b16 %v224, %v224
      %v237 = vpack.c.b16 %v225, %v225
      %v282 = vunpack.c.l.b16 %v161
      %v283 = vunpack.c.l.b16 %v162
      %v284 = vunpack.c.l.b16 %v163
      %v285 = vunpack.c.l.b16 %v164
      %v286 = vunpack.c.l.b16 %v165
      %v287 = vunpack.c.l.b16 %v166
      %v288 = vunpack.c.l.b16 %v167
      %v289 = vunpack.c.l.b16 %v168
      %v290 = vunpack.c.l.b16 %v169
      %v291 = vunpack.c.l.b16 %v170
      %v292 = vunpack.c.l.b16 %v171
      %v293 = vunpack.c.l.b16 %v172
      %v294 = vunpack.c.l.b16 %v173
      %v295 = vunpack.c.l.b16 %v174
      %v296 = vunpack.c.l.b16 %v175
      %v297 = vunpack.c.l.b16 %v176
      %v298 = vunpack.c.l.b16 %v177
      %v299 = vunpack.c.l.b16 %v178
      %v300 = vunpack.c.l.b16 %v179
      %v301 = vunpack.c.l.b16 %v180
      %v302 = vunpack.c.l.b16 %v181
      %v303 = vunpack.c.l.b16 %v182
      %v304 = vunpack.c.l.b16 %v183
      %v305 = vunpack.c.l.b16 %v184
      %v306 = vunpack.c.l.b16 %v185
      %v307 = vunpack.c.l.b16 %v186
      %v308 = vunpack.c.l.b16 %v187
      %v309 = vunpack.c.l.b16 %v188
      %v310 = vunpack.c.l.b16 %v189
      %v311 = vunpack.c.l.b16 %v190
      %v312 = vunpack.c.l.b16 %v191
      %v313 = vunpack.c.l.b16 %v192
      %v314 = vpack.c.b16 %v283, %v282
      %v315 = vpack.c.b16 %v285, %v284
      %v316 = vpack.c.b16 %v287, %v286
      %v317 = vpack.c.b16 %v289, %v288
      %v318 = vpack.c.b16 %v291, %v290
      %v319 = vpack.c.b16 %v293, %v292
      %v320 = vpack.c.b16 %v295, %v294
      %v321 = vpack.c.b16 %v297, %v296
      %v322 = vpack.c.b16 %v299, %v298
      %v323 = vpack.c.b16 %v301, %v300
      %v324 = vpack.c.b16 %v303, %v302
      %v325 = vpack.c.b16 %v305, %v304
      %v326 = vpack.c.b16 %v307, %v306
      %v327 = vpack.c.b16 %v309, %v308
      %v328 = vpack.c.b16 %v311, %v310
      %v329 = vpack.c.b16 %v313, %v312
      %346 = vmatpush.bf16.msra.mxu0 %v321
      %347 = vmatpush.bf16.msra.mxu0 %v320
      %348 = vmatpush.bf16.msra.mxu0 %v319
      %349 = vmatpush.bf16.msra.mxu0 %v318
      %350 = vmatpush.bf16.msra.mxu0 %v317
      %351 = vmatpush.bf16.msra.mxu0 %v316
      %352 = vmatpush.bf16.msra.mxu0 %v315
      %353 = vmatpush.bf16.msra.mxu0 %v314
      %354 = vmatmul.bf16.gmra.mxu0 %v226
      %v355 = vpop.f32.mrf.mxu0
      %v356 = vadd.f32 0.0, %v355
      %v357 = vpop.f32.mrf.mxu0
      %v358 = vadd.f32 0.0, %v357
      %359 = vmatmul.bf16.gmra.mxu0 %v228
      %v360 = vpop.f32.mrf.mxu0
      %v361 = vadd.f32 0.0, %v360
      %v362 = vpop.f32.mrf.mxu0
      %v363 = vadd.f32 0.0, %v362
      %364 = vmatmul.bf16.gmra.mxu0 %v230
      %v365 = vpop.f32.mrf.mxu0
      %v366 = vadd.f32 0.0, %v365
      %v367 = vpop.f32.mrf.mxu0
      %v368 = vadd.f32 0.0, %v367
      %369 = vmatmul.bf16.gmra.mxu0 %v232
      %v370 = vpop.f32.mrf.mxu0
      %v371 = vadd.f32 0.0, %v370
      %v372 = vpop.f32.mrf.mxu0
      %v373 = vadd.f32 0.0, %v372
      %374 = vmatmul.bf16.gmra.mxu0 %v234
      %v375 = vpop.f32.mrf.mxu0
      %v376 = vadd.f32 0.0, %v375
      %v377 = vpop.f32.mrf.mxu0
      %v378 = vadd.f32 0.0, %v377
      %379 = vmatmul.bf16.gmra.mxu0 %v236
      %v380 = vpop.f32.mrf.mxu0
      %v381 = vadd.f32 0.0, %v380
      %v382 = vpop.f32.mrf.mxu0
      %383 = vdwg.mxu0
      %384 = vmatpush.bf16.msra.mxu0 %v329
      %385 = vmatpush.bf16.msra.mxu0 %v328
      %386 = vmatpush.bf16.msra.mxu0 %v327
      %387 = vmatpush.bf16.msra.mxu0 %v326
      %388 = vmatpush.bf16.msra.mxu0 %v325
      %389 = vmatpush.bf16.msra.mxu0 %v324
      %390 = vmatpush.bf16.msra.mxu0 %v323
      %391 = vmatpush.bf16.msra.mxu0 %v322
      %392 = vmatmul.bf16.gmra.mxu0 %v227
      %v393 = vpop.f32.mrf.mxu0
      %v394 = vadd.f32 %v356, %v393
      %v395 = vpop.f32.mrf.mxu0
      %v396 = vadd.f32 %v358, %v395
      %397 = vmatmul.bf16.gmra.mxu0 %v229
      %v398 = vpop.f32.mrf.mxu0
      %v399 = vadd.f32 %v361, %v398
      %v400 = vpop.f32.mrf.mxu0
      %v401 = vadd.f32 %v363, %v400
      %402 = vmatmul.bf16.gmra.mxu0 %v231
      %v403 = vpop.f32.mrf.mxu0
      %v404 = vadd.f32 %v366, %v403
      %v405 = vpop.f32.mrf.mxu0
      %v406 = vadd.f32 %v368, %v405
      %407 = vmatmul.bf16.gmra.mxu0 %v233
      %v408 = vpop.f32.mrf.mxu0
      %v409 = vadd.f32 %v371, %v408
      %v410 = vpop.f32.mrf.mxu0
      %v411 = vadd.f32 %v373, %v410
      %412 = vmatmul.bf16.gmra.mxu0 %v235
      %v413 = vpop.f32.mrf.mxu0
      %v414 = vadd.f32 %v376, %v413
      %v415 = vpop.f32.mrf.mxu0
      %v416 = vadd.f32 %v378, %v415
      %417 = vmatmul.bf16.gmra.mxu0 %v237
      %v418 = vpop.f32.mrf.mxu0
      %v419 = vadd.f32 %v381, %v418
      %v420 = vpop.f32.mrf.mxu0
      %421 = vdwg.mxu0
      %v422 = vpack.c.bf16 %v394, %v394
      %v423 = vpack.c.bf16 %v396, %v396
      %v424 = vpack.c.bf16 %v399, %v399
      %v425 = vpack.c.bf16 %v401, %v401
      %v426 = vpack.c.bf16 %v404, %v404
      %v427 = vpack.c.bf16 %v406, %v406
      %v428 = vpack.c.bf16 %v409, %v409
      %v429 = vpack.c.bf16 %v411, %v411
      %v430 = vpack.c.bf16 %v414, %v414
      %v431 = vpack.c.bf16 %v416, %v416
      %v432 = vpack.c.bf16 %v419, %v419
      %433 = vst [vmem:[%s148] sm:$0xf] %v422
      %434 = vst [vmem:[%s148 + $0x4] sm:$0xf] %v423
      %435 = vst [vmem:[%s148 + $0x8] sm:$0xf] %v424
      %436 = vst [vmem:[%s148 + $0xc] sm:$0xf] %v425
      %437 = vst [vmem:[%s148 + $0x10] sm:$0xf] %v426
      %438 = vst [vmem:[%s148 + $0x14] sm:$0xf] %v427
      %439 = vst [vmem:[%s148 + $0x18] sm:$0xf] %v428
      %440 = vst [vmem:[%s148 + $0x1c] sm:$0xf] %v429
      %441 = vst [vmem:[%s148 + $0x20] sm:$0xf] %v430
      %442 = vst [vmem:[%s148 + $0x24] sm:$0xf] %v431
      %443 = vst [vmem:[%s148 + $0x28] sm:$0xf] %v432
      %s444 = smul.u32 11, %s13
      %p445 = scmp.lt.s32.totalorder %s444, 21
      %s446 = scalar_select %p445, %s444, 21
      %s447 = smul.addr %s446, 4
      %s448 = scalar_lea.vmem %s2, %s447
      // Predicated region
      $region29: #{generator_forward.19} parent=27 // pred_check
        %p449 = pneg %p78
      $region30: #{generator_forward.19} parent=27 // pred_check_branch
        %451 = sbr.rel (%p449) target = $region32
      $region31: #{generator_forward.19} parent=27 // pred_region
        %s452 = smul.u32 11, %s13
      $region32: #{generator_forward.19} parent=27 // pred_fallthru
        _
    $region28: #{generator_forward.19} parent=5 // pred_fallthru
      _
    %p453 = scmp.le.s32.totalorder 2, %s8
    // Predicated region
    $region33: #{generator_forward.19} parent=5 // pred_check
      %p454 = pneg %p453
    $region34: #{generator_forward.19} parent=5 // pred_check_branch
      %456 = sbr.rel (%p454) target = $region36
    $region35: #{generator_forward.19} parent=5 // pred_region
      %s457 = ssub.s32 %s8, 2
      // Predicated region
      $region37: #{generator_forward.19} parent=35 // pred_check
        %p458 = pneg %p84
      $region38: #{generator_forward.19} parent=35 // pred_check_branch
        %460 = sbr.rel (%p458) target = $region40
      $region39: #{generator_forward.19} parent=35 // pred_region
        %s461 = smul.u32 11, %s14
        %p462 = scmp.lt.s32.totalorder %s461, 21
        %s463 = scalar_select %p462, %s461, 21
        %s464 = smul.addr %s463, 4
        %s465 = scalar_lea.vmem %s2, %s464
      $region40: #{generator_forward.19} parent=35 // pred_fallthru
        _
    $region36: #{generator_forward.19} parent=5 // pred_fallthru
      _
  $region6: #{generator_forward.19} parent=0 // loop_footer
    %s12 = sadd.s32 1, %s8
  $region7: #{generator_forward.19} parent=0 // loop_footer_branch
    %7 = sbr.rel target = $region3
  $region8: #{generator_forward.19} parent=0 // loop_exit
    _

// kernel: tile.68
$region0: #{tile.68}
  #allocation0 [shape = 's32[1]{0}', space=sflag, size = 0x4, scoped, tag = 'scoped memory for tile.68']
  %s0 = inlined_call_operand.vmem [shape: f32[32], index: 0, kind: input, shape index: {}]
  %s1 = inlined_call_operand.vmem [shape: f32[16,32], index: 1, kind: output, shape index: {}]
  // Predicated region
  $region2: #{tile.68} parent=0 // pred_check
    _
  $region3: #{tile.68} parent=0 // pred_check_branch
    %3 = sbr.rel (0) target = $region5
  $region4: #{tile.68} parent=0 // pred_region
    _
  $region5: #{tile.68} parent=0 // pred_fallthru
    _
  %v4 = vld [vmem:[%s0] ss:$0 sm:$0xff]
  %5 = vst [vmem:[%s1] sm:$0xff] %v4
  %s6 = scalar_lea.vmem %s1, 8
  %7 = vst [vmem:[%s6] sm:$0xff] %v4

// kernel: tile.69
$region0: #{tile.69}
  %s0 = inlined_call_operand.vmem [shape: f32[16,32], index: 0, kind: input, shape index: {}]
  %s1 = inlined_call_operand.vmem [shape: f32[1,512], index: 1, kind: output, shape index: {}]
  $region1: #{tile.69} parent=0
    #allocation0 [shape = 'u8[16384]{0}', space=vmem, size = 0x4000, scoped, tag = 'scoped mem for output reshape']
    %v2 = vld [vmem:[%s0] ss:$4 sm:$0xf]
    %vm3 = vcmask 261120
    %4 = vst.msk [vmem:[#allocation0] ss:$8 sm:$0xf] %vm3, %v2
    %s5 = scalar_lea.vmem %s0, 3
    %v6 = vld [vmem:[%s5] ss:$4 sm:$0xf]
    %7 = vrot.lane.b32.xlu0 %v6, 96
    %v8 = vpop.permute.xlu0 %7
    %vm9 = vcmask 1048320
    %10 = vst.msk [vmem:[#allocation0] ss:$8 sm:$0xf] %vm9, %v8
    %s11 = scalar_lea.vmem %s0, 2
    %v12 = vld [vmem:[%s11] ss:$4 sm:$0xf]
    %13 = vrot.lane.b32.xlu0 %v12, 64
    %v14 = vpop.permute.xlu0 %13
    %vm15 = vcmask 785920
    %16 = vst.msk [vmem:[#allocation0] ss:$8 sm:$0xf] %vm15, %v14
    %s17 = scalar_lea.vmem %s0, 1
    %v18 = vld [vmem:[%s17] ss:$4 sm:$0xf]
    %19 = vrot.lane.b32.xlu0 %v18, 32
    %v20 = vpop.permute.xlu0 %19
    %vm21 = vcmask 523520
    %22 = vst.msk [vmem:[#allocation0] ss:$8 sm:$0xf] %vm21, %v20
    %s24 = ssub.s32 2, 1
    %v25 = vld [vmem:[#allocation0] sm:%s24]
    %s27 = ssub.s32 2, 1
    %28 = vst [vmem:[%s1] sm:%s27] %v25
    %s29 = scalar_lea.vmem [#allocation0], 8
    %v30 = vld [vmem:[%s29] sm:%s24]
    %s32 = ssub.s32 2, 1
    %s33 = scalar_lea.vmem %s1, 1
    %34 = vst [vmem:[%s33] sm:%s32] %v30
    %s35 = scalar_lea.vmem [#allocation0], 16
    %v36 = vld [vmem:[%s35] sm:%s24]
    %s38 = ssub.s32 2, 1
    %s39 = scalar_lea.vmem %s1, 2
    %40 = vst [vmem:[%s39] sm:%s38] %v36
    %s41 = scalar_lea.vmem [#allocation0], 24
    %v42 = vld [vmem:[%s41] sm:%s24]
    %s44 = ssub.s32 2, 1
    %s45 = scalar_lea.vmem %s1, 3
    %46 = vst [vmem:[%s45] sm:%s44] %v42

// kernel: generator_forward.20
$region0: #{generator_forward.20}
  #allocation0 [shape = 'u32[]', space=smem, size = 0x4, offset = 0x4, fixed_abs, tag = 'smem constant byte address 0x4 - core index']
  #allocation1 [shape = 'u32[72,128]{1,0:T(1,128)}', space=vmem, size = 0x9000, scoped, tag = 'internal scratch']
  %s0 = inlined_call_operand.vmem [shape: bf16[32,512], index: 0, kind: input, shape index: {}]
  %s1 = inlined_call_operand.vmem [shape: f32[1,512], index: 1, kind: output, shape index: {0}]
  %s2 = inlined_call_operand.vmem [shape: f32[1,512], index: 2, kind: output, shape index: {1}]
  %3 = xla_tuple %s1, %s2
  %s4 = sld [smem:[#allocation0]]
  $region26: #{generator_forward.20} parent=0
    _
  %s6 = ssub.s32 1, %s4
  %s7 = scalar_select 0, %s6, %s4
  // Predicated region
  $region2: #{generator_forward.20} parent=0 // pred_check
    _
  $region3: #{generator_forward.20} parent=0 // pred_check_branch
    %9 = sbr.rel (0) target = $region5
  $region4: #{generator_forward.20} parent=0 // pred_region
    _
  $region5: #{generator_forward.20} parent=0 // pred_fallthru
    _
  %p10 = scmp.eq.s32.totalorder 0, 0
  // Predicated region
  $region6: #{generator_forward.20} parent=0 // pred_check
    %p11 = pneg %p10
  $region7: #{generator_forward.20} parent=0 // pred_check_branch
    %13 = sbr.rel (%p11) target = $region9
  $region8: #{generator_forward.20} parent=0 // pred_region
    %v14 = vlaneseq
    %vm15 = vcmp.ge.s32.totalorder %v14, 0
    %vm16 = vcmp.lt.s32.totalorder %v14, 512
    %vm17 = vmand %vm15, %vm16
    %18 = vst.msk [vmem:[%s1] sm:$0xf] %vm17, 0.0
    %19 = vst.msk [vmem:[%s2] sm:$0xf] %vm17, 0.0
  $region9: #{generator_forward.20} parent=0 // pred_fallthru
    _
  %v20 = vld [vmem:[%s0] sm:$0xff]
  %v21 = vld [vmem:[%s0 + $0x8] sm:$0xff]
  %v22 = vld [vmem:[%s0 + $0x10] sm:$0xff]
  %v23 = vld [vmem:[%s0 + $0x18] sm:$0xff]
  %v24 = vld [vmem:[%s0 + $0x20] sm:$0xff]
  %v25 = vld [vmem:[%s0 + $0x28] sm:$0xff]
  %v26 = vld [vmem:[%s0 + $0x30] sm:$0xff]
  %v27 = vld [vmem:[%s0 + $0x38] sm:$0xff]
  %v28 = vunpack.c.l.bf16 %v20
  %v29 = vunpack.c.h.bf16 %v20
  %v30 = vunpack.c.l.bf16 %v21
  %v31 = vunpack.c.h.bf16 %v21
  %v32 = vunpack.c.l.bf16 %v22
  %v33 = vunpack.c.h.bf16 %v22
  %v34 = vunpack.c.l.bf16 %v23
  %v35 = vunpack.c.h.bf16 %v23
  %v36 = vunpack.c.l.bf16 %v24
  %v37 = vunpack.c.h.bf16 %v24
  %v38 = vunpack.c.l.bf16 %v25
  %v39 = vunpack.c.h.bf16 %v25
  %v40 = vunpack.c.l.bf16 %v26
  %v41 = vunpack.c.h.bf16 %v26
  %v42 = vunpack.c.l.bf16 %v27
  %v43 = vunpack.c.h.bf16 %v27
  %v44 = vld [vmem:[%s1] sm:$0xf]
  %v45 = vadd.f32 %v28, %v32
  %v46 = vadd.f32 %v45, %v36
  %v47 = vadd.f32 %v46, %v40
  %v48 = vrot.slane %v47, 4
  %v49 = vadd.f32 %v47, %v48
  %v50 = vrot.slane %v49, 2
  %v51 = vadd.f32 %v49, %v50
  %v52 = vrot.slane %v51, 1
  %v53 = vadd.f32 %v51, %v52
  %v54 = vadd.f32 %v29, %v33
  %v55 = vadd.f32 %v54, %v37
  %v56 = vadd.f32 %v55, %v41
  %v57 = vrot.slane %v56, 4
  %v58 = vadd.f32 %v56, %v57
  %v59 = vrot.slane %v58, 2
  %v60 = vadd.f32 %v58, %v59
  %v61 = vrot.slane %v60, 1
  %v62 = vadd.f32 %v60, %v61
  %v63 = vadd.f32 %v30, %v34
  %v64 = vadd.f32 %v63, %v38
  %v65 = vadd.f32 %v64, %v42
  %v66 = vrot.slane %v65, 4
  %v67 = vadd.f32 %v65, %v66
  %v68 = vrot.slane %v67, 2
  %v69 = vadd.f32 %v67, %v68
  %v70 = vrot.slane %v69, 1
  %v71 = vadd.f32 %v69, %v70
  %v72 = vadd.f32 %v31, %v35
  %v73 = vadd.f32 %v72, %v39
  %v74 = vadd.f32 %v73, %v43
  %v75 = vrot.slane %v74, 4
  %v76 = vadd.f32 %v74, %v75
  %v77 = vrot.slane %v76, 2
  %v78 = vadd.f32 %v76, %v77
  %v79 = vrot.slane %v78, 1
  %v80 = vadd.f32 %v78, %v79
  %v85 = vrot.slane %v62, 7
  %v86 = vrot.slane %v71, 6
  %v87 = vrot.slane %v80, 5
  %vm88 = vcmask 1040384
  %v89 = vsel %vm88, %v53, %v85
  %vm90 = vcmask 1042434
  %v91 = vsel %vm90, %v86, %v87
  %vm92 = vcmask 1041408
  %v93 = vsel %vm92, %v89, %v91
  %v95 = vadd.f32 %v44, %v93
  %v96 = vlaneseq
  %vm97 = vcmp.ge.s32.totalorder %v96, 0
  %vm98 = vcmp.lt.s32.totalorder %v96, 512
  %vm99 = vmand %vm97, %vm98
  %100 = vst.msk [vmem:[%s1] sm:$0xf] %vm99, %v95
  %v101 = vld [vmem:[%s2] sm:$0xf]
  %v102 = vmul.f32 %v28, %v28
  %v103 = vmul.f32 %v29, %v29
  %v104 = vmul.f32 %v30, %v30
  %v105 = vmul.f32 %v31, %v31
  %v106 = vmul.f32 %v32, %v32
  %v107 = vmul.f32 %v33, %v33
  %v108 = vmul.f32 %v34, %v34
  %v109 = vmul.f32 %v35, %v35
  %v110 = vmul.f32 %v36, %v36
  %v111 = vmul.f32 %v37, %v37
  %v112 = vmul.f32 %v38, %v38
  %v113 = vmul.f32 %v39, %v39
  %v114 = vmul.f32 %v40, %v40
  %v115 = vmul.f32 %v41, %v41
  %v116 = vmul.f32 %v42, %v42
  %v117 = vmul.f32 %v43, %v43
  %v118 = vadd.f32 %v102, %v106
  %v119 = vadd.f32 %v118, %v110
  %v120 = vadd.f32 %v119, %v114
  %v121 = vrot.slane %v120, 4
  %v122 = vadd.f32 %v120, %v121
  %v123 = vrot.slane %v122, 2
  %v124 = vadd.f32 %v122, %v123
  %v125 = vrot.slane %v124, 1
  %v126 = vadd.f32 %v124, %v125
  %v127 = vadd.f32 %v103, %v107
  %v128 = vadd.f32 %v127, %v111
  %v129 = vadd.f32 %v128, %v115
  %v130 = vrot.slane %v129, 4
  %v131 = vadd.f32 %v129, %v130
  %v132 = vrot.slane %v131, 2
  %v133 = vadd.f32 %v131, %v132
  %v134 = vrot.slane %v133, 1
  %v135 = vadd.f32 %v133, %v134
  %v136 = vadd.f32 %v104, %v108
  %v137 = vadd.f32 %v136, %v112
  %v138 = vadd.f32 %v137, %v116
  %v139 = vrot.slane %v138, 4
  %v140 = vadd.f32 %v138, %v139
  %v141 = vrot.slane %v140, 2
  %v142 = vadd.f32 %v140, %v141
  %v143 = vrot.slane %v142, 1
  %v144 = vadd.f32 %v142, %v143
  %v145 = vadd.f32 %v105, %v109
  %v146 = vadd.f32 %v145, %v113
  %v147 = vadd.f32 %v146, %v117
  %v148 = vrot.slane %v147, 4
  %v149 = vadd.f32 %v147, %v148
  %v150 = vrot.slane %v149, 2
  %v151 = vadd.f32 %v149, %v150
  %v152 = vrot.slane %v151, 1
  %v153 = vadd.f32 %v151, %v152
  %v158 = vrot.slane %v135, 7
  %v159 = vrot.slane %v144, 6
  %v160 = vrot.slane %v153, 5
  %v161 = vsel %vm88, %v126, %v158
  %v162 = vsel %vm90, %v159, %v160
  %v163 = vsel %vm92, %v161, %v162
  %v165 = vadd.f32 %v101, %v163
  %166 = vst.msk [vmem:[%s2] sm:$0xf] %vm99, %v165
  // Predicated region
  $region10: #{generator_forward.20} parent=0 // pred_check
    _
  $region11: #{generator_forward.20} parent=0 // pred_check_branch
    %168 = sbr.rel (0) target = $region13
  $region12: #{generator_forward.20} parent=0 // pred_region
    _
  $region13: #{generator_forward.20} parent=0 // pred_fallthru
    _
  // Predicated region
  $region14: #{generator_forward.20} parent=0 // pred_check
    _
  $region15: #{generator_forward.20} parent=0 // pred_check_branch
    %170 = sbr.rel (0) target = $region17
  $region16: #{generator_forward.20} parent=0 // pred_region
    _
  $region17: #{generator_forward.20} parent=0 // pred_fallthru
    _
  // Predicated region
  $region18: #{generator_forward.20} parent=0 // pred_check
    _
  $region19: #{generator_forward.20} parent=0 // pred_check_branch
    %172 = sbr.rel (0) target = $region21
  $region20: #{generator_forward.20} parent=0 // pred_region
    _
  $region21: #{generator_forward.20} parent=0 // pred_fallthru
    _
  // Predicated region
  $region22: #{generator_forward.20} parent=0 // pred_check
    _
  $region23: #{generator_forward.20} parent=0 // pred_check_branch
    %174 = sbr.rel (0) target = $region25
  $region24: #{generator_forward.20} parent=0 // pred_region
    _
  $region25: #{generator_forward.20} parent=0 // pred_fallthru
    _

// kernel: generator_forward.21
$region0: #{generator_forward.21}
  #allocation0 [shape = 'u32[]', space=smem, size = 0x4, offset = 0x4, fixed_abs, tag = 'smem constant byte address 0x4 - core index']
  #allocation1 [shape = 'u32[72,128]{1,0:T(1,128)}', space=vmem, size = 0x9000, scoped, tag = 'internal scratch']
  %s0 = inlined_call_operand.vmem [shape: bf16[32,512], index: 0, kind: input, shape index: {}]
  %s1 = inlined_call_operand.vmem [shape: f32[1,512], index: 1, kind: input, shape index: {}]
  %s2 = inlined_call_operand.vmem [shape: f32[1,512], index: 2, kind: input, shape index: {}]
  %s3 = inlined_call_operand.vmem [shape: bf16[32,512], index: 3, kind: output, shape index: {}]
  %s4 = sld [smem:[#allocation0]]
  $region22: #{generator_forward.21} parent=0
    _
  %s6 = ssub.s32 1, %s4
  %s7 = scalar_select 0, %s6, %s4
  // Predicated region
  $region2: #{generator_forward.21} parent=0 // pred_check
    _
  $region3: #{generator_forward.21} parent=0 // pred_check_branch
    %9 = sbr.rel (0) target = $region5
  $region4: #{generator_forward.21} parent=0 // pred_region
    _
  $region5: #{generator_forward.21} parent=0 // pred_fallthru
    _
  // Predicated region
  $region6: #{generator_forward.21} parent=0 // pred_check
    _
  $region7: #{generator_forward.21} parent=0 // pred_check_branch
    %11 = sbr.rel (0) target = $region9
  $region8: #{generator_forward.21} parent=0 // pred_region
    _
  $region9: #{generator_forward.21} parent=0 // pred_fallthru
    _
  // Predicated region
  $region10: #{generator_forward.21} parent=0 // pred_check
    _
  $region11: #{generator_forward.21} parent=0 // pred_check_branch
    %13 = sbr.rel (0) target = $region13
  $region12: #{generator_forward.21} parent=0 // pred_region
    _
  $region13: #{generator_forward.21} parent=0 // pred_fallthru
    _
  %v14 = vld [vmem:[%s0] sm:$0xff]
  %v15 = vld [vmem:[%s0 + $0x8] sm:$0xff]
  %v16 = vld [vmem:[%s0 + $0x10] sm:$0xff]
  %v17 = vld [vmem:[%s0 + $0x18] sm:$0xff]
  %v18 = vld [vmem:[%s0 + $0x20] sm:$0xff]
  %v19 = vld [vmem:[%s0 + $0x28] sm:$0xff]
  %v20 = vld [vmem:[%s0 + $0x30] sm:$0xff]
  %v21 = vld [vmem:[%s0 + $0x38] sm:$0xff]
  %v22 = vunpack.c.l.bf16 %v14
  %v23 = vunpack.c.h.bf16 %v14
  %v24 = vunpack.c.l.bf16 %v15
  %v25 = vunpack.c.h.bf16 %v15
  %v26 = vunpack.c.l.bf16 %v16
  %v27 = vunpack.c.h.bf16 %v16
  %v28 = vunpack.c.l.bf16 %v17
  %v29 = vunpack.c.h.bf16 %v17
  %v30 = vunpack.c.l.bf16 %v18
  %v31 = vunpack.c.h.bf16 %v18
  %v32 = vunpack.c.l.bf16 %v19
  %v33 = vunpack.c.h.bf16 %v19
  %v34 = vunpack.c.l.bf16 %v20
  %v35 = vunpack.c.h.bf16 %v20
  %v36 = vunpack.c.l.bf16 %v21
  %v37 = vunpack.c.h.bf16 %v21
  %v38 = vld [vmem:[%s1] sm:$0xf]
  %v40 = vperm.slane %v38, 0
  %v41 = vperm.slane %v38, 1
  %v42 = vperm.slane %v38, 2
  %v43 = vperm.slane %v38, 3
  %v48 = vmul.f32 %v22, %v40
  %v49 = vmul.f32 %v23, %v41
  %v50 = vmul.f32 %v24, %v42
  %v51 = vmul.f32 %v25, %v43
  %v52 = vmul.f32 %v26, %v40
  %v53 = vmul.f32 %v27, %v41
  %v54 = vmul.f32 %v28, %v42
  %v55 = vmul.f32 %v29, %v43
  %v56 = vmul.f32 %v30, %v40
  %v57 = vmul.f32 %v31, %v41
  %v58 = vmul.f32 %v32, %v42
  %v59 = vmul.f32 %v33, %v43
  %v60 = vmul.f32 %v34, %v40
  %v61 = vmul.f32 %v35, %v41
  %v62 = vmul.f32 %v36, %v42
  %v63 = vmul.f32 %v37, %v43
  %v64 = vld [vmem:[%s2] sm:$0xf]
  %v66 = vperm.slane %v64, 0
  %v67 = vperm.slane %v64, 1
  %v68 = vperm.slane %v64, 2
  %v69 = vperm.slane %v64, 3
  %v74 = vadd.f32 %v48, %v66
  %v75 = vadd.f32 %v49, %v67
  %v76 = vadd.f32 %v50, %v68
  %v77 = vadd.f32 %v51, %v69
  %v78 = vadd.f32 %v52, %v66
  %v79 = vadd.f32 %v53, %v67
  %v80 = vadd.f32 %v54, %v68
  %v81 = vadd.f32 %v55, %v69
  %v82 = vadd.f32 %v56, %v66
  %v83 = vadd.f32 %v57, %v67
  %v84 = vadd.f32 %v58, %v68
  %v85 = vadd.f32 %v59, %v69
  %v86 = vadd.f32 %v60, %v66
  %v87 = vadd.f32 %v61, %v67
  %v88 = vadd.f32 %v62, %v68
  %v89 = vadd.f32 %v63, %v69
  %v90 = vmax.f32 %v74, 0.0
  %v91 = vmax.f32 %v75, 0.0
  %v92 = vmax.f32 %v76, 0.0
  %v93 = vmax.f32 %v77, 0.0
  %v94 = vmax.f32 %v78, 0.0
  %v95 = vmax.f32 %v79, 0.0
  %v96 = vmax.f32 %v80, 0.0
  %v97 = vmax.f32 %v81, 0.0
  %v98 = vmax.f32 %v82, 0.0
  %v99 = vmax.f32 %v83, 0.0
  %v100 = vmax.f32 %v84, 0.0
  %v101 = vmax.f32 %v85, 0.0
  %v102 = vmax.f32 %v86, 0.0
  %v103 = vmax.f32 %v87, 0.0
  %v104 = vmax.f32 %v88, 0.0
  %v105 = vmax.f32 %v89, 0.0
  %v106 = vpack.c.bf16 %v91, %v90
  %v107 = vpack.c.bf16 %v93, %v92
  %v108 = vpack.c.bf16 %v95, %v94
  %v109 = vpack.c.bf16 %v97, %v96
  %v110 = vpack.c.bf16 %v99, %v98
  %v111 = vpack.c.bf16 %v101, %v100
  %v112 = vpack.c.bf16 %v103, %v102
  %v113 = vpack.c.bf16 %v105, %v104
  %114 = vst [vmem:[%s3] sm:$0xff] %v106
  %115 = vst [vmem:[%s3 + $0x8] sm:$0xff] %v107
  %116 = vst [vmem:[%s3 + $0x10] sm:$0xff] %v108
  %117 = vst [vmem:[%s3 + $0x18] sm:$0xff] %v109
  %118 = vst [vmem:[%s3 + $0x20] sm:$0xff] %v110
  %119 = vst [vmem:[%s3 + $0x28] sm:$0xff] %v111
  %120 = vst [vmem:[%s3 + $0x30] sm:$0xff] %v112
  %121 = vst [vmem:[%s3 + $0x38] sm:$0xff] %v113
  // Predicated region
  $region14: #{generator_forward.21} parent=0 // pred_check
    _
  $region15: #{generator_forward.21} parent=0 // pred_check_branch
    %123 = sbr.rel (0) target = $region17
  $region16: #{generator_forward.21} parent=0 // pred_region
    _
  $region17: #{generator_forward.21} parent=0 // pred_fallthru
    _
  // Predicated region
  $region18: #{generator_forward.21} parent=0 // pred_check
    _
  $region19: #{generator_forward.21} parent=0 // pred_check_branch
    %125 = sbr.rel (0) target = $region21
  $region20: #{generator_forward.21} parent=0 // pred_region
    _
  $region21: #{generator_forward.21} parent=0 // pred_fallthru
    _

// kernel: generator_forward.22
$region0: #{generator_forward.22}
  #allocation0 [shape = 'u32[]', space=smem, size = 0x4, offset = 0x4, fixed_abs, tag = 'smem constant byte address 0x4 - core index']
  #allocation1 [shape = 'u32[72,128]{1,0:T(1,128)}', space=vmem, size = 0x9000, scoped, tag = 'internal scratch']
  %s0 = inlined_call_operand.vmem [shape: bf16[768,128], index: 0, kind: input, shape index: {}]
  %s1 = inlined_call_operand.vmem [shape: bf16[128,64], index: 1, kind: input, shape index: {}]
  %s2 = inlined_call_operand.vmem [shape: bf16[768,64], index: 2, kind: output, shape index: {}]
  %s3 = sld [smem:[#allocation0]]
  $region41: #{generator_forward.22} parent=0
    _
  %s5 = ssub.s32 1, %s3
  %s6 = scalar_select 0, %s5, %s3
  loop: start=0, step=1, limit=5
  $region2: #{generator_forward.22} parent=0 // loop_pre_header
    _
  $region3: #{generator_forward.22} parent=0 // loop_header
    %s8 = sphi 0, %s12
    %p9 = scmp.ge.s32.totalorder %s8, 5
    %s18 = sphi 0, %s20
    %s21 = sphi 0, %s18
    %s22 = sphi 0, %s21
    %s38 = sphi 0, %s22
    %s42 = sphi 0, %s42
    %s44 = sphi 0, %s42
    %s45 = sphi 0, %s44
    %s59 = sphi 0, %s45
    %s65 = sphi 0, %s67
    %s68 = sphi 0, %s65
    %s69 = sphi 0, %s68
    %s85 = sphi 0, %s69
  $region4: #{generator_forward.22} parent=0 // loop_header_branch
    %11 = sbr.rel (%p9) target = $region8
  $region5: #{generator_forward.22} parent=0 // loop_body
    %s13 = ssub.s32 %s8, 1
    %s14 = ssub.s32 %s8, 2
    %s15 = sadd.s32 %s8, 1
    %s16 = ssub.s32 %s8, %s15
    %p17 = scmp.eq.s32.totalorder %s16, 0
    %s19 = sadd.s32 %s18, 1
    %s20 = scalar_select %p17, %s18, %s19
    %p23 = pneg %p17
    %p24 = scmp.eq.s32.totalorder %s8, 2
    %p25 = por %p23, %p24
    %p26 = scmp.ne.s32.totalorder %s18, %s21
    %p27 = scmp.eq.s32.totalorder %s8, 0
    %p28 = por %p26, %p27
    %p29 = scmp.ne.s32.totalorder %s18, %s21
    %p30 = scmp.eq.s32.totalorder %s13, 2
    %p31 = por %p29, %p30
    %p32 = scmp.ne.s32.totalorder %s21, %s22
    %p33 = scmp.eq.s32.totalorder %s13, 0
    %p34 = por %p32, %p33
    %p35 = scmp.ne.s32.totalorder %s21, %s22
    %p36 = scmp.eq.s32.totalorder %s14, 2
    %p37 = por %p35, %p36
    %p39 = scmp.ne.s32.totalorder %s22, %s38
    %p40 = scmp.eq.s32.totalorder %s14, 0
    %p41 = por %p39, %p40
    %s43 = sadd.s32 %s42, 1
    %p46 = scmp.eq.s32.totalorder %s8, 2
    %p47 = scmp.ne.s32.totalorder %s42, %s44
    %p48 = scmp.eq.s32.totalorder %s8, 0
    %p49 = por %p47, %p48
    %p50 = scmp.ne.s32.totalorder %s42, %s44
    %p51 = scmp.eq.s32.totalorder %s13, 2
    %p52 = por %p50, %p51
    %p53 = scmp.ne.s32.totalorder %s44, %s45
    %p54 = scmp.eq.s32.totalorder %s13, 0
    %p55 = por %p53, %p54
    %p56 = scmp.ne.s32.totalorder %s44, %s45
    %p57 = scmp.eq.s32.totalorder %s14, 2
    %p58 = por %p56, %p57
    %p60 = scmp.ne.s32.totalorder %s45, %s59
    %p61 = scmp.eq.s32.totalorder %s14, 0
    %p62 = por %p60, %p61
    %s63 = ssub.s32 %s8, %s15
    %p64 = scmp.eq.s32.totalorder %s63, 0
    %s66 = sadd.s32 %s65, 1
    %s67 = scalar_select %p64, %s65, %s66
    %p70 = pneg %p64
    %p71 = scmp.eq.s32.totalorder %s8, 2
    %p72 = por %p70, %p71
    %p73 = scmp.ne.s32.totalorder %s65, %s68
    %p74 = scmp.eq.s32.totalorder %s8, 0
    %p75 = por %p73, %p74
    %p76 = scmp.ne.s32.totalorder %s65, %s68
    %p77 = scmp.eq.s32.totalorder %s13, 2
    %p78 = por %p76, %p77
    %p79 = scmp.ne.s32.totalorder %s68, %s69
    %p80 = scmp.eq.s32.totalorder %s13, 0
    %p81 = por %p79, %p80
    %p82 = scmp.ne.s32.totalorder %s68, %s69
    %p83 = scmp.eq.s32.totalorder %s14, 2
    %p84 = por %p82, %p83
    %p86 = scmp.ne.s32.totalorder %s69, %s85
    %p87 = scmp.eq.s32.totalorder %s14, 0
    %p88 = por %p86, %p87
    %p89 = scmp.le.s32.totalorder 1, %s8
    %p90 = scmp.lt.s32.totalorder %s8, 4
    %p91 = pnand %p89, %p90
    %p92 = pneg %p91
    // Predicated region
    $region9: #{generator_forward.22} parent=5 // pred_check
      _
    $region10: #{generator_forward.22} parent=5 // pred_check_branch
      %94 = sbr.rel (%p91) target = $region12
    $region11: #{generator_forward.22} parent=5 // pred_region
      %s95 = ssub.s32 %s8, 1
      // Predicated region
      $region13: #{generator_forward.22} parent=11 // pred_check
        %p96 = pneg %p55
      $region14: #{generator_forward.22} parent=11 // pred_check_branch
        %98 = sbr.rel (%p96) target = $region16
      $region15: #{generator_forward.22} parent=11 // pred_region
        _
      $region16: #{generator_forward.22} parent=11 // pred_fallthru
        _
    $region12: #{generator_forward.22} parent=5 // pred_fallthru
      _
    %p99 = scmp.lt.s32.totalorder %s8, 3
    // Predicated region
    $region17: #{generator_forward.22} parent=5 // pred_check
      %p100 = pneg %p99
    $region18: #{generator_forward.22} parent=5 // pred_check_branch
      %102 = sbr.rel (%p100) target = $region20
    $region19: #{generator_forward.22} parent=5 // pred_region
      // Predicated region
      $region21: #{generator_forward.22} parent=19 // pred_check
        %p103 = pneg %p28
      $region22: #{generator_forward.22} parent=19 // pred_check_branch
        %105 = sbr.rel (%p103) target = $region24
      $region23: #{generator_forward.22} parent=19 // pred_region
        %s106 = smul.u32 32, %s8
        %p107 = scmp.lt.s32.totalorder %s106, 95
        %s108 = scalar_select %p107, %s106, 95
        %s109 = smul.addr %s108, 4
        %s110 = scalar_lea.vmem %s0, %s109
        %s111 = smul.u32 32, %s8
      $region24: #{generator_forward.22} parent=19 // pred_fallthru
        _
    $region20: #{generator_forward.22} parent=5 // pred_fallthru
      _
    %p112 = scmp.le.s32.totalorder 1, %s8
    %p113 = scmp.lt.s32.totalorder %s8, 4
    %p114 = pnand %p112, %p113
    %p115 = pneg %p114
    // Predicated region
    $region25: #{generator_forward.22} parent=5 // pred_check
      _
    $region26: #{generator_forward.22} parent=5 // pred_check_branch
      %117 = sbr.rel (%p114) target = $region28
    $region27: #{generator_forward.22} parent=5 // pred_region
      %s118 = ssub.s32 %s8, 1
      %s119 = smul.u32 32, %s13
      %p120 = scmp.lt.s32.totalorder %s119, 95
      %s121 = scalar_select %p120, %s119, 95
      %s122 = smul.addr %s121, 4
      %s123 = scalar_lea.vmem %s0, %s122
      %p124 = pneg %p34
      %p125 = pneg %p31
      %p126 = pneg %p55
      %p127 = pneg %p52
      %p128 = pneg %p81
      %p129 = pneg %p78
      %s130 = smul.u32 32, %s13
      %p131 = scmp.lt.s32.totalorder %s130, 95
      %s132 = scalar_select %p131, %s130, 95
      %s133 = smul.addr %s132, 4
      %s134 = scalar_lea.vmem %s2, %s133
      %s135 = smul.u32 32, %s13
      %p136 = scmp.lt.s32.totalorder %s135, 95
      %s137 = scalar_select %p136, %s135, 95
      %s138 = smul.addr %s137, 4
      %s139 = scalar_lea.vmem %s0, %s138
      %s140 = smul.u32 32, %s13
      %s141 = smul.u32 32, %s13
      %p142 = scmp.lt.s32.totalorder %s141, 95
      %s143 = scalar_select %p142, %s141, 95
      %s144 = smul.addr %s143, 4
      %s145 = scalar_lea.vmem %s2, %s144
      %s146 = smul.u32 32, %s13
      %v147 = vld [vmem:[%s139] sm:$0xf]
      %v148 = vld [vmem:[%s139 + $0x4] sm:$0xf]
      %v149 = vld [vmem:[%s139 + $0x8] sm:$0xf]
      %v150 = vld [vmem:[%s139 + $0xc] sm:$0xf]
      %v151 = vld [vmem:[%s139 + $0x10] sm:$0xf]
      %v152 = vld [vmem:[%s139 + $0x14] sm:$0xf]
      %v153 = vld [vmem:[%s139 + $0x18] sm:$0xf]
      %v154 = vld [vmem:[%s139 + $0x1c] sm:$0xf]
      %v155 = vld [vmem:[%s139 + $0x20] sm:$0xf]
      %v156 = vld [vmem:[%s139 + $0x24] sm:$0xf]
      %v157 = vld [vmem:[%s139 + $0x28] sm:$0xf]
      %v158 = vld [vmem:[%s139 + $0x2c] sm:$0xf]
      %v159 = vld [vmem:[%s139 + $0x30] sm:$0xf]
      %v160 = vld [vmem:[%s139 + $0x34] sm:$0xf]
      %v161 = vld [vmem:[%s139 + $0x38] sm:$0xf]
      %v162 = vld [vmem:[%s139 + $0x3c] sm:$0xf]
      %v163 = vld [vmem:[%s139 + $0x40] sm:$0xf]
      %v164 = vld [vmem:[%s139 + $0x44] sm:$0xf]
      %v165 = vld [vmem:[%s139 + $0x48] sm:$0xf]
      %v166 = vld [vmem:[%s139 + $0x4c] sm:$0xf]
      %v167 = vld [vmem:[%s139 + $0x50] sm:$0xf]
      %v168 = vld [vmem:[%s139 + $0x54] sm:$0xf]
      %v169 = vld [vmem:[%s139 + $0x58] sm:$0xf]
      %v170 = vld [vmem:[%s139 + $0x5c] sm:$0xf]
      %v171 = vld [vmem:[%s139 + $0x60] sm:$0xf]
      %v172 = vld [vmem:[%s139 + $0x64] sm:$0xf]
      %v173 = vld [vmem:[%s139 + $0x68] sm:$0xf]
      %v174 = vld [vmem:[%s139 + $0x6c] sm:$0xf]
      %v175 = vld [vmem:[%s139 + $0x70] sm:$0xf]
      %v176 = vld [vmem:[%s139 + $0x74] sm:$0xf]
      %v177 = vld [vmem:[%s139 + $0x78] sm:$0xf]
      %v178 = vld [vmem:[%s139 + $0x7c] sm:$0xf]
      %v179 = vld [vmem:[%s1] sm:$0xf]
      %v180 = vld [vmem:[%s1 + $0x4] sm:$0xf]
      %v181 = vld [vmem:[%s1 + $0x8] sm:$0xf]
      %v182 = vld [vmem:[%s1 + $0xc] sm:$0xf]
      %v183 = vld [vmem:[%s1 + $0x10] sm:$0xf]
      %v184 = vld [vmem:[%s1 + $0x14] sm:$0xf]
      %v185 = vld [vmem:[%s1 + $0x18] sm:$0xf]
      %v186 = vld [vmem:[%s1 + $0x1c] sm:$0xf]
      %v187 = vld [vmem:[%s1 + $0x20] sm:$0xf]
      %v188 = vld [vmem:[%s1 + $0x24] sm:$0xf]
      %v189 = vld [vmem:[%s1 + $0x28] sm:$0xf]
      %v190 = vld [vmem:[%s1 + $0x2c] sm:$0xf]
      %v191 = vld [vmem:[%s1 + $0x30] sm:$0xf]
      %v192 = vld [vmem:[%s1 + $0x34] sm:$0xf]
      %v193 = vld [vmem:[%s1 + $0x38] sm:$0xf]
      %v194 = vld [vmem:[%s1 + $0x3c] sm:$0xf]
      %v227 = vunpack.c.l.b16 %v147
      %v228 = vunpack.c.l.b16 %v148
      %v229 = vunpack.c.l.b16 %v149
      %v230 = vunpack.c.l.b16 %v150
      %v231 = vunpack.c.l.b16 %v151
      %v232 = vunpack.c.l.b16 %v152
      %v233 = vunpack.c.l.b16 %v153
      %v234 = vunpack.c.l.b16 %v154
      %v235 = vunpack.c.l.b16 %v155
      %v236 = vunpack.c.l.b16 %v156
      %v237 = vunpack.c.l.b16 %v157
      %v238 = vunpack.c.l.b16 %v158
      %v239 = vunpack.c.l.b16 %v159
      %v240 = vunpack.c.l.b16 %v160
      %v241 = vunpack.c.l.b16 %v161
      %v242 = vunpack.c.l.b16 %v162
      %v243 = vunpack.c.l.b16 %v163
      %v244 = vunpack.c.l.b16 %v164
      %v245 = vunpack.c.l.b16 %v165
      %v246 = vunpack.c.l.b16 %v166
      %v247 = vunpack.c.l.b16 %v167
      %v248 = vunpack.c.l.b16 %v168
      %v249 = vunpack.c.l.b16 %v169
      %v250 = vunpack.c.l.b16 %v170
      %v251 = vunpack.c.l.b16 %v171
      %v252 = vunpack.c.l.b16 %v172
      %v253 = vunpack.c.l.b16 %v173
      %v254 = vunpack.c.l.b16 %v174
      %v255 = vunpack.c.l.b16 %v175
      %v256 = vunpack.c.l.b16 %v176
      %v257 = vunpack.c.l.b16 %v177
      %v258 = vunpack.c.l.b16 %v178
      %v259 = vpack.c.b16 %v228, %v227
      %v260 = vpack.c.b16 %v230, %v229
      %v261 = vpack.c.b16 %v232, %v231
      %v262 = vpack.c.b16 %v234, %v233
      %v263 = vpack.c.b16 %v236, %v235
      %v264 = vpack.c.b16 %v238, %v237
      %v265 = vpack.c.b16 %v240, %v239
      %v266 = vpack.c.b16 %v242, %v241
      %v267 = vpack.c.b16 %v244, %v243
      %v268 = vpack.c.b16 %v246, %v245
      %v269 = vpack.c.b16 %v248, %v247
      %v270 = vpack.c.b16 %v250, %v249
      %v271 = vpack.c.b16 %v252, %v251
      %v272 = vpack.c.b16 %v254, %v253
      %v273 = vpack.c.b16 %v256, %v255
      %v274 = vpack.c.b16 %v258, %v257
      %v307 = vunpack.c.l.b16 %v179
      %v308 = vunpack.c.l.b16 %v180
      %v309 = vunpack.c.l.b16 %v181
      %v310 = vunpack.c.l.b16 %v182
      %v311 = vunpack.c.l.b16 %v183
      %v312 = vunpack.c.l.b16 %v184
      %v313 = vunpack.c.l.b16 %v185
      %v314 = vunpack.c.l.b16 %v186
      %v315 = vunpack.c.l.b16 %v187
      %v316 = vunpack.c.l.b16 %v188
      %v317 = vunpack.c.l.b16 %v189
      %v318 = vunpack.c.l.b16 %v190
      %v319 = vunpack.c.l.b16 %v191
      %v320 = vunpack.c.l.b16 %v192
      %v321 = vunpack.c.l.b16 %v193
      %v322 = vunpack.c.l.b16 %v194
      %v323 = vpack.c.b16 %v308, %v307
      %v324 = vpack.c.b16 %v310, %v309
      %v325 = vpack.c.b16 %v312, %v311
      %v326 = vpack.c.b16 %v314, %v313
      %v327 = vpack.c.b16 %v316, %v315
      %v328 = vpack.c.b16 %v318, %v317
      %v329 = vpack.c.b16 %v320, %v319
      %v330 = vpack.c.b16 %v322, %v321
      %339 = vmatpush.bf16.msra.mxu0 %v330
      %340 = vmatpush.bf16.msra.mxu0 %v329
      %341 = vmatpush.bf16.msra.mxu0 %v328
      %342 = vmatpush.bf16.msra.mxu0 %v327
      %343 = vmatpush.bf16.msra.mxu0 %v326
      %344 = vmatpush.bf16.msra.mxu0 %v325
      %345 = vmatpush.bf16.msra.mxu0 %v324
      %346 = vmatpush.bf16.msra.mxu0 %v323
      %347 = vmatmul.bf16.gmra.mxu0 %v259
      %v348 = vpop.f32.mrf.mxu0
      %v349 = vadd.f32 0.0, %v348
      %v350 = vpop.f32.mrf.mxu0
      %v351 = vadd.f32 0.0, %v350
      %352 = vmatmul.bf16.gmra.mxu0 %v260
      %v353 = vpop.f32.mrf.mxu0
      %v354 = vadd.f32 0.0, %v353
      %v355 = vpop.f32.mrf.mxu0
      %v356 = vadd.f32 0.0, %v355
      %357 = vmatmul.bf16.gmra.mxu0 %v261
      %v358 = vpop.f32.mrf.mxu0
      %v359 = vadd.f32 0.0, %v358
      %v360 = vpop.f32.mrf.mxu0
      %v361 = vadd.f32 0.0, %v360
      %362 = vmatmul.bf16.gmra.mxu0 %v262
      %v363 = vpop.f32.mrf.mxu0
      %v364 = vadd.f32 0.0, %v363
      %v365 = vpop.f32.mrf.mxu0
      %v366 = vadd.f32 0.0, %v365
      %367 = vmatmul.bf16.gmra.mxu0 %v263
      %v368 = vpop.f32.mrf.mxu0
      %v369 = vadd.f32 0.0, %v368
      %v370 = vpop.f32.mrf.mxu0
      %v371 = vadd.f32 0.0, %v370
      %372 = vmatmul.bf16.gmra.mxu0 %v264
      %v373 = vpop.f32.mrf.mxu0
      %v374 = vadd.f32 0.0, %v373
      %v375 = vpop.f32.mrf.mxu0
      %v376 = vadd.f32 0.0, %v375
      %377 = vmatmul.bf16.gmra.mxu0 %v265
      %v378 = vpop.f32.mrf.mxu0
      %v379 = vadd.f32 0.0, %v378
      %v380 = vpop.f32.mrf.mxu0
      %v381 = vadd.f32 0.0, %v380
      %382 = vmatmul.bf16.gmra.mxu0 %v266
      %v383 = vpop.f32.mrf.mxu0
      %v384 = vadd.f32 0.0, %v383
      %v385 = vpop.f32.mrf.mxu0
      %v386 = vadd.f32 0.0, %v385
      %387 = vmatmul.bf16.gmra.mxu0 %v267
      %v388 = vpop.f32.mrf.mxu0
      %v389 = vadd.f32 0.0, %v388
      %v390 = vpop.f32.mrf.mxu0
      %v391 = vadd.f32 0.0, %v390
      %392 = vmatmul.bf16.gmra.mxu0 %v268
      %v393 = vpop.f32.mrf.mxu0
      %v394 = vadd.f32 0.0, %v393
      %v395 = vpop.f32.mrf.mxu0
      %v396 = vadd.f32 0.0, %v395
      %397 = vmatmul.bf16.gmra.mxu0 %v269
      %v398 = vpop.f32.mrf.mxu0
      %v399 = vadd.f32 0.0, %v398
      %v400 = vpop.f32.mrf.mxu0
      %v401 = vadd.f32 0.0, %v400
      %402 = vmatmul.bf16.gmra.mxu0 %v270
      %v403 = vpop.f32.mrf.mxu0
      %v404 = vadd.f32 0.0, %v403
      %v405 = vpop.f32.mrf.mxu0
      %v406 = vadd.f32 0.0, %v405
      %407 = vmatmul.bf16.gmra.mxu0 %v271
      %v408 = vpop.f32.mrf.mxu0
      %v409 = vadd.f32 0.0, %v408
      %v410 = vpop.f32.mrf.mxu0
      %v411 = vadd.f32 0.0, %v410
      %412 = vmatmul.bf16.gmra.mxu0 %v272
      %v413 = vpop.f32.mrf.mxu0
      %v414 = vadd.f32 0.0, %v413
      %v415 = vpop.f32.mrf.mxu0
      %v416 = vadd.f32 0.0, %v415
      %417 = vmatmul.bf16.gmra.mxu0 %v273
      %v418 = vpop.f32.mrf.mxu0
      %v419 = vadd.f32 0.0, %v418
      %v420 = vpop.f32.mrf.mxu0
      %v421 = vadd.f32 0.0, %v420
      %422 = vmatmul.bf16.gmra.mxu0 %v274
      %v423 = vpop.f32.mrf.mxu0
      %v424 = vadd.f32 0.0, %v423
      %v425 = vpop.f32.mrf.mxu0
      %v426 = vadd.f32 0.0, %v425
      %427 = vdwg.mxu0
      %v428 = vpack.c.bf16 %v349, %v349
      %v429 = vpack.c.bf16 %v351, %v351
      %v430 = vpack.c.bf16 %v354, %v354
      %v431 = vpack.c.bf16 %v356, %v356
      %v432 = vpack.c.bf16 %v359, %v359
      %v433 = vpack.c.bf16 %v361, %v361
      %v434 = vpack.c.bf16 %v364, %v364
      %v435 = vpack.c.bf16 %v366, %v366
      %v436 = vpack.c.bf16 %v369, %v369
      %v437 = vpack.c.bf16 %v371, %v371
      %v438 = vpack.c.bf16 %v374, %v374
      %v439 = vpack.c.bf16 %v376, %v376
      %v440 = vpack.c.bf16 %v379, %v379
      %v441 = vpack.c.bf16 %v381, %v381
      %v442 = vpack.c.bf16 %v384, %v384
      %v443 = vpack.c.bf16 %v386, %v386
      %v444 = vpack.c.bf16 %v389, %v389
      %v445 = vpack.c.bf16 %v391, %v391
      %v446 = vpack.c.bf16 %v394, %v394
      %v447 = vpack.c.bf16 %v396, %v396
      %v448 = vpack.c.bf16 %v399, %v399
      %v449 = vpack.c.bf16 %v401, %v401
      %v450 = vpack.c.bf16 %v404, %v404
      %v451 = vpack.c.bf16 %v406, %v406
      %v452 = vpack.c.bf16 %v409, %v409
      %v453 = vpack.c.bf16 %v411, %v411
      %v454 = vpack.c.bf16 %v414, %v414
      %v455 = vpack.c.bf16 %v416, %v416
      %v456 = vpack.c.bf16 %v419, %v419
      %v457 = vpack.c.bf16 %v421, %v421
      %v458 = vpack.c.bf16 %v424, %v424
      %v459 = vpack.c.bf16 %v426, %v426
      %vm460 = vcmask 519168
      %461 = vst.msk [vmem:[%s145] sm:$0xf] %vm460, %v428
      %462 = vst.msk [vmem:[%s145 + $0x4] sm:$0xf] %vm460, %v429
      %463 = vst.msk [vmem:[%s145 + $0x8] sm:$0xf] %vm460, %v430
      %464 = vst.msk [vmem:[%s145 + $0xc] sm:$0xf] %vm460, %v431
      %465 = vst.msk [vmem:[%s145 + $0x10] sm:$0xf] %vm460, %v432
      %466 = vst.msk [vmem:[%s145 + $0x14] sm:$0xf] %vm460, %v433
      %467 = vst.msk [vmem:[%s145 + $0x18] sm:$0xf] %vm460, %v434
      %468 = vst.msk [vmem:[%s145 + $0x1c] sm:$0xf] %vm460, %v435
      %469 = vst.msk [vmem:[%s145 + $0x20] sm:$0xf] %vm460, %v436
      %470 = vst.msk [vmem:[%s145 + $0x24] sm:$0xf] %vm460, %v437
      %471 = vst.msk [vmem:[%s145 + $0x28] sm:$0xf] %vm460, %v438
      %472 = vst.msk [vmem:[%s145 + $0x2c] sm:$0xf] %vm460, %v439
      %473 = vst.msk [vmem:[%s145 + $0x30] sm:$0xf] %vm460, %v440
      %474 = vst.msk [vmem:[%s145 + $0x34] sm:$0xf] %vm460, %v441
      %475 = vst.msk [vmem:[%s145 + $0x38] sm:$0xf] %vm460, %v442
      %476 = vst.msk [vmem:[%s145 + $0x3c] sm:$0xf] %vm460, %v443
      %477 = vst.msk [vmem:[%s145 + $0x40] sm:$0xf] %vm460, %v444
      %478 = vst.msk [vmem:[%s145 + $0x44] sm:$0xf] %vm460, %v445
      %479 = vst.msk [vmem:[%s145 + $0x48] sm:$0xf] %vm460, %v446
      %480 = vst.msk [vmem:[%s145 + $0x4c] sm:$0xf] %vm460, %v447
      %481 = vst.msk [vmem:[%s145 + $0x50] sm:$0xf] %vm460, %v448
      %482 = vst.msk [vmem:[%s145 + $0x54] sm:$0xf] %vm460, %v449
      %483 = vst.msk [vmem:[%s145 + $0x58] sm:$0xf] %vm460, %v450
      %484 = vst.msk [vmem:[%s145 + $0x5c] sm:$0xf] %vm460, %v451
      %485 = vst.msk [vmem:[%s145 + $0x60] sm:$0xf] %vm460, %v452
      %486 = vst.msk [vmem:[%s145 + $0x64] sm:$0xf] %vm460, %v453
      %487 = vst.msk [vmem:[%s145 + $0x68] sm:$0xf] %vm460, %v454
      %488 = vst.msk [vmem:[%s145 + $0x6c] sm:$0xf] %vm460, %v455
      %489 = vst.msk [vmem:[%s145 + $0x70] sm:$0xf] %vm460, %v456
      %490 = vst.msk [vmem:[%s145 + $0x74] sm:$0xf] %vm460, %v457
      %491 = vst.msk [vmem:[%s145 + $0x78] sm:$0xf] %vm460, %v458
      %492 = vst.msk [vmem:[%s145 + $0x7c] sm:$0xf] %vm460, %v459
      %s493 = smul.u32 32, %s13
      %p494 = scmp.lt.s32.totalorder %s493, 95
      %s495 = scalar_select %p494, %s493, 95
      %s496 = smul.addr %s495, 4
      %s497 = scalar_lea.vmem %s2, %s496
      // Predicated region
      $region29: #{generator_forward.22} parent=27 // pred_check
        %p498 = pneg %p78
      $region30: #{generator_forward.22} parent=27 // pred_check_branch
        %500 = sbr.rel (%p498) target = $region32
      $region31: #{generator_forward.22} parent=27 // pred_region
        %s501 = smul.u32 32, %s13
      $region32: #{generator_forward.22} parent=27 // pred_fallthru
        _
    $region28: #{generator_forward.22} parent=5 // pred_fallthru
      _
    %p502 = scmp.le.s32.totalorder 2, %s8
    // Predicated region
    $region33: #{generator_forward.22} parent=5 // pred_check
      %p503 = pneg %p502
    $region34: #{generator_forward.22} parent=5 // pred_check_branch
      %505 = sbr.rel (%p503) target = $region36
    $region35: #{generator_forward.22} parent=5 // pred_region
      %s506 = ssub.s32 %s8, 2
      // Predicated region
      $region37: #{generator_forward.22} parent=35 // pred_check
        %p507 = pneg %p84
      $region38: #{generator_forward.22} parent=35 // pred_check_branch
        %509 = sbr.rel (%p507) target = $region40
      $region39: #{generator_forward.22} parent=35 // pred_region
        %s510 = smul.u32 32, %s14
        %p511 = scmp.lt.s32.totalorder %s510, 95
        %s512 = scalar_select %p511, %s510, 95
        %s513 = smul.addr %s512, 4
        %s514 = scalar_lea.vmem %s2, %s513
      $region40: #{generator_forward.22} parent=35 // pred_fallthru
        _
    $region36: #{generator_forward.22} parent=5 // pred_fallthru
      _
  $region6: #{generator_forward.22} parent=0 // loop_footer
    %s12 = sadd.s32 1, %s8
  $region7: #{generator_forward.22} parent=0 // loop_footer_branch
    %7 = sbr.rel target = $region3
  $region8: #{generator_forward.22} parent=0 // loop_exit
    _

// kernel: tile.78
$region0: #{tile.78}
  #allocation0 [shape = 's32[1]{0}', space=sflag, size = 0x4, scoped, tag = 'scoped memory for tile.78']
  %s0 = inlined_call_operand.vmem [shape: f32[16], index: 0, kind: input, shape index: {}]
  %s1 = inlined_call_operand.vmem [shape: f32[32,16], index: 1, kind: output, shape index: {}]
  // Predicated region
  $region2: #{tile.78} parent=0 // pred_check
    _
  $region3: #{tile.78} parent=0 // pred_check_branch
    %3 = sbr.rel (0) target = $region5
  $region4: #{tile.78} parent=0 // pred_region
    _
  $region5: #{tile.78} parent=0 // pred_fallthru
    _
  %v4 = vld [vmem:[%s0] ss:$0 sm:$0xff]
  %5 = vst [vmem:[%s1] sm:$0xff] %v4
  %s6 = scalar_lea.vmem %s1, 8
  %7 = vst [vmem:[%s6] sm:$0xff] %v4
  %s8 = scalar_lea.vmem %s1, 16
  %9 = vst [vmem:[%s8] sm:$0xff] %v4
  %s10 = scalar_lea.vmem %s1, 24
  %11 = vst [vmem:[%s10] sm:$0xff] %v4

// kernel: tile.79
$region0: #{tile.79}
  %s0 = inlined_call_operand.vmem [shape: f32[32,16], index: 0, kind: input, shape index: {}]
  %s1 = inlined_call_operand.vmem [shape: f32[1,512], index: 1, kind: output, shape index: {}]
  $region1: #{tile.79} parent=0
    #allocation0 [shape = 'u8[16384]{0}', space=vmem, size = 0x4000, scoped, tag = 'scoped mem for output reshape']
    %v2 = vld [vmem:[%s0] ss:$8 sm:$0xf]
    %vm3 = vcmask 130048
    %4 = vst.msk [vmem:[#allocation0] ss:$8 sm:$0xf] %vm3, %v2
    %s5 = scalar_lea.vmem %s0, 7
    %v6 = vld [vmem:[%s5] ss:$8 sm:$0xf]
    %7 = vrot.lane.b32.xlu0 %v6, 112
    %v8 = vpop.permute.xlu0 %7
    %vm9 = vcmask 1048448
    %10 = vst.msk [vmem:[#allocation0] ss:$8 sm:$0xf] %vm9, %v8
    %s11 = scalar_lea.vmem %s0, 6
    %v12 = vld [vmem:[%s11] ss:$8 sm:$0xf]
    %13 = vrot.lane.b32.xlu0 %v12, 96
    %v14 = vpop.permute.xlu0 %13
    %vm15 = vcmask 917248
    %16 = vst.msk [vmem:[#allocation0] ss:$8 sm:$0xf] %vm15, %v14
    %s17 = scalar_lea.vmem %s0, 5
    %v18 = vld [vmem:[%s17] ss:$8 sm:$0xf]
    %19 = vrot.lane.b32.xlu0 %v18, 80
    %v20 = vpop.permute.xlu0 %19
    %vm21 = vcmask 786048
    %22 = vst.msk [vmem:[#allocation0] ss:$8 sm:$0xf] %vm21, %v20
    %s23 = scalar_lea.vmem %s0, 4
    %v24 = vld [vmem:[%s23] ss:$8 sm:$0xf]
    %25 = vrot.lane.b32.xlu0 %v24, 64
    %v26 = vpop.permute.xlu0 %25
    %vm27 = vcmask 654848
    %28 = vst.msk [vmem:[#allocation0] ss:$8 sm:$0xf] %vm27, %v26
    %s29 = scalar_lea.vmem %s0, 3
    %v30 = vld [vmem:[%s29] ss:$8 sm:$0xf]
    %31 = vrot.lane.b32.xlu0 %v30, 48
    %v32 = vpop.permute.xlu0 %31
    %vm33 = vcmask 523648
    %34 = vst.msk [vmem:[#allocation0] ss:$8 sm:$0xf] %vm33, %v32
    %s35 = scalar_lea.vmem %s0, 2
    %v36 = vld [vmem:[%s35] ss:$8 sm:$0xf]
    %37 = vrot.lane.b32.xlu0 %v36, 32
    %v38 = vpop.permute.xlu0 %37
    %vm39 = vcmask 392448
    %40 = vst.msk [vmem:[#allocation0] ss:$8 sm:$0xf] %vm39, %v38
    %s41 = scalar_lea.vmem %s0, 1
    %v42 = vld [vmem:[%s41] ss:$8 sm:$0xf]
    %43 = vrot.lane.b32.xlu0 %v42, 16
    %v44 = vpop.permute.xlu0 %43
    %vm45 = vcmask 261248
    %46 = vst.msk [vmem:[#allocation0] ss:$8 sm:$0xf] %vm45, %v44
    %s48 = ssub.s32 2, 1
    %v49 = vld [vmem:[#allocation0] sm:%s48]
    %s51 = ssub.s32 2, 1
    %52 = vst [vmem:[%s1] sm:%s51] %v49
    %s53 = scalar_lea.vmem [#allocation0], 8
    %v54 = vld [vmem:[%s53] sm:%s48]
    %s56 = ssub.s32 2, 1
    %s57 = scalar_lea.vmem %s1, 1
    %58 = vst [vmem:[%s57] sm:%s56] %v54
    %s59 = scalar_lea.vmem [#allocation0], 16
    %v60 = vld [vmem:[%s59] sm:%s48]
    %s62 = ssub.s32 2, 1
    %s63 = scalar_lea.vmem %s1, 2
    %64 = vst [vmem:[%s63] sm:%s62] %v60
    %s65 = scalar_lea.vmem [#allocation0], 24
    %v66 = vld [vmem:[%s65] sm:%s48]
    %s68 = ssub.s32 2, 1
    %s69 = scalar_lea.vmem %s1, 3
    %70 = vst [vmem:[%s69] sm:%s68] %v66

// kernel: generator_forward.23
$region0: #{generator_forward.23}
  #allocation0 [shape = 'u32[]', space=smem, size = 0x4, offset = 0x4, fixed_abs, tag = 'smem constant byte address 0x4 - core index']
  #allocation1 [shape = 'u32[72,128]{1,0:T(1,128)}', space=vmem, size = 0x9000, scoped, tag = 'internal scratch']
  %s0 = inlined_call_operand.vmem [shape: bf16[64,512], index: 0, kind: input, shape index: {}]
  %s1 = inlined_call_operand.vmem [shape: f32[1,512], index: 1, kind: output, shape index: {0}]
  %s2 = inlined_call_operand.vmem [shape: f32[1,512], index: 2, kind: output, shape index: {1}]
  %3 = xla_tuple %s1, %s2
  %s4 = sld [smem:[#allocation0]]
  $region26: #{generator_forward.23} parent=0
    _
  %s6 = ssub.s32 1, %s4
  %s7 = scalar_select 0, %s6, %s4
  // Predicated region
  $region2: #{generator_forward.23} parent=0 // pred_check
    _
  $region3: #{generator_forward.23} parent=0 // pred_check_branch
    %9 = sbr.rel (0) target = $region5
  $region4: #{generator_forward.23} parent=0 // pred_region
    _
  $region5: #{generator_forward.23} parent=0 // pred_fallthru
    _
  %p10 = scmp.eq.s32.totalorder 0, 0
  // Predicated region
  $region6: #{generator_forward.23} parent=0 // pred_check
    %p11 = pneg %p10
  $region7: #{generator_forward.23} parent=0 // pred_check_branch
    %13 = sbr.rel (%p11) target = $region9
  $region8: #{generator_forward.23} parent=0 // pred_region
    %v14 = vlaneseq
    %vm15 = vcmp.ge.s32.totalorder %v14, 0
    %vm16 = vcmp.lt.s32.totalorder %v14, 512
    %vm17 = vmand %vm15, %vm16
    %18 = vst.msk [vmem:[%s1] sm:$0xf] %vm17, 0.0
    %19 = vst.msk [vmem:[%s2] sm:$0xf] %vm17, 0.0
  $region9: #{generator_forward.23} parent=0 // pred_fallthru
    _
  %v20 = vld [vmem:[%s0] sm:$0xff]
  %v21 = vld [vmem:[%s0 + $0x8] sm:$0xff]
  %v22 = vld [vmem:[%s0 + $0x10] sm:$0xff]
  %v23 = vld [vmem:[%s0 + $0x18] sm:$0xff]
  %v24 = vld [vmem:[%s0 + $0x20] sm:$0xff]
  %v25 = vld [vmem:[%s0 + $0x28] sm:$0xff]
  %v26 = vld [vmem:[%s0 + $0x30] sm:$0xff]
  %v27 = vld [vmem:[%s0 + $0x38] sm:$0xff]
  %v28 = vld [vmem:[%s0 + $0x40] sm:$0xff]
  %v29 = vld [vmem:[%s0 + $0x48] sm:$0xff]
  %v30 = vld [vmem:[%s0 + $0x50] sm:$0xff]
  %v31 = vld [vmem:[%s0 + $0x58] sm:$0xff]
  %v32 = vld [vmem:[%s0 + $0x60] sm:$0xff]
  %v33 = vld [vmem:[%s0 + $0x68] sm:$0xff]
  %v34 = vld [vmem:[%s0 + $0x70] sm:$0xff]
  %v35 = vld [vmem:[%s0 + $0x78] sm:$0xff]
  %v36 = vunpack.c.l.bf16 %v20
  %v37 = vunpack.c.h.bf16 %v20
  %v38 = vunpack.c.l.bf16 %v21
  %v39 = vunpack.c.h.bf16 %v21
  %v40 = vunpack.c.l.bf16 %v22
  %v41 = vunpack.c.h.bf16 %v22
  %v42 = vunpack.c.l.bf16 %v23
  %v43 = vunpack.c.h.bf16 %v23
  %v44 = vunpack.c.l.bf16 %v24
  %v45 = vunpack.c.h.bf16 %v24
  %v46 = vunpack.c.l.bf16 %v25
  %v47 = vunpack.c.h.bf16 %v25
  %v48 = vunpack.c.l.bf16 %v26
  %v49 = vunpack.c.h.bf16 %v26
  %v50 = vunpack.c.l.bf16 %v27
  %v51 = vunpack.c.h.bf16 %v27
  %v52 = vunpack.c.l.bf16 %v28
  %v53 = vunpack.c.h.bf16 %v28
  %v54 = vunpack.c.l.bf16 %v29
  %v55 = vunpack.c.h.bf16 %v29
  %v56 = vunpack.c.l.bf16 %v30
  %v57 = vunpack.c.h.bf16 %v30
  %v58 = vunpack.c.l.bf16 %v31
  %v59 = vunpack.c.h.bf16 %v31
  %v60 = vunpack.c.l.bf16 %v32
  %v61 = vunpack.c.h.bf16 %v32
  %v62 = vunpack.c.l.bf16 %v33
  %v63 = vunpack.c.h.bf16 %v33
  %v64 = vunpack.c.l.bf16 %v34
  %v65 = vunpack.c.h.bf16 %v34
  %v66 = vunpack.c.l.bf16 %v35
  %v67 = vunpack.c.h.bf16 %v35
  %v68 = vld [vmem:[%s1] sm:$0xf]
  %v69 = vadd.f32 %v36, %v40
  %v70 = vadd.f32 %v69, %v44
  %v71 = vadd.f32 %v70, %v48
  %v72 = vadd.f32 %v71, %v52
  %v73 = vadd.f32 %v72, %v56
  %v74 = vadd.f32 %v73, %v60
  %v75 = vadd.f32 %v74, %v64
  %v76 = vrot.slane %v75, 4
  %v77 = vadd.f32 %v75, %v76
  %v78 = vrot.slane %v77, 2
  %v79 = vadd.f32 %v77, %v78
  %v80 = vrot.slane %v79, 1
  %v81 = vadd.f32 %v79, %v80
  %v82 = vadd.f32 %v37, %v41
  %v83 = vadd.f32 %v82, %v45
  %v84 = vadd.f32 %v83, %v49
  %v85 = vadd.f32 %v84, %v53
  %v86 = vadd.f32 %v85, %v57
  %v87 = vadd.f32 %v86, %v61
  %v88 = vadd.f32 %v87, %v65
  %v89 = vrot.slane %v88, 4
  %v90 = vadd.f32 %v88, %v89
  %v91 = vrot.slane %v90, 2
  %v92 = vadd.f32 %v90, %v91
  %v93 = vrot.slane %v92, 1
  %v94 = vadd.f32 %v92, %v93
  %v95 = vadd.f32 %v38, %v42
  %v96 = vadd.f32 %v95, %v46
  %v97 = vadd.f32 %v96, %v50
  %v98 = vadd.f32 %v97, %v54
  %v99 = vadd.f32 %v98, %v58
  %v100 = vadd.f32 %v99, %v62
  %v101 = vadd.f32 %v100, %v66
  %v102 = vrot.slane %v101, 4
  %v103 = vadd.f32 %v101, %v102
  %v104 = vrot.slane %v103, 2
  %v105 = vadd.f32 %v103, %v104
  %v106 = vrot.slane %v105, 1
  %v107 = vadd.f32 %v105, %v106
  %v108 = vadd.f32 %v39, %v43
  %v109 = vadd.f32 %v108, %v47
  %v110 = vadd.f32 %v109, %v51
  %v111 = vadd.f32 %v110, %v55
  %v112 = vadd.f32 %v111, %v59
  %v113 = vadd.f32 %v112, %v63
  %v114 = vadd.f32 %v113, %v67
  %v115 = vrot.slane %v114, 4
  %v116 = vadd.f32 %v114, %v115
  %v117 = vrot.slane %v116, 2
  %v118 = vadd.f32 %v116, %v117
  %v119 = vrot.slane %v118, 1
  %v120 = vadd.f32 %v118, %v119
  %v125 = vrot.slane %v94, 7
  %v126 = vrot.slane %v107, 6
  %v127 = vrot.slane %v120, 5
  %vm128 = vcmask 1040384
  %v129 = vsel %vm128, %v81, %v125
  %vm130 = vcmask 1042434
  %v131 = vsel %vm130, %v126, %v127
  %vm132 = vcmask 1041408
  %v133 = vsel %vm132, %v129, %v131
  %v135 = vadd.f32 %v68, %v133
  %v136 = vlaneseq
  %vm137 = vcmp.ge.s32.totalorder %v136, 0
  %vm138 = vcmp.lt.s32.totalorder %v136, 512
  %vm139 = vmand %vm137, %vm138
  %140 = vst.msk [vmem:[%s1] sm:$0xf] %vm139, %v135
  %v141 = vld [vmem:[%s2] sm:$0xf]
  %v142 = vmul.f32 %v36, %v36
  %v143 = vmul.f32 %v37, %v37
  %v144 = vmul.f32 %v38, %v38
  %v145 = vmul.f32 %v39, %v39
  %v146 = vmul.f32 %v40, %v40
  %v147 = vmul.f32 %v41, %v41
  %v148 = vmul.f32 %v42, %v42
  %v149 = vmul.f32 %v43, %v43
  %v150 = vmul.f32 %v44, %v44
  %v151 = vmul.f32 %v45, %v45
  %v152 = vmul.f32 %v46, %v46
  %v153 = vmul.f32 %v47, %v47
  %v154 = vmul.f32 %v48, %v48
  %v155 = vmul.f32 %v49, %v49
  %v156 = vmul.f32 %v50, %v50
  %v157 = vmul.f32 %v51, %v51
  %v158 = vmul.f32 %v52, %v52
  %v159 = vmul.f32 %v53, %v53
  %v160 = vmul.f32 %v54, %v54
  %v161 = vmul.f32 %v55, %v55
  %v162 = vmul.f32 %v56, %v56
  %v163 = vmul.f32 %v57, %v57
  %v164 = vmul.f32 %v58, %v58
  %v165 = vmul.f32 %v59, %v59
  %v166 = vmul.f32 %v60, %v60
  %v167 = vmul.f32 %v61, %v61
  %v168 = vmul.f32 %v62, %v62
  %v169 = vmul.f32 %v63, %v63
  %v170 = vmul.f32 %v64, %v64
  %v171 = vmul.f32 %v65, %v65
  %v172 = vmul.f32 %v66, %v66
  %v173 = vmul.f32 %v67, %v67
  %v174 = vadd.f32 %v142, %v146
  %v175 = vadd.f32 %v174, %v150
  %v176 = vadd.f32 %v175, %v154
  %v177 = vadd.f32 %v176, %v158
  %v178 = vadd.f32 %v177, %v162
  %v179 = vadd.f32 %v178, %v166
  %v180 = vadd.f32 %v179, %v170
  %v181 = vrot.slane %v180, 4
  %v182 = vadd.f32 %v180, %v181
  %v183 = vrot.slane %v182, 2
  %v184 = vadd.f32 %v182, %v183
  %v185 = vrot.slane %v184, 1
  %v186 = vadd.f32 %v184, %v185
  %v187 = vadd.f32 %v143, %v147
  %v188 = vadd.f32 %v187, %v151
  %v189 = vadd.f32 %v188, %v155
  %v190 = vadd.f32 %v189, %v159
  %v191 = vadd.f32 %v190, %v163
  %v192 = vadd.f32 %v191, %v167
  %v193 = vadd.f32 %v192, %v171
  %v194 = vrot.slane %v193, 4
  %v195 = vadd.f32 %v193, %v194
  %v196 = vrot.slane %v195, 2
  %v197 = vadd.f32 %v195, %v196
  %v198 = vrot.slane %v197, 1
  %v199 = vadd.f32 %v197, %v198
  %v200 = vadd.f32 %v144, %v148
  %v201 = vadd.f32 %v200, %v152
  %v202 = vadd.f32 %v201, %v156
  %v203 = vadd.f32 %v202, %v160
  %v204 = vadd.f32 %v203, %v164
  %v205 = vadd.f32 %v204, %v168
  %v206 = vadd.f32 %v205, %v172
  %v207 = vrot.slane %v206, 4
  %v208 = vadd.f32 %v206, %v207
  %v209 = vrot.slane %v208, 2
  %v210 = vadd.f32 %v208, %v209
  %v211 = vrot.slane %v210, 1
  %v212 = vadd.f32 %v210, %v211
  %v213 = vadd.f32 %v145, %v149
  %v214 = vadd.f32 %v213, %v153
  %v215 = vadd.f32 %v214, %v157
  %v216 = vadd.f32 %v215, %v161
  %v217 = vadd.f32 %v216, %v165
  %v218 = vadd.f32 %v217, %v169
  %v219 = vadd.f32 %v218, %v173
  %v220 = vrot.slane %v219, 4
  %v221 = vadd.f32 %v219, %v220
  %v222 = vrot.slane %v221, 2
  %v223 = vadd.f32 %v221, %v222
  %v224 = vrot.slane %v223, 1
  %v225 = vadd.f32 %v223, %v224
  %v230 = vrot.slane %v199, 7
  %v231 = vrot.slane %v212, 6
  %v232 = vrot.slane %v225, 5
  %v233 = vsel %vm128, %v186, %v230
  %v234 = vsel %vm130, %v231, %v232
  %v235 = vsel %vm132, %v233, %v234
  %v237 = vadd.f32 %v141, %v235
  %238 = vst.msk [vmem:[%s2] sm:$0xf] %vm139, %v237
  // Predicated region
  $region10: #{generator_forward.23} parent=0 // pred_check
    _
  $region11: #{generator_forward.23} parent=0 // pred_check_branch
    %240 = sbr.rel (0) target = $region13
  $region12: #{generator_forward.23} parent=0 // pred_region
    _
  $region13: #{generator_forward.23} parent=0 // pred_fallthru
    _
  // Predicated region
  $region14: #{generator_forward.23} parent=0 // pred_check
    _
  $region15: #{generator_forward.23} parent=0 // pred_check_branch
    %242 = sbr.rel (0) target = $region17
  $region16: #{generator_forward.23} parent=0 // pred_region
    _
  $region17: #{generator_forward.23} parent=0 // pred_fallthru
    _
  // Predicated region
  $region18: #{generator_forward.23} parent=0 // pred_check
    _
  $region19: #{generator_forward.23} parent=0 // pred_check_branch
    %244 = sbr.rel (0) target = $region21
  $region20: #{generator_forward.23} parent=0 // pred_region
    _
  $region21: #{generator_forward.23} parent=0 // pred_fallthru
    _
  // Predicated region
  $region22: #{generator_forward.23} parent=0 // pred_check
    _
  $region23: #{generator_forward.23} parent=0 // pred_check_branch
    %246 = sbr.rel (0) target = $region25
  $region24: #{generator_forward.23} parent=0 // pred_region
    _
  $region25: #{generator_forward.23} parent=0 // pred_fallthru
    _

// kernel: generator_forward.24
$region0: #{generator_forward.24}
  #allocation0 [shape = 'u32[]', space=smem, size = 0x4, offset = 0x4, fixed_abs, tag = 'smem constant byte address 0x4 - core index']
  #allocation1 [shape = 'u32[72,128]{1,0:T(1,128)}', space=vmem, size = 0x9000, scoped, tag = 'internal scratch']
  %s0 = inlined_call_operand.vmem [shape: bf16[64,512], index: 0, kind: input, shape index: {}]
  %s1 = inlined_call_operand.vmem [shape: f32[1,512], index: 1, kind: input, shape index: {}]
  %s2 = inlined_call_operand.vmem [shape: f32[1,512], index: 2, kind: input, shape index: {}]
  %s3 = inlined_call_operand.vmem [shape: bf16[64,512], index: 3, kind: output, shape index: {}]
  %s4 = sld [smem:[#allocation0]]
  $region22: #{generator_forward.24} parent=0
    _
  %s6 = ssub.s32 1, %s4
  %s7 = scalar_select 0, %s6, %s4
  // Predicated region
  $region2: #{generator_forward.24} parent=0 // pred_check
    _
  $region3: #{generator_forward.24} parent=0 // pred_check_branch
    %9 = sbr.rel (0) target = $region5
  $region4: #{generator_forward.24} parent=0 // pred_region
    _
  $region5: #{generator_forward.24} parent=0 // pred_fallthru
    _
  // Predicated region
  $region6: #{generator_forward.24} parent=0 // pred_check
    _
  $region7: #{generator_forward.24} parent=0 // pred_check_branch
    %11 = sbr.rel (0) target = $region9
  $region8: #{generator_forward.24} parent=0 // pred_region
    _
  $region9: #{generator_forward.24} parent=0 // pred_fallthru
    _
  // Predicated region
  $region10: #{generator_forward.24} parent=0 // pred_check
    _
  $region11: #{generator_forward.24} parent=0 // pred_check_branch
    %13 = sbr.rel (0) target = $region13
  $region12: #{generator_forward.24} parent=0 // pred_region
    _
  $region13: #{generator_forward.24} parent=0 // pred_fallthru
    _
  %v14 = vld [vmem:[%s0] sm:$0xff]
  %v15 = vld [vmem:[%s0 + $0x8] sm:$0xff]
  %v16 = vld [vmem:[%s0 + $0x10] sm:$0xff]
  %v17 = vld [vmem:[%s0 + $0x18] sm:$0xff]
  %v18 = vld [vmem:[%s0 + $0x20] sm:$0xff]
  %v19 = vld [vmem:[%s0 + $0x28] sm:$0xff]
  %v20 = vld [vmem:[%s0 + $0x30] sm:$0xff]
  %v21 = vld [vmem:[%s0 + $0x38] sm:$0xff]
  %v22 = vld [vmem:[%s0 + $0x40] sm:$0xff]
  %v23 = vld [vmem:[%s0 + $0x48] sm:$0xff]
  %v24 = vld [vmem:[%s0 + $0x50] sm:$0xff]
  %v25 = vld [vmem:[%s0 + $0x58] sm:$0xff]
  %v26 = vld [vmem:[%s0 + $0x60] sm:$0xff]
  %v27 = vld [vmem:[%s0 + $0x68] sm:$0xff]
  %v28 = vld [vmem:[%s0 + $0x70] sm:$0xff]
  %v29 = vld [vmem:[%s0 + $0x78] sm:$0xff]
  %v30 = vunpack.c.l.bf16 %v14
  %v31 = vunpack.c.h.bf16 %v14
  %v32 = vunpack.c.l.bf16 %v15
  %v33 = vunpack.c.h.bf16 %v15
  %v34 = vunpack.c.l.bf16 %v16
  %v35 = vunpack.c.h.bf16 %v16
  %v36 = vunpack.c.l.bf16 %v17
  %v37 = vunpack.c.h.bf16 %v17
  %v38 = vunpack.c.l.bf16 %v18
  %v39 = vunpack.c.h.bf16 %v18
  %v40 = vunpack.c.l.bf16 %v19
  %v41 = vunpack.c.h.bf16 %v19
  %v42 = vunpack.c.l.bf16 %v20
  %v43 = vunpack.c.h.bf16 %v20
  %v44 = vunpack.c.l.bf16 %v21
  %v45 = vunpack.c.h.bf16 %v21
  %v46 = vunpack.c.l.bf16 %v22
  %v47 = vunpack.c.h.bf16 %v22
  %v48 = vunpack.c.l.bf16 %v23
  %v49 = vunpack.c.h.bf16 %v23
  %v50 = vunpack.c.l.bf16 %v24
  %v51 = vunpack.c.h.bf16 %v24
  %v52 = vunpack.c.l.bf16 %v25
  %v53 = vunpack.c.h.bf16 %v25
  %v54 = vunpack.c.l.bf16 %v26
  %v55 = vunpack.c.h.bf16 %v26
  %v56 = vunpack.c.l.bf16 %v27
  %v57 = vunpack.c.h.bf16 %v27
  %v58 = vunpack.c.l.bf16 %v28
  %v59 = vunpack.c.h.bf16 %v28
  %v60 = vunpack.c.l.bf16 %v29
  %v61 = vunpack.c.h.bf16 %v29
  %v62 = vld [vmem:[%s1] sm:$0xf]
  %v64 = vperm.slane %v62, 0
  %v65 = vperm.slane %v62, 1
  %v66 = vperm.slane %v62, 2
  %v67 = vperm.slane %v62, 3
  %v72 = vmul.f32 %v30, %v64
  %v73 = vmul.f32 %v31, %v65
  %v74 = vmul.f32 %v32, %v66
  %v75 = vmul.f32 %v33, %v67
  %v76 = vmul.f32 %v34, %v64
  %v77 = vmul.f32 %v35, %v65
  %v78 = vmul.f32 %v36, %v66
  %v79 = vmul.f32 %v37, %v67
  %v80 = vmul.f32 %v38, %v64
  %v81 = vmul.f32 %v39, %v65
  %v82 = vmul.f32 %v40, %v66
  %v83 = vmul.f32 %v41, %v67
  %v84 = vmul.f32 %v42, %v64
  %v85 = vmul.f32 %v43, %v65
  %v86 = vmul.f32 %v44, %v66
  %v87 = vmul.f32 %v45, %v67
  %v88 = vmul.f32 %v46, %v64
  %v89 = vmul.f32 %v47, %v65
  %v90 = vmul.f32 %v48, %v66
  %v91 = vmul.f32 %v49, %v67
  %v92 = vmul.f32 %v50, %v64
  %v93 = vmul.f32 %v51, %v65
  %v94 = vmul.f32 %v52, %v66
  %v95 = vmul.f32 %v53, %v67
  %v96 = vmul.f32 %v54, %v64
  %v97 = vmul.f32 %v55, %v65
  %v98 = vmul.f32 %v56, %v66
  %v99 = vmul.f32 %v57, %v67
  %v100 = vmul.f32 %v58, %v64
  %v101 = vmul.f32 %v59, %v65
  %v102 = vmul.f32 %v60, %v66
  %v103 = vmul.f32 %v61, %v67
  %v104 = vld [vmem:[%s2] sm:$0xf]
  %v106 = vperm.slane %v104, 0
  %v107 = vperm.slane %v104, 1
  %v108 = vperm.slane %v104, 2
  %v109 = vperm.slane %v104, 3
  %v114 = vadd.f32 %v72, %v106
  %v115 = vadd.f32 %v73, %v107
  %v116 = vadd.f32 %v74, %v108
  %v117 = vadd.f32 %v75, %v109
  %v118 = vadd.f32 %v76, %v106
  %v119 = vadd.f32 %v77, %v107
  %v120 = vadd.f32 %v78, %v108
  %v121 = vadd.f32 %v79, %v109
  %v122 = vadd.f32 %v80, %v106
  %v123 = vadd.f32 %v81, %v107
  %v124 = vadd.f32 %v82, %v108
  %v125 = vadd.f32 %v83, %v109
  %v126 = vadd.f32 %v84, %v106
  %v127 = vadd.f32 %v85, %v107
  %v128 = vadd.f32 %v86, %v108
  %v129 = vadd.f32 %v87, %v109
  %v130 = vadd.f32 %v88, %v106
  %v131 = vadd.f32 %v89, %v107
  %v132 = vadd.f32 %v90, %v108
  %v133 = vadd.f32 %v91, %v109
  %v134 = vadd.f32 %v92, %v106
  %v135 = vadd.f32 %v93, %v107
  %v136 = vadd.f32 %v94, %v108
  %v137 = vadd.f32 %v95, %v109
  %v138 = vadd.f32 %v96, %v106
  %v139 = vadd.f32 %v97, %v107
  %v140 = vadd.f32 %v98, %v108
  %v141 = vadd.f32 %v99, %v109
  %v142 = vadd.f32 %v100, %v106
  %v143 = vadd.f32 %v101, %v107
  %v144 = vadd.f32 %v102, %v108
  %v145 = vadd.f32 %v103, %v109
  %v146 = vmax.f32 %v114, 0.0
  %v147 = vmax.f32 %v115, 0.0
  %v148 = vmax.f32 %v116, 0.0
  %v149 = vmax.f32 %v117, 0.0
  %v150 = vmax.f32 %v118, 0.0
  %v151 = vmax.f32 %v119, 0.0
  %v152 = vmax.f32 %v120, 0.0
  %v153 = vmax.f32 %v121, 0.0
  %v154 = vmax.f32 %v122, 0.0
  %v155 = vmax.f32 %v123, 0.0
  %v156 = vmax.f32 %v124, 0.0
  %v157 = vmax.f32 %v125, 0.0
  %v158 = vmax.f32 %v126, 0.0
  %v159 = vmax.f32 %v127, 0.0
  %v160 = vmax.f32 %v128, 0.0
  %v161 = vmax.f32 %v129, 0.0
  %v162 = vmax.f32 %v130, 0.0
  %v163 = vmax.f32 %v131, 0.0
  %v164 = vmax.f32 %v132, 0.0
  %v165 = vmax.f32 %v133, 0.0
  %v166 = vmax.f32 %v134, 0.0
  %v167 = vmax.f32 %v135, 0.0
  %v168 = vmax.f32 %v136, 0.0
  %v169 = vmax.f32 %v137, 0.0
  %v170 = vmax.f32 %v138, 0.0
  %v171 = vmax.f32 %v139, 0.0
  %v172 = vmax.f32 %v140, 0.0
  %v173 = vmax.f32 %v141, 0.0
  %v174 = vmax.f32 %v142, 0.0
  %v175 = vmax.f32 %v143, 0.0
  %v176 = vmax.f32 %v144, 0.0
  %v177 = vmax.f32 %v145, 0.0
  %v178 = vpack.c.bf16 %v147, %v146
  %v179 = vpack.c.bf16 %v149, %v148
  %v180 = vpack.c.bf16 %v151, %v150
  %v181 = vpack.c.bf16 %v153, %v152
  %v182 = vpack.c.bf16 %v155, %v154
  %v183 = vpack.c.bf16 %v157, %v156
  %v184 = vpack.c.bf16 %v159, %v158
  %v185 = vpack.c.bf16 %v161, %v160
  %v186 = vpack.c.bf16 %v163, %v162
  %v187 = vpack.c.bf16 %v165, %v164
  %v188 = vpack.c.bf16 %v167, %v166
  %v189 = vpack.c.bf16 %v169, %v168
  %v190 = vpack.c.bf16 %v171, %v170
  %v191 = vpack.c.bf16 %v173, %v172
  %v192 = vpack.c.bf16 %v175, %v174
  %v193 = vpack.c.bf16 %v177, %v176
  %194 = vst [vmem:[%s3] sm:$0xff] %v178
  %195 = vst [vmem:[%s3 + $0x8] sm:$0xff] %v179
  %196 = vst [vmem:[%s3 + $0x10] sm:$0xff] %v180
  %197 = vst [vmem:[%s3 + $0x18] sm:$0xff] %v181
  %198 = vst [vmem:[%s3 + $0x20] sm:$0xff] %v182
  %199 = vst [vmem:[%s3 + $0x28] sm:$0xff] %v183
  %200 = vst [vmem:[%s3 + $0x30] sm:$0xff] %v184
  %201 = vst [vmem:[%s3 + $0x38] sm:$0xff] %v185
  %202 = vst [vmem:[%s3 + $0x40] sm:$0xff] %v186
  %203 = vst [vmem:[%s3 + $0x48] sm:$0xff] %v187
  %204 = vst [vmem:[%s3 + $0x50] sm:$0xff] %v188
  %205 = vst [vmem:[%s3 + $0x58] sm:$0xff] %v189
  %206 = vst [vmem:[%s3 + $0x60] sm:$0xff] %v190
  %207 = vst [vmem:[%s3 + $0x68] sm:$0xff] %v191
  %208 = vst [vmem:[%s3 + $0x70] sm:$0xff] %v192
  %209 = vst [vmem:[%s3 + $0x78] sm:$0xff] %v193
  // Predicated region
  $region14: #{generator_forward.24} parent=0 // pred_check
    _
  $region15: #{generator_forward.24} parent=0 // pred_check_branch
    %211 = sbr.rel (0) target = $region17
  $region16: #{generator_forward.24} parent=0 // pred_region
    _
  $region17: #{generator_forward.24} parent=0 // pred_fallthru
    _
  // Predicated region
  $region18: #{generator_forward.24} parent=0 // pred_check
    _
  $region19: #{generator_forward.24} parent=0 // pred_check_branch
    %213 = sbr.rel (0) target = $region21
  $region20: #{generator_forward.24} parent=0 // pred_region
    _
  $region21: #{generator_forward.24} parent=0 // pred_fallthru
    _

// kernel: generator_forward.25
$region0: #{generator_forward.25}
  #allocation0 [shape = 'u32[]', space=smem, size = 0x4, offset = 0x4, fixed_abs, tag = 'smem constant byte address 0x4 - core index']
  #allocation1 [shape = 'u32[72,128]{1,0:T(1,128)}', space=vmem, size = 0x9000, scoped, tag = 'internal scratch']
  %s0 = inlined_call_operand.vmem [shape: bf16[2304,64], index: 0, kind: input, shape index: {}]
  %s1 = inlined_call_operand.vmem [shape: bf16[64,128], index: 1, kind: input, shape index: {}]
  %s2 = inlined_call_operand.vmem [shape: f32[1,128], index: 2, kind: input, shape index: {}]
  %s3 = inlined_call_operand.vmem [shape: f32[2304,128], index: 3, kind: output, shape index: {}]
  %s4 = sld [smem:[#allocation0]]
  $region45: #{generator_forward.25} parent=0
    _
  %s6 = ssub.s32 1, %s4
  %s7 = scalar_select 0, %s6, %s4
  loop: start=0, step=1, limit=11
  $region2: #{generator_forward.25} parent=0 // loop_pre_header
    _
  $region3: #{generator_forward.25} parent=0 // loop_header
    %s9 = sphi 0, %s13
    %p10 = scmp.ge.s32.totalorder %s9, 11
    %s19 = sphi 0, %s21
    %s22 = sphi 0, %s19
    %s23 = sphi 0, %s22
    %s39 = sphi 0, %s23
    %s43 = sphi 0, %s43
    %s45 = sphi 0, %s43
    %s46 = sphi 0, %s45
    %s60 = sphi 0, %s46
    %s64 = sphi 0, %s64
    %s66 = sphi 0, %s64
    %s67 = sphi 0, %s66
    %s81 = sphi 0, %s67
    %s87 = sphi 0, %s89
    %s90 = sphi 0, %s87
    %s91 = sphi 0, %s90
    %s107 = sphi 0, %s91
  $region4: #{generator_forward.25} parent=0 // loop_header_branch
    %12 = sbr.rel (%p10) target = $region8
  $region5: #{generator_forward.25} parent=0 // loop_body
    %s14 = ssub.s32 %s9, 1
    %s15 = ssub.s32 %s9, 2
    %s16 = sadd.s32 %s9, 1
    %s17 = ssub.s32 %s9, %s16
    %p18 = scmp.eq.s32.totalorder %s17, 0
    %s20 = sadd.s32 %s19, 1
    %s21 = scalar_select %p18, %s19, %s20
    %p24 = pneg %p18
    %p25 = scmp.eq.s32.totalorder %s9, 8
    %p26 = por %p24, %p25
    %p27 = scmp.ne.s32.totalorder %s19, %s22
    %p28 = scmp.eq.s32.totalorder %s9, 0
    %p29 = por %p27, %p28
    %p30 = scmp.ne.s32.totalorder %s19, %s22
    %p31 = scmp.eq.s32.totalorder %s14, 8
    %p32 = por %p30, %p31
    %p33 = scmp.ne.s32.totalorder %s22, %s23
    %p34 = scmp.eq.s32.totalorder %s14, 0
    %p35 = por %p33, %p34
    %p36 = scmp.ne.s32.totalorder %s22, %s23
    %p37 = scmp.eq.s32.totalorder %s15, 8
    %p38 = por %p36, %p37
    %p40 = scmp.ne.s32.totalorder %s23, %s39
    %p41 = scmp.eq.s32.totalorder %s15, 0
    %p42 = por %p40, %p41
    %s44 = sadd.s32 %s43, 1
    %p47 = scmp.eq.s32.totalorder %s9, 8
    %p48 = scmp.ne.s32.totalorder %s43, %s45
    %p49 = scmp.eq.s32.totalorder %s9, 0
    %p50 = por %p48, %p49
    %p51 = scmp.ne.s32.totalorder %s43, %s45
    %p52 = scmp.eq.s32.totalorder %s14, 8
    %p53 = por %p51, %p52
    %p54 = scmp.ne.s32.totalorder %s45, %s46
    %p55 = scmp.eq.s32.totalorder %s14, 0
    %p56 = por %p54, %p55
    %p57 = scmp.ne.s32.totalorder %s45, %s46
    %p58 = scmp.eq.s32.totalorder %s15, 8
    %p59 = por %p57, %p58
    %p61 = scmp.ne.s32.totalorder %s46, %s60
    %p62 = scmp.eq.s32.totalorder %s15, 0
    %p63 = por %p61, %p62
    %s65 = sadd.s32 %s64, 1
    %p68 = scmp.eq.s32.totalorder %s9, 8
    %p69 = scmp.ne.s32.totalorder %s64, %s66
    %p70 = scmp.eq.s32.totalorder %s9, 0
    %p71 = por %p69, %p70
    %p72 = scmp.ne.s32.totalorder %s64, %s66
    %p73 = scmp.eq.s32.totalorder %s14, 8
    %p74 = por %p72, %p73
    %p75 = scmp.ne.s32.totalorder %s66, %s67
    %p76 = scmp.eq.s32.totalorder %s14, 0
    %p77 = por %p75, %p76
    %p78 = scmp.ne.s32.totalorder %s66, %s67
    %p79 = scmp.eq.s32.totalorder %s15, 8
    %p80 = por %p78, %p79
    %p82 = scmp.ne.s32.totalorder %s67, %s81
    %p83 = scmp.eq.s32.totalorder %s15, 0
    %p84 = por %p82, %p83
    %s85 = ssub.s32 %s9, %s16
    %p86 = scmp.eq.s32.totalorder %s85, 0
    %s88 = sadd.s32 %s87, 1
    %s89 = scalar_select %p86, %s87, %s88
    %p92 = pneg %p86
    %p93 = scmp.eq.s32.totalorder %s9, 8
    %p94 = por %p92, %p93
    %p95 = scmp.ne.s32.totalorder %s87, %s90
    %p96 = scmp.eq.s32.totalorder %s9, 0
    %p97 = por %p95, %p96
    %p98 = scmp.ne.s32.totalorder %s87, %s90
    %p99 = scmp.eq.s32.totalorder %s14, 8
    %p100 = por %p98, %p99
    %p101 = scmp.ne.s32.totalorder %s90, %s91
    %p102 = scmp.eq.s32.totalorder %s14, 0
    %p103 = por %p101, %p102
    %p104 = scmp.ne.s32.totalorder %s90, %s91
    %p105 = scmp.eq.s32.totalorder %s15, 8
    %p106 = por %p104, %p105
    %p108 = scmp.ne.s32.totalorder %s91, %s107
    %p109 = scmp.eq.s32.totalorder %s15, 0
    %p110 = por %p108, %p109
    %p111 = scmp.le.s32.totalorder 1, %s9
    %p112 = scmp.lt.s32.totalorder %s9, 10
    %p113 = pnand %p111, %p112
    %p114 = pneg %p113
    // Predicated region
    $region9: #{generator_forward.25} parent=5 // pred_check
      _
    $region10: #{generator_forward.25} parent=5 // pred_check_branch
      %116 = sbr.rel (%p113) target = $region12
    $region11: #{generator_forward.25} parent=5 // pred_region
      %s117 = ssub.s32 %s9, 1
      // Predicated region
      $region13: #{generator_forward.25} parent=11 // pred_check
        %p118 = pneg %p56
      $region14: #{generator_forward.25} parent=11 // pred_check_branch
        %120 = sbr.rel (%p118) target = $region16
      $region15: #{generator_forward.25} parent=11 // pred_region
        _
      $region16: #{generator_forward.25} parent=11 // pred_fallthru
        _
      // Predicated region
      $region17: #{generator_forward.25} parent=11 // pred_check
        %p121 = pneg %p77
      $region18: #{generator_forward.25} parent=11 // pred_check_branch
        %123 = sbr.rel (%p121) target = $region20
      $region19: #{generator_forward.25} parent=11 // pred_region
        _
      $region20: #{generator_forward.25} parent=11 // pred_fallthru
        _
    $region12: #{generator_forward.25} parent=5 // pred_fallthru
      _
    %p124 = scmp.lt.s32.totalorder %s9, 9
    // Predicated region
    $region21: #{generator_forward.25} parent=5 // pred_check
      %p125 = pneg %p124
    $region22: #{generator_forward.25} parent=5 // pred_check_branch
      %127 = sbr.rel (%p125) target = $region24
    $region23: #{generator_forward.25} parent=5 // pred_region
      // Predicated region
      $region25: #{generator_forward.25} parent=23 // pred_check
        %p128 = pneg %p29
      $region26: #{generator_forward.25} parent=23 // pred_check_branch
        %130 = sbr.rel (%p128) target = $region28
      $region27: #{generator_forward.25} parent=23 // pred_region
        %s131 = smul.u32 32, %s9
        %p132 = scmp.lt.s32.totalorder %s131, 287
        %s133 = scalar_select %p132, %s131, 287
        %s134 = smul.addr %s133, 4
        %s135 = scalar_lea.vmem %s0, %s134
        %s136 = smul.u32 32, %s9
      $region28: #{generator_forward.25} parent=23 // pred_fallthru
        _
    $region24: #{generator_forward.25} parent=5 // pred_fallthru
      _
    %p137 = scmp.le.s32.totalorder 1, %s9
    %p138 = scmp.lt.s32.totalorder %s9, 10
    %p139 = pnand %p137, %p138
    %p140 = pneg %p139
    // Predicated region
    $region29: #{generator_forward.25} parent=5 // pred_check
      _
    $region30: #{generator_forward.25} parent=5 // pred_check_branch
      %142 = sbr.rel (%p139) target = $region32
    $region31: #{generator_forward.25} parent=5 // pred_region
      %s143 = ssub.s32 %s9, 1
      %s144 = smul.u32 32, %s14
      %p145 = scmp.lt.s32.totalorder %s144, 287
      %s146 = scalar_select %p145, %s144, 287
      %s147 = smul.addr %s146, 4
      %s148 = scalar_lea.vmem %s0, %s147
      %p149 = pneg %p35
      %p150 = pneg %p32
      %p151 = pneg %p56
      %p152 = pneg %p53
      %p153 = pneg %p77
      %p154 = pneg %p74
      %p155 = pneg %p103
      %p156 = pneg %p100
      %s157 = smul.u32 32, %s14
      %p158 = scmp.lt.s32.totalorder %s157, 287
      %s159 = scalar_select %p158, %s157, 287
      %s160 = smul.addr %s159, 8
      %s161 = scalar_lea.vmem %s3, %s160
      %s162 = smul.u32 32, %s14
      %p163 = scmp.lt.s32.totalorder %s162, 287
      %s164 = scalar_select %p163, %s162, 287
      %s165 = smul.addr %s164, 4
      %s166 = scalar_lea.vmem %s0, %s165
      %s167 = smul.u32 32, %s14
      %s168 = smul.u32 32, %s14
      %p169 = scmp.lt.s32.totalorder %s168, 287
      %s170 = scalar_select %p169, %s168, 287
      %s171 = smul.addr %s170, 8
      %s172 = scalar_lea.vmem %s3, %s171
      %s173 = smul.u32 32, %s14
      %v175 = vld [vmem:[%s166] sm:$0xf]
      %v176 = vld [vmem:[%s166 + $0x4] sm:$0xf]
      %v177 = vld [vmem:[%s166 + $0x8] sm:$0xf]
      %v178 = vld [vmem:[%s166 + $0xc] sm:$0xf]
      %v179 = vld [vmem:[%s166 + $0x10] sm:$0xf]
      %v180 = vld [vmem:[%s166 + $0x14] sm:$0xf]
      %v181 = vld [vmem:[%s166 + $0x18] sm:$0xf]
      %v182 = vld [vmem:[%s166 + $0x1c] sm:$0xf]
      %v183 = vld [vmem:[%s166 + $0x20] sm:$0xf]
      %v184 = vld [vmem:[%s166 + $0x24] sm:$0xf]
      %v185 = vld [vmem:[%s166 + $0x28] sm:$0xf]
      %v186 = vld [vmem:[%s166 + $0x2c] sm:$0xf]
      %v187 = vld [vmem:[%s166 + $0x30] sm:$0xf]
      %v188 = vld [vmem:[%s166 + $0x34] sm:$0xf]
      %v189 = vld [vmem:[%s166 + $0x38] sm:$0xf]
      %v190 = vld [vmem:[%s166 + $0x3c] sm:$0xf]
      %v191 = vld [vmem:[%s166 + $0x40] sm:$0xf]
      %v192 = vld [vmem:[%s166 + $0x44] sm:$0xf]
      %v193 = vld [vmem:[%s166 + $0x48] sm:$0xf]
      %v194 = vld [vmem:[%s166 + $0x4c] sm:$0xf]
      %v195 = vld [vmem:[%s166 + $0x50] sm:$0xf]
      %v196 = vld [vmem:[%s166 + $0x54] sm:$0xf]
      %v197 = vld [vmem:[%s166 + $0x58] sm:$0xf]
      %v198 = vld [vmem:[%s166 + $0x5c] sm:$0xf]
      %v199 = vld [vmem:[%s166 + $0x60] sm:$0xf]
      %v200 = vld [vmem:[%s166 + $0x64] sm:$0xf]
      %v201 = vld [vmem:[%s166 + $0x68] sm:$0xf]
      %v202 = vld [vmem:[%s166 + $0x6c] sm:$0xf]
      %v203 = vld [vmem:[%s166 + $0x70] sm:$0xf]
      %v204 = vld [vmem:[%s166 + $0x74] sm:$0xf]
      %v205 = vld [vmem:[%s166 + $0x78] sm:$0xf]
      %v206 = vld [vmem:[%s166 + $0x7c] sm:$0xf]
      %v207 = vld [vmem:[%s1] sm:$0xf]
      %v208 = vld [vmem:[%s1 + $0x4] sm:$0xf]
      %v209 = vld [vmem:[%s1 + $0x8] sm:$0xf]
      %v210 = vld [vmem:[%s1 + $0xc] sm:$0xf]
      %v211 = vld [vmem:[%s1 + $0x10] sm:$0xf]
      %v212 = vld [vmem:[%s1 + $0x14] sm:$0xf]
      %v213 = vld [vmem:[%s1 + $0x18] sm:$0xf]
      %v214 = vld [vmem:[%s1 + $0x1c] sm:$0xf]
      %v215 = vld [vmem:[%s2] sm:$0x1]
      %v217 = vperm.slane %v215, 0
      %v251 = vunpack.c.l.b16 %v175
      %v252 = vunpack.c.l.b16 %v176
      %v253 = vunpack.c.l.b16 %v177
      %v254 = vunpack.c.l.b16 %v178
      %v255 = vunpack.c.l.b16 %v179
      %v256 = vunpack.c.l.b16 %v180
      %v257 = vunpack.c.l.b16 %v181
      %v258 = vunpack.c.l.b16 %v182
      %v259 = vunpack.c.l.b16 %v183
      %v260 = vunpack.c.l.b16 %v184
      %v261 = vunpack.c.l.b16 %v185
      %v262 = vunpack.c.l.b16 %v186
      %v263 = vunpack.c.l.b16 %v187
      %v264 = vunpack.c.l.b16 %v188
      %v265 = vunpack.c.l.b16 %v189
      %v266 = vunpack.c.l.b16 %v190
      %v267 = vunpack.c.l.b16 %v191
      %v268 = vunpack.c.l.b16 %v192
      %v269 = vunpack.c.l.b16 %v193
      %v270 = vunpack.c.l.b16 %v194
      %v271 = vunpack.c.l.b16 %v195
      %v272 = vunpack.c.l.b16 %v196
      %v273 = vunpack.c.l.b16 %v197
      %v274 = vunpack.c.l.b16 %v198
      %v275 = vunpack.c.l.b16 %v199
      %v276 = vunpack.c.l.b16 %v200
      %v277 = vunpack.c.l.b16 %v201
      %v278 = vunpack.c.l.b16 %v202
      %v279 = vunpack.c.l.b16 %v203
      %v280 = vunpack.c.l.b16 %v204
      %v281 = vunpack.c.l.b16 %v205
      %v282 = vunpack.c.l.b16 %v206
      %v283 = vpack.c.b16 %v252, %v251
      %v284 = vpack.c.b16 %v254, %v253
      %v285 = vpack.c.b16 %v256, %v255
      %v286 = vpack.c.b16 %v258, %v257
      %v287 = vpack.c.b16 %v260, %v259
      %v288 = vpack.c.b16 %v262, %v261
      %v289 = vpack.c.b16 %v264, %v263
      %v290 = vpack.c.b16 %v266, %v265
      %v291 = vpack.c.b16 %v268, %v267
      %v292 = vpack.c.b16 %v270, %v269
      %v293 = vpack.c.b16 %v272, %v271
      %v294 = vpack.c.b16 %v274, %v273
      %v295 = vpack.c.b16 %v276, %v275
      %v296 = vpack.c.b16 %v278, %v277
      %v297 = vpack.c.b16 %v280, %v279
      %v298 = vpack.c.b16 %v282, %v281
      %v307 = vunpack.c.l.b16 %v207
      %v308 = vunpack.c.l.b16 %v208
      %v309 = vunpack.c.l.b16 %v209
      %v310 = vunpack.c.l.b16 %v210
      %v311 = vunpack.c.l.b16 %v211
      %v312 = vunpack.c.l.b16 %v212
      %v313 = vunpack.c.l.b16 %v213
      %v314 = vunpack.c.l.b16 %v214
      %v315 = vpack.c.b16 %v308, %v307
      %v316 = vpack.c.b16 %v310, %v309
      %v317 = vpack.c.b16 %v312, %v311
      %v318 = vpack.c.b16 %v314, %v313
      %vm323 = vcmask 523264
      %v325 = vsel %vm323, %v283, 0
      %v328 = vsel %vm323, %v284, 0
      %v331 = vsel %vm323, %v285, 0
      %v334 = vsel %vm323, %v286, 0
      %v337 = vsel %vm323, %v287, 0
      %v340 = vsel %vm323, %v288, 0
      %v343 = vsel %vm323, %v289, 0
      %v346 = vsel %vm323, %v290, 0
      %v349 = vsel %vm323, %v291, 0
      %v352 = vsel %vm323, %v292, 0
      %v355 = vsel %vm323, %v293, 0
      %v358 = vsel %vm323, %v294, 0
      %v361 = vsel %vm323, %v295, 0
      %v364 = vsel %vm323, %v296, 0
      %v367 = vsel %vm323, %v297, 0
      %v370 = vsel %vm323, %v298, 0
      %372 = vmatpush.bf16.msra.mxu0 0
      %373 = vmatpush.bf16.msra.mxu0 0
      %374 = vmatpush.bf16.msra.mxu0 0
      %375 = vmatpush.bf16.msra.mxu0 0
      %376 = vmatpush.bf16.msra.mxu0 %v318
      %377 = vmatpush.bf16.msra.mxu0 %v317
      %378 = vmatpush.bf16.msra.mxu0 %v316
      %379 = vmatpush.bf16.msra.mxu0 %v315
      %380 = vmatmul.bf16.gmra.mxu0 %v325
      %v381 = vpop.f32.mrf.mxu0
      %v382 = vadd.f32 %v217, %v381
      %v383 = vpop.f32.mrf.mxu0
      %v384 = vadd.f32 %v217, %v383
      %385 = vmatmul.bf16.gmra.mxu0 %v328
      %v386 = vpop.f32.mrf.mxu0
      %v387 = vadd.f32 %v217, %v386
      %v388 = vpop.f32.mrf.mxu0
      %v389 = vadd.f32 %v217, %v388
      %390 = vmatmul.bf16.gmra.mxu0 %v331
      %v391 = vpop.f32.mrf.mxu0
      %v392 = vadd.f32 %v217, %v391
      %v393 = vpop.f32.mrf.mxu0
      %v394 = vadd.f32 %v217, %v393
      %395 = vmatmul.bf16.gmra.mxu0 %v334
      %v396 = vpop.f32.mrf.mxu0
      %v397 = vadd.f32 %v217, %v396
      %v398 = vpop.f32.mrf.mxu0
      %v399 = vadd.f32 %v217, %v398
      %400 = vmatmul.bf16.gmra.mxu0 %v337
      %v401 = vpop.f32.mrf.mxu0
      %v402 = vadd.f32 %v217, %v401
      %v403 = vpop.f32.mrf.mxu0
      %v404 = vadd.f32 %v217, %v403
      %405 = vmatmul.bf16.gmra.mxu0 %v340
      %v406 = vpop.f32.mrf.mxu0
      %v407 = vadd.f32 %v217, %v406
      %v408 = vpop.f32.mrf.mxu0
      %v409 = vadd.f32 %v217, %v408
      %410 = vmatmul.bf16.gmra.mxu0 %v343
      %v411 = vpop.f32.mrf.mxu0
      %v412 = vadd.f32 %v217, %v411
      %v413 = vpop.f32.mrf.mxu0
      %v414 = vadd.f32 %v217, %v413
      %415 = vmatmul.bf16.gmra.mxu0 %v346
      %v416 = vpop.f32.mrf.mxu0
      %v417 = vadd.f32 %v217, %v416
      %v418 = vpop.f32.mrf.mxu0
      %v419 = vadd.f32 %v217, %v418
      %420 = vmatmul.bf16.gmra.mxu0 %v349
      %v421 = vpop.f32.mrf.mxu0
      %v422 = vadd.f32 %v217, %v421
      %v423 = vpop.f32.mrf.mxu0
      %v424 = vadd.f32 %v217, %v423
      %425 = vmatmul.bf16.gmra.mxu0 %v352
      %v426 = vpop.f32.mrf.mxu0
      %v427 = vadd.f32 %v217, %v426
      %v428 = vpop.f32.mrf.mxu0
      %v429 = vadd.f32 %v217, %v428
      %430 = vmatmul.bf16.gmra.mxu0 %v355
      %v431 = vpop.f32.mrf.mxu0
      %v432 = vadd.f32 %v217, %v431
      %v433 = vpop.f32.mrf.mxu0
      %v434 = vadd.f32 %v217, %v433
      %435 = vmatmul.bf16.gmra.mxu0 %v358
      %v436 = vpop.f32.mrf.mxu0
      %v437 = vadd.f32 %v217, %v436
      %v438 = vpop.f32.mrf.mxu0
      %v439 = vadd.f32 %v217, %v438
      %440 = vmatmul.bf16.gmra.mxu0 %v361
      %v441 = vpop.f32.mrf.mxu0
      %v442 = vadd.f32 %v217, %v441
      %v443 = vpop.f32.mrf.mxu0
      %v444 = vadd.f32 %v217, %v443
      %445 = vmatmul.bf16.gmra.mxu0 %v364
      %v446 = vpop.f32.mrf.mxu0
      %v447 = vadd.f32 %v217, %v446
      %v448 = vpop.f32.mrf.mxu0
      %v449 = vadd.f32 %v217, %v448
      %450 = vmatmul.bf16.gmra.mxu0 %v367
      %v451 = vpop.f32.mrf.mxu0
      %v452 = vadd.f32 %v217, %v451
      %v453 = vpop.f32.mrf.mxu0
      %v454 = vadd.f32 %v217, %v453
      %455 = vmatmul.bf16.gmra.mxu0 %v370
      %v456 = vpop.f32.mrf.mxu0
      %v457 = vadd.f32 %v217, %v456
      %v458 = vpop.f32.mrf.mxu0
      %v459 = vadd.f32 %v217, %v458
      %460 = vdwg.mxu0
      %v461 = vtanh.pop %v382
      %v462 = vtanh.pop %v384
      %v463 = vtanh.pop %v387
      %v464 = vtanh.pop %v389
      %v465 = vtanh.pop %v392
      %v466 = vtanh.pop %v394
      %v467 = vtanh.pop %v397
      %v468 = vtanh.pop %v399
      %v469 = vtanh.pop %v402
      %v470 = vtanh.pop %v404
      %v471 = vtanh.pop %v407
      %v472 = vtanh.pop %v409
      %v473 = vtanh.pop %v412
      %v474 = vtanh.pop %v414
      %v475 = vtanh.pop %v417
      %v476 = vtanh.pop %v419
      %v477 = vtanh.pop %v422
      %v478 = vtanh.pop %v424
      %v479 = vtanh.pop %v427
      %v480 = vtanh.pop %v429
      %v481 = vtanh.pop %v432
      %v482 = vtanh.pop %v434
      %v483 = vtanh.pop %v437
      %v484 = vtanh.pop %v439
      %v485 = vtanh.pop %v442
      %v486 = vtanh.pop %v444
      %v487 = vtanh.pop %v447
      %v488 = vtanh.pop %v449
      %v489 = vtanh.pop %v452
      %v490 = vtanh.pop %v454
      %v491 = vtanh.pop %v457
      %v492 = vtanh.pop %v459
      %493 = vst [vmem:[%s172] sm:$0xff] %v461
      %494 = vst [vmem:[%s172 + $0x8] sm:$0xff] %v462
      %495 = vst [vmem:[%s172 + $0x10] sm:$0xff] %v463
      %496 = vst [vmem:[%s172 + $0x18] sm:$0xff] %v464
      %497 = vst [vmem:[%s172 + $0x20] sm:$0xff] %v465
      %498 = vst [vmem:[%s172 + $0x28] sm:$0xff] %v466
      %499 = vst [vmem:[%s172 + $0x30] sm:$0xff] %v467
      %500 = vst [vmem:[%s172 + $0x38] sm:$0xff] %v468
      %501 = vst [vmem:[%s172 + $0x40] sm:$0xff] %v469
      %502 = vst [vmem:[%s172 + $0x48] sm:$0xff] %v470
      %503 = vst [vmem:[%s172 + $0x50] sm:$0xff] %v471
      %504 = vst [vmem:[%s172 + $0x58] sm:$0xff] %v472
      %505 = vst [vmem:[%s172 + $0x60] sm:$0xff] %v473
      %506 = vst [vmem:[%s172 + $0x68] sm:$0xff] %v474
      %507 = vst [vmem:[%s172 + $0x70] sm:$0xff] %v475
      %508 = vst [vmem:[%s172 + $0x78] sm:$0xff] %v476
      %509 = vst [vmem:[%s172 + $0x80] sm:$0xff] %v477
      %510 = vst [vmem:[%s172 + $0x88] sm:$0xff] %v478
      %511 = vst [vmem:[%s172 + $0x90] sm:$0xff] %v479
      %512 = vst [vmem:[%s172 + $0x98] sm:$0xff] %v480
      %513 = vst [vmem:[%s172 + $0xa0] sm:$0xff] %v481
      %514 = vst [vmem:[%s172 + $0xa8] sm:$0xff] %v482
      %515 = vst [vmem:[%s172 + $0xb0] sm:$0xff] %v483
      %516 = vst [vmem:[%s172 + $0xb8] sm:$0xff] %v484
      %517 = vst [vmem:[%s172 + $0xc0] sm:$0xff] %v485
      %518 = vst [vmem:[%s172 + $0xc8] sm:$0xff] %v486
      %519 = vst [vmem:[%s172 + $0xd0] sm:$0xff] %v487
      %520 = vst [vmem:[%s172 + $0xd8] sm:$0xff] %v488
      %521 = vst [vmem:[%s172 + $0xe0] sm:$0xff] %v489
      %522 = vst [vmem:[%s172 + $0xe8] sm:$0xff] %v490
      %523 = vst [vmem:[%s172 + $0xf0] sm:$0xff] %v491
      %524 = vst [vmem:[%s172 + $0xf8] sm:$0xff] %v492
      %s525 = smul.u32 32, %s14
      %p526 = scmp.lt.s32.totalorder %s525, 287
      %s527 = scalar_select %p526, %s525, 287
      %s528 = smul.addr %s527, 8
      %s529 = scalar_lea.vmem %s3, %s528
      // Predicated region
      $region33: #{generator_forward.25} parent=31 // pred_check
        %p530 = pneg %p100
      $region34: #{generator_forward.25} parent=31 // pred_check_branch
        %532 = sbr.rel (%p530) target = $region36
      $region35: #{generator_forward.25} parent=31 // pred_region
        %s533 = smul.u32 32, %s14
      $region36: #{generator_forward.25} parent=31 // pred_fallthru
        _
    $region32: #{generator_forward.25} parent=5 // pred_fallthru
      _
    %p534 = scmp.le.s32.totalorder 2, %s9
    // Predicated region
    $region37: #{generator_forward.25} parent=5 // pred_check
      %p535 = pneg %p534
    $region38: #{generator_forward.25} parent=5 // pred_check_branch
      %537 = sbr.rel (%p535) target = $region40
    $region39: #{generator_forward.25} parent=5 // pred_region
      %s538 = ssub.s32 %s9, 2
      // Predicated region
      $region41: #{generator_forward.25} parent=39 // pred_check
        %p539 = pneg %p106
      $region42: #{generator_forward.25} parent=39 // pred_check_branch
        %541 = sbr.rel (%p539) target = $region44
      $region43: #{generator_forward.25} parent=39 // pred_region
        %s542 = smul.u32 32, %s15
        %p543 = scmp.lt.s32.totalorder %s542, 287
        %s544 = scalar_select %p543, %s542, 287
        %s545 = smul.addr %s544, 8
        %s546 = scalar_lea.vmem %s3, %s545
      $region44: #{generator_forward.25} parent=39 // pred_fallthru
        _
    $region40: #{generator_forward.25} parent=5 // pred_fallthru
      _
  $region6: #{generator_forward.25} parent=0 // loop_footer
    %s13 = sadd.s32 1, %s9
  $region7: #{generator_forward.25} parent=0 // loop_footer_branch
    %8 = sbr.rel target = $region3
  $region8: #{generator_forward.25} parent=0 // loop_exit
    _

</llo_original>
